<compile_context>
chip_gen: v5e
topology: v5e:2x2
jax: 0.10.0
libtpu: 0.0.40
codegen_flags: <defaults>
</compile_context>

<pallas_src>
import jax
import jax.numpy as jnp
from jax.experimental import pallas as pl
from jax.experimental.pallas import tpu as pltpu


def _pixel_attention_kernel(x_ref, w_ref, b_ref, out_ref):
    # x_ref : (nb, C, th, W)   VMEM block of the input, native NCHW layout
    # w_ref : (C,)             SMEM, 1x1-conv weight (single output channel)
    # b_ref : (1,)             SMEM, conv bias
    # out_ref: (nb, th//2, W//2)
    nb, C, th, W = x_ref.shape

    # 1x1 conv == weighted reduce over the leading channel axis.  Statically
    # unrolled (C=128): each step is a ref load + scalar*vector FMA, so the
    # only long-lived value is the small f32 accumulator.
    acc = jnp.zeros((nb, th, W), jnp.float32)
    for c in range(C):
        acc = acc + x_ref[:, c, :, :].astype(jnp.float32) * w_ref[c]

    # 2x2 / stride-2 max pool on the small post-reduce array.
    tho, wo = th // 2, W // 2
    r = jnp.max(acc.reshape(nb, tho, 2, W), axis=2)   # pool rows (sublane pairs)
    m = jnp.max(r.reshape(nb, tho, wo, 2), axis=3)    # pool cols (lane pairs)

    # Scalar bias commutes with max -> apply once after pooling, then sigmoid.
    out_ref[...] = jax.nn.sigmoid(m + b_ref[0]).astype(out_ref.dtype)


def pixel_attention(x, w, b, *, block_budget_bytes=4 * 1024 * 1024):
    """x: (N, 128, H, W), w: (1, 128, 1, 1), b: (1,) -> (N, 1, H//2, W//2)."""
    N, C, H, W = x.shape
    assert H % 2 == 0 and W % 2 == 0, "MaxPool2d(2,2) needs even H and W"
    Ho, Wo = H // 2, W // 2
    itemsize = jnp.dtype(x.dtype).itemsize
    image_bytes = C * H * W * itemsize

    # Choose rows-per-step (th) and images-per-step (nb) under the VMEM budget
    # (budget * 2 for double buffering stays well under the 16 MiB v5e scoped
    # default, so no vmem_limit_bytes override is needed).
    if image_bytes <= block_budget_bytes:
        th = H                                     # whole image(s) per step
        nb = 1
        for cand in range(N, 0, -1):               # fold the batch if it fits
            if N % cand == 0 and cand * image_bytes <= block_budget_bytes:
                nb = cand
                break
    else:
        nb = 1
        th = None
        for cand in range(H, 15, -1):              # largest divisor of H that
            if (H % cand == 0 and cand % 16 == 0   # is a multiple of 16 (keeps
                    and C * cand * W * itemsize <= block_budget_bytes):  # th/2
                th = cand                          # sublane-aligned) and fits
                break
        if th is None:                             # fallback for exotic H
            th = 16 if H % 16 == 0 else H

    grid = (N // nb, H // th)

    wv = w.reshape(C).astype(jnp.float32)          # (C,) -> SMEM
    bb = b.reshape(1).astype(jnp.float32)          # (1,) -> SMEM

    out = pl.pallas_call(
        _pixel_attention_kernel,
        out_shape=jax.ShapeDtypeStruct((N, Ho, Wo), jnp.float32),
        grid=grid,
        in_specs=[
            pl.BlockSpec((nb, C, th, W), lambda nbi, hi: (nbi, 0, hi, 0)),
            pl.BlockSpec(memory_space=pltpu.MemorySpace.SMEM),   # conv weight
            pl.BlockSpec(memory_space=pltpu.MemorySpace.SMEM),   # conv bias
        ],
        out_specs=pl.BlockSpec((nb, th // 2, Wo), lambda nbi, hi: (nbi, hi, 0)),
        compiler_params=pltpu.CompilerParams(
            dimension_semantics=("parallel", "parallel")),
    )(x, wv, bb)

    return out[:, None, :, :]                      # (N, 1, Ho, Wo)


def pixel_attention_reference(x, w, b):
    """Pure-JAX reference of the PyTorch module (for correctness check)."""
    a = jnp.tensordot(x, w[0, :, 0, 0], axes=([1], [0])) + b[0]   # (N, H, W)
    N, H, W = a.shape
    a = a.reshape(N, H // 2, 2, W // 2, 2)
    m = jnp.max(a, axis=(2, 4))                                   # (N, H/2, W/2)
    return jax.nn.sigmoid(m)[:, None, :, :]


if __name__ == "__main__":
    key = jax.random.PRNGKey(0)
    N, C, H, W = 2, 128, 16, 16          # in_channels=128 is fixed by the module
    k_x, k_w, k_b = jax.random.split(key, 3)

    x = jax.random.normal(k_x, (N, C, H, W), jnp.float32)
    w = 0.1 * jax.random.normal(k_w, (1, C, 1, 1), jnp.float32)
    b = 0.1 * jax.random.normal(k_b, (1,), jnp.float32)

    out = jax.jit(pixel_attention)(x, w, b)
    out = jax.block_until_ready(out)

    assert out.shape == (N, 1, H // 2, W // 2), out.shape
    ref = pixel_attention_reference(x, w, b)
    max_err = float(jnp.max(jnp.abs(out - ref)))
    assert jnp.allclose(out, ref, rtol=1e-5, atol=2e-5), max_err
    assert bool(jnp.all(jnp.isfinite(out)))
    print("KERNEL_OK")
</pallas_src>

<mosaic_0001>
module attributes {stable_mosaic.version = 11 : i64} {
  func.func @_pixel_attention_kernel(%arg0: i32, %arg1: i32, %arg2: memref<2x128x16x16xf32, #tpu.memory_space<vmem>>, %arg3: memref<128xf32, #tpu.memory_space<smem>>, %arg4: memref<1xf32, #tpu.memory_space<smem>>, %arg5: memref<2x8x8xf32, #tpu.memory_space<vmem>>) attributes {dimension_semantics = [#tpu.dimension_semantics<parallel>, #tpu.dimension_semantics<parallel>], iteration_bounds = array<i64: 1, 1>, scalar_prefetch = 0 : i64, scratch_operands = 0 : i64, tpu.core_type = #tpu.core_type<tc>, window_params = [{transform_indices = @transform_0, window_bounds = array<i64: 2, 128, 16, 16>}, {transform_indices = @transform_1, window_bounds = array<i64: 128>}, {transform_indices = @transform_2, window_bounds = array<i64: 1>}, {transform_indices = @transform_3, window_bounds = array<i64: 2, 8, 8>}]} {
    %cst = arith.constant 0.000000e+00 : f32
    %0 = vector.broadcast %cst : f32 to vector<2x16x16xf32>
    %c0 = arith.constant 0 : index
    %c0_0 = arith.constant 0 : index
    %c0_1 = arith.constant 0 : index
    %c0_2 = arith.constant 0 : index
    %1 = vector.load %arg2[%c0, %c0_0, %c0_1, %c0_2] : memref<2x128x16x16xf32, #tpu.memory_space<vmem>>, vector<2x1x16x16xf32>
    %2 = vector.shape_cast %1 : vector<2x1x16x16xf32> to vector<2x16x16xf32>
    %c0_3 = arith.constant 0 : index
    %3 = memref.load %arg3[%c0_3] : memref<128xf32, #tpu.memory_space<smem>>
    %4 = vector.broadcast %3 : f32 to vector<2x16x16xf32>
    %5 = arith.mulf %2, %4 : vector<2x16x16xf32>
    %6 = arith.addf %0, %5 : vector<2x16x16xf32>
    %c0_4 = arith.constant 0 : index
    %c1 = arith.constant 1 : index
    %c0_5 = arith.constant 0 : index
    %c0_6 = arith.constant 0 : index
    %7 = vector.load %arg2[%c0_4, %c1, %c0_5, %c0_6] : memref<2x128x16x16xf32, #tpu.memory_space<vmem>>, vector<2x1x16x16xf32>
    %8 = vector.shape_cast %7 : vector<2x1x16x16xf32> to vector<2x16x16xf32>
    %c1_7 = arith.constant 1 : index
    %9 = memref.load %arg3[%c1_7] : memref<128xf32, #tpu.memory_space<smem>>
    %10 = vector.broadcast %9 : f32 to vector<2x16x16xf32>
    %11 = arith.mulf %8, %10 : vector<2x16x16xf32>
    %12 = arith.addf %6, %11 : vector<2x16x16xf32>
    %c0_8 = arith.constant 0 : index
    %c2 = arith.constant 2 : index
    %c0_9 = arith.constant 0 : index
    %c0_10 = arith.constant 0 : index
    %13 = vector.load %arg2[%c0_8, %c2, %c0_9, %c0_10] : memref<2x128x16x16xf32, #tpu.memory_space<vmem>>, vector<2x1x16x16xf32>
    %14 = vector.shape_cast %13 : vector<2x1x16x16xf32> to vector<2x16x16xf32>
    %c2_11 = arith.constant 2 : index
    %15 = memref.load %arg3[%c2_11] : memref<128xf32, #tpu.memory_space<smem>>
    %16 = vector.broadcast %15 : f32 to vector<2x16x16xf32>
    %17 = arith.mulf %14, %16 : vector<2x16x16xf32>
    %18 = arith.addf %12, %17 : vector<2x16x16xf32>
    %c0_12 = arith.constant 0 : index
    %c3 = arith.constant 3 : index
    %c0_13 = arith.constant 0 : index
    %c0_14 = arith.constant 0 : index
    %19 = vector.load %arg2[%c0_12, %c3, %c0_13, %c0_14] : memref<2x128x16x16xf32, #tpu.memory_space<vmem>>, vector<2x1x16x16xf32>
    %20 = vector.shape_cast %19 : vector<2x1x16x16xf32> to vector<2x16x16xf32>
    %c3_15 = arith.constant 3 : index
    %21 = memref.load %arg3[%c3_15] : memref<128xf32, #tpu.memory_space<smem>>
    %22 = vector.broadcast %21 : f32 to vector<2x16x16xf32>
    %23 = arith.mulf %20, %22 : vector<2x16x16xf32>
    %24 = arith.addf %18, %23 : vector<2x16x16xf32>
    %c0_16 = arith.constant 0 : index
    %c4 = arith.constant 4 : index
    %c0_17 = arith.constant 0 : index
    %c0_18 = arith.constant 0 : index
    %25 = vector.load %arg2[%c0_16, %c4, %c0_17, %c0_18] : memref<2x128x16x16xf32, #tpu.memory_space<vmem>>, vector<2x1x16x16xf32>
    %26 = vector.shape_cast %25 : vector<2x1x16x16xf32> to vector<2x16x16xf32>
    %c4_19 = arith.constant 4 : index
    %27 = memref.load %arg3[%c4_19] : memref<128xf32, #tpu.memory_space<smem>>
    %28 = vector.broadcast %27 : f32 to vector<2x16x16xf32>
    %29 = arith.mulf %26, %28 : vector<2x16x16xf32>
    %30 = arith.addf %24, %29 : vector<2x16x16xf32>
    %c0_20 = arith.constant 0 : index
    %c5 = arith.constant 5 : index
    %c0_21 = arith.constant 0 : index
    %c0_22 = arith.constant 0 : index
    %31 = vector.load %arg2[%c0_20, %c5, %c0_21, %c0_22] : memref<2x128x16x16xf32, #tpu.memory_space<vmem>>, vector<2x1x16x16xf32>
    %32 = vector.shape_cast %31 : vector<2x1x16x16xf32> to vector<2x16x16xf32>
    %c5_23 = arith.constant 5 : index
    %33 = memref.load %arg3[%c5_23] : memref<128xf32, #tpu.memory_space<smem>>
    %34 = vector.broadcast %33 : f32 to vector<2x16x16xf32>
    %35 = arith.mulf %32, %34 : vector<2x16x16xf32>
    %36 = arith.addf %30, %35 : vector<2x16x16xf32>
    %c0_24 = arith.constant 0 : index
    %c6 = arith.constant 6 : index
    %c0_25 = arith.constant 0 : index
    %c0_26 = arith.constant 0 : index
    %37 = vector.load %arg2[%c0_24, %c6, %c0_25, %c0_26] : memref<2x128x16x16xf32, #tpu.memory_space<vmem>>, vector<2x1x16x16xf32>
    %38 = vector.shape_cast %37 : vector<2x1x16x16xf32> to vector<2x16x16xf32>
    %c6_27 = arith.constant 6 : index
    %39 = memref.load %arg3[%c6_27] : memref<128xf32, #tpu.memory_space<smem>>
    %40 = vector.broadcast %39 : f32 to vector<2x16x16xf32>
    %41 = arith.mulf %38, %40 : vector<2x16x16xf32>
    %42 = arith.addf %36, %41 : vector<2x16x16xf32>
    %c0_28 = arith.constant 0 : index
    %c7 = arith.constant 7 : index
    %c0_29 = arith.constant 0 : index
    %c0_30 = arith.constant 0 : index
    %43 = vector.load %arg2[%c0_28, %c7, %c0_29, %c0_30] : memref<2x128x16x16xf32, #tpu.memory_space<vmem>>, vector<2x1x16x16xf32>
    %44 = vector.shape_cast %43 : vector<2x1x16x16xf32> to vector<2x16x16xf32>
    %c7_31 = arith.constant 7 : index
    %45 = memref.load %arg3[%c7_31] : memref<128xf32, #tpu.memory_space<smem>>
    %46 = vector.broadcast %45 : f32 to vector<2x16x16xf32>
    %47 = arith.mulf %44, %46 : vector<2x16x16xf32>
    %48 = arith.addf %42, %47 : vector<2x16x16xf32>
    %c0_32 = arith.constant 0 : index
    %c8 = arith.constant 8 : index
    %c0_33 = arith.constant 0 : index
    %c0_34 = arith.constant 0 : index
    %49 = vector.load %arg2[%c0_32, %c8, %c0_33, %c0_34] : memref<2x128x16x16xf32, #tpu.memory_space<vmem>>, vector<2x1x16x16xf32>
    %50 = vector.shape_cast %49 : vector<2x1x16x16xf32> to vector<2x16x16xf32>
    %c8_35 = arith.constant 8 : index
    %51 = memref.load %arg3[%c8_35] : memref<128xf32, #tpu.memory_space<smem>>
    %52 = vector.broadcast %51 : f32 to vector<2x16x16xf32>
    %53 = arith.mulf %50, %52 : vector<2x16x16xf32>
    %54 = arith.addf %48, %53 : vector<2x16x16xf32>
    %c0_36 = arith.constant 0 : index
    %c9 = arith.constant 9 : index
    %c0_37 = arith.constant 0 : index
    %c0_38 = arith.constant 0 : index
    %55 = vector.load %arg2[%c0_36, %c9, %c0_37, %c0_38] : memref<2x128x16x16xf32, #tpu.memory_space<vmem>>, vector<2x1x16x16xf32>
    %56 = vector.shape_cast %55 : vector<2x1x16x16xf32> to vector<2x16x16xf32>
    %c9_39 = arith.constant 9 : index
    %57 = memref.load %arg3[%c9_39] : memref<128xf32, #tpu.memory_space<smem>>
    %58 = vector.broadcast %57 : f32 to vector<2x16x16xf32>
    %59 = arith.mulf %56, %58 : vector<2x16x16xf32>
    %60 = arith.addf %54, %59 : vector<2x16x16xf32>
    %c0_40 = arith.constant 0 : index
    %c10 = arith.constant 10 : index
    %c0_41 = arith.constant 0 : index
    %c0_42 = arith.constant 0 : index
    %61 = vector.load %arg2[%c0_40, %c10, %c0_41, %c0_42] : memref<2x128x16x16xf32, #tpu.memory_space<vmem>>, vector<2x1x16x16xf32>
    %62 = vector.shape_cast %61 : vector<2x1x16x16xf32> to vector<2x16x16xf32>
    %c10_43 = arith.constant 10 : index
    %63 = memref.load %arg3[%c10_43] : memref<128xf32, #tpu.memory_space<smem>>
    %64 = vector.broadcast %63 : f32 to vector<2x16x16xf32>
    %65 = arith.mulf %62, %64 : vector<2x16x16xf32>
    %66 = arith.addf %60, %65 : vector<2x16x16xf32>
    %c0_44 = arith.constant 0 : index
    %c11 = arith.constant 11 : index
    %c0_45 = arith.constant 0 : index
    %c0_46 = arith.constant 0 : index
    %67 = vector.load %arg2[%c0_44, %c11, %c0_45, %c0_46] : memref<2x128x16x16xf32, #tpu.memory_space<vmem>>, vector<2x1x16x16xf32>
    %68 = vector.shape_cast %67 : vector<2x1x16x16xf32> to vector<2x16x16xf32>
    %c11_47 = arith.constant 11 : index
    %69 = memref.load %arg3[%c11_47] : memref<128xf32, #tpu.memory_space<smem>>
    %70 = vector.broadcast %69 : f32 to vector<2x16x16xf32>
    %71 = arith.mulf %68, %70 : vector<2x16x16xf32>
    %72 = arith.addf %66, %71 : vector<2x16x16xf32>
    %c0_48 = arith.constant 0 : index
    %c12 = arith.constant 12 : index
    %c0_49 = arith.constant 0 : index
    %c0_50 = arith.constant 0 : index
    %73 = vector.load %arg2[%c0_48, %c12, %c0_49, %c0_50] : memref<2x128x16x16xf32, #tpu.memory_space<vmem>>, vector<2x1x16x16xf32>
    %74 = vector.shape_cast %73 : vector<2x1x16x16xf32> to vector<2x16x16xf32>
    %c12_51 = arith.constant 12 : index
    %75 = memref.load %arg3[%c12_51] : memref<128xf32, #tpu.memory_space<smem>>
    %76 = vector.broadcast %75 : f32 to vector<2x16x16xf32>
    %77 = arith.mulf %74, %76 : vector<2x16x16xf32>
    %78 = arith.addf %72, %77 : vector<2x16x16xf32>
    %c0_52 = arith.constant 0 : index
    %c13 = arith.constant 13 : index
    %c0_53 = arith.constant 0 : index
    %c0_54 = arith.constant 0 : index
    %79 = vector.load %arg2[%c0_52, %c13, %c0_53, %c0_54] : memref<2x128x16x16xf32, #tpu.memory_space<vmem>>, vector<2x1x16x16xf32>
    %80 = vector.shape_cast %79 : vector<2x1x16x16xf32> to vector<2x16x16xf32>
    %c13_55 = arith.constant 13 : index
    %81 = memref.load %arg3[%c13_55] : memref<128xf32, #tpu.memory_space<smem>>
    %82 = vector.broadcast %81 : f32 to vector<2x16x16xf32>
    %83 = arith.mulf %80, %82 : vector<2x16x16xf32>
    %84 = arith.addf %78, %83 : vector<2x16x16xf32>
    %c0_56 = arith.constant 0 : index
    %c14 = arith.constant 14 : index
    %c0_57 = arith.constant 0 : index
    %c0_58 = arith.constant 0 : index
    %85 = vector.load %arg2[%c0_56, %c14, %c0_57, %c0_58] : memref<2x128x16x16xf32, #tpu.memory_space<vmem>>, vector<2x1x16x16xf32>
    %86 = vector.shape_cast %85 : vector<2x1x16x16xf32> to vector<2x16x16xf32>
    %c14_59 = arith.constant 14 : index
    %87 = memref.load %arg3[%c14_59] : memref<128xf32, #tpu.memory_space<smem>>
    %88 = vector.broadcast %87 : f32 to vector<2x16x16xf32>
    %89 = arith.mulf %86, %88 : vector<2x16x16xf32>
    %90 = arith.addf %84, %89 : vector<2x16x16xf32>
    %c0_60 = arith.constant 0 : index
    %c15 = arith.constant 15 : index
    %c0_61 = arith.constant 0 : index
    %c0_62 = arith.constant 0 : index
    %91 = vector.load %arg2[%c0_60, %c15, %c0_61, %c0_62] : memref<2x128x16x16xf32, #tpu.memory_space<vmem>>, vector<2x1x16x16xf32>
    %92 = vector.shape_cast %91 : vector<2x1x16x16xf32> to vector<2x16x16xf32>
    %c15_63 = arith.constant 15 : index
    %93 = memref.load %arg3[%c15_63] : memref<128xf32, #tpu.memory_space<smem>>
    %94 = vector.broadcast %93 : f32 to vector<2x16x16xf32>
    %95 = arith.mulf %92, %94 : vector<2x16x16xf32>
    %96 = arith.addf %90, %95 : vector<2x16x16xf32>
    %c0_64 = arith.constant 0 : index
    %c16 = arith.constant 16 : index
    %c0_65 = arith.constant 0 : index
    %c0_66 = arith.constant 0 : index
    %97 = vector.load %arg2[%c0_64, %c16, %c0_65, %c0_66] : memref<2x128x16x16xf32, #tpu.memory_space<vmem>>, vector<2x1x16x16xf32>
    %98 = vector.shape_cast %97 : vector<2x1x16x16xf32> to vector<2x16x16xf32>
    %c16_67 = arith.constant 16 : index
    %99 = memref.load %arg3[%c16_67] : memref<128xf32, #tpu.memory_space<smem>>
    %100 = vector.broadcast %99 : f32 to vector<2x16x16xf32>
    %101 = arith.mulf %98, %100 : vector<2x16x16xf32>
    %102 = arith.addf %96, %101 : vector<2x16x16xf32>
    %c0_68 = arith.constant 0 : index
    %c17 = arith.constant 17 : index
    %c0_69 = arith.constant 0 : index
    %c0_70 = arith.constant 0 : index
    %103 = vector.load %arg2[%c0_68, %c17, %c0_69, %c0_70] : memref<2x128x16x16xf32, #tpu.memory_space<vmem>>, vector<2x1x16x16xf32>
    %104 = vector.shape_cast %103 : vector<2x1x16x16xf32> to vector<2x16x16xf32>
    %c17_71 = arith.constant 17 : index
    %105 = memref.load %arg3[%c17_71] : memref<128xf32, #tpu.memory_space<smem>>
    %106 = vector.broadcast %105 : f32 to vector<2x16x16xf32>
    %107 = arith.mulf %104, %106 : vector<2x16x16xf32>
    %108 = arith.addf %102, %107 : vector<2x16x16xf32>
    %c0_72 = arith.constant 0 : index
    %c18 = arith.constant 18 : index
    %c0_73 = arith.constant 0 : index
    %c0_74 = arith.constant 0 : index
    %109 = vector.load %arg2[%c0_72, %c18, %c0_73, %c0_74] : memref<2x128x16x16xf32, #tpu.memory_space<vmem>>, vector<2x1x16x16xf32>
    %110 = vector.shape_cast %109 : vector<2x1x16x16xf32> to vector<2x16x16xf32>
    %c18_75 = arith.constant 18 : index
    %111 = memref.load %arg3[%c18_75] : memref<128xf32, #tpu.memory_space<smem>>
    %112 = vector.broadcast %111 : f32 to vector<2x16x16xf32>
    %113 = arith.mulf %110, %112 : vector<2x16x16xf32>
    %114 = arith.addf %108, %113 : vector<2x16x16xf32>
    %c0_76 = arith.constant 0 : index
    %c19 = arith.constant 19 : index
    %c0_77 = arith.constant 0 : index
    %c0_78 = arith.constant 0 : index
    %115 = vector.load %arg2[%c0_76, %c19, %c0_77, %c0_78] : memref<2x128x16x16xf32, #tpu.memory_space<vmem>>, vector<2x1x16x16xf32>
    %116 = vector.shape_cast %115 : vector<2x1x16x16xf32> to vector<2x16x16xf32>
    %c19_79 = arith.constant 19 : index
    %117 = memref.load %arg3[%c19_79] : memref<128xf32, #tpu.memory_space<smem>>
    %118 = vector.broadcast %117 : f32 to vector<2x16x16xf32>
    %119 = arith.mulf %116, %118 : vector<2x16x16xf32>
    %120 = arith.addf %114, %119 : vector<2x16x16xf32>
    %c0_80 = arith.constant 0 : index
    %c20 = arith.constant 20 : index
    %c0_81 = arith.constant 0 : index
    %c0_82 = arith.constant 0 : index
    %121 = vector.load %arg2[%c0_80, %c20, %c0_81, %c0_82] : memref<2x128x16x16xf32, #tpu.memory_space<vmem>>, vector<2x1x16x16xf32>
    %122 = vector.shape_cast %121 : vector<2x1x16x16xf32> to vector<2x16x16xf32>
    %c20_83 = arith.constant 20 : index
    %123 = memref.load %arg3[%c20_83] : memref<128xf32, #tpu.memory_space<smem>>
    %124 = vector.broadcast %123 : f32 to vector<2x16x16xf32>
    %125 = arith.mulf %122, %124 : vector<2x16x16xf32>
    %126 = arith.addf %120, %125 : vector<2x16x16xf32>
    %c0_84 = arith.constant 0 : index
    %c21 = arith.constant 21 : index
    %c0_85 = arith.constant 0 : index
    %c0_86 = arith.constant 0 : index
    %127 = vector.load %arg2[%c0_84, %c21, %c0_85, %c0_86] : memref<2x128x16x16xf32, #tpu.memory_space<vmem>>, vector<2x1x16x16xf32>
    %128 = vector.shape_cast %127 : vector<2x1x16x16xf32> to vector<2x16x16xf32>
    %c21_87 = arith.constant 21 : index
    %129 = memref.load %arg3[%c21_87] : memref<128xf32, #tpu.memory_space<smem>>
    %130 = vector.broadcast %129 : f32 to vector<2x16x16xf32>
    %131 = arith.mulf %128, %130 : vector<2x16x16xf32>
    %132 = arith.addf %126, %131 : vector<2x16x16xf32>
    %c0_88 = arith.constant 0 : index
    %c22 = arith.constant 22 : index
    %c0_89 = arith.constant 0 : index
    %c0_90 = arith.constant 0 : index
    %133 = vector.load %arg2[%c0_88, %c22, %c0_89, %c0_90] : memref<2x128x16x16xf32, #tpu.memory_space<vmem>>, vector<2x1x16x16xf32>
    %134 = vector.shape_cast %133 : vector<2x1x16x16xf32> to vector<2x16x16xf32>
    %c22_91 = arith.constant 22 : index
    %135 = memref.load %arg3[%c22_91] : memref<128xf32, #tpu.memory_space<smem>>
    %136 = vector.broadcast %135 : f32 to vector<2x16x16xf32>
    %137 = arith.mulf %134, %136 : vector<2x16x16xf32>
    %138 = arith.addf %132, %137 : vector<2x16x16xf32>
    %c0_92 = arith.constant 0 : index
    %c23 = arith.constant 23 : index
    %c0_93 = arith.constant 0 : index
    %c0_94 = arith.constant 0 : index
    %139 = vector.load %arg2[%c0_92, %c23, %c0_93, %c0_94] : memref<2x128x16x16xf32, #tpu.memory_space<vmem>>, vector<2x1x16x16xf32>
    %140 = vector.shape_cast %139 : vector<2x1x16x16xf32> to vector<2x16x16xf32>
    %c23_95 = arith.constant 23 : index
    %141 = memref.load %arg3[%c23_95] : memref<128xf32, #tpu.memory_space<smem>>
    %142 = vector.broadcast %141 : f32 to vector<2x16x16xf32>
    %143 = arith.mulf %140, %142 : vector<2x16x16xf32>
    %144 = arith.addf %138, %143 : vector<2x16x16xf32>
    %c0_96 = arith.constant 0 : index
    %c24 = arith.constant 24 : index
    %c0_97 = arith.constant 0 : index
    %c0_98 = arith.constant 0 : index
    %145 = vector.load %arg2[%c0_96, %c24, %c0_97, %c0_98] : memref<2x128x16x16xf32, #tpu.memory_space<vmem>>, vector<2x1x16x16xf32>
    %146 = vector.shape_cast %145 : vector<2x1x16x16xf32> to vector<2x16x16xf32>
    %c24_99 = arith.constant 24 : index
    %147 = memref.load %arg3[%c24_99] : memref<128xf32, #tpu.memory_space<smem>>
    %148 = vector.broadcast %147 : f32 to vector<2x16x16xf32>
    %149 = arith.mulf %146, %148 : vector<2x16x16xf32>
    %150 = arith.addf %144, %149 : vector<2x16x16xf32>
    %c0_100 = arith.constant 0 : index
    %c25 = arith.constant 25 : index
    %c0_101 = arith.constant 0 : index
    %c0_102 = arith.constant 0 : index
    %151 = vector.load %arg2[%c0_100, %c25, %c0_101, %c0_102] : memref<2x128x16x16xf32, #tpu.memory_space<vmem>>, vector<2x1x16x16xf32>
    %152 = vector.shape_cast %151 : vector<2x1x16x16xf32> to vector<2x16x16xf32>
    %c25_103 = arith.constant 25 : index
    %153 = memref.load %arg3[%c25_103] : memref<128xf32, #tpu.memory_space<smem>>
    %154 = vector.broadcast %153 : f32 to vector<2x16x16xf32>
    %155 = arith.mulf %152, %154 : vector<2x16x16xf32>
    %156 = arith.addf %150, %155 : vector<2x16x16xf32>
    %c0_104 = arith.constant 0 : index
    %c26 = arith.constant 26 : index
    %c0_105 = arith.constant 0 : index
    %c0_106 = arith.constant 0 : index
    %157 = vector.load %arg2[%c0_104, %c26, %c0_105, %c0_106] : memref<2x128x16x16xf32, #tpu.memory_space<vmem>>, vector<2x1x16x16xf32>
    %158 = vector.shape_cast %157 : vector<2x1x16x16xf32> to vector<2x16x16xf32>
    %c26_107 = arith.constant 26 : index
    %159 = memref.load %arg3[%c26_107] : memref<128xf32, #tpu.memory_space<smem>>
    %160 = vector.broadcast %159 : f32 to vector<2x16x16xf32>
    %161 = arith.mulf %158, %160 : vector<2x16x16xf32>
    %162 = arith.addf %156, %161 : vector<2x16x16xf32>
    %c0_108 = arith.constant 0 : index
    %c27 = arith.constant 27 : index
    %c0_109 = arith.constant 0 : index
    %c0_110 = arith.constant 0 : index
    %163 = vector.load %arg2[%c0_108, %c27, %c0_109, %c0_110] : memref<2x128x16x16xf32, #tpu.memory_space<vmem>>, vector<2x1x16x16xf32>
    %164 = vector.shape_cast %163 : vector<2x1x16x16xf32> to vector<2x16x16xf32>
    %c27_111 = arith.constant 27 : index
    %165 = memref.load %arg3[%c27_111] : memref<128xf32, #tpu.memory_space<smem>>
    %166 = vector.broadcast %165 : f32 to vector<2x16x16xf32>
    %167 = arith.mulf %164, %166 : vector<2x16x16xf32>
    %168 = arith.addf %162, %167 : vector<2x16x16xf32>
    %c0_112 = arith.constant 0 : index
    %c28 = arith.constant 28 : index
    %c0_113 = arith.constant 0 : index
    %c0_114 = arith.constant 0 : index
    %169 = vector.load %arg2[%c0_112, %c28, %c0_113, %c0_114] : memref<2x128x16x16xf32, #tpu.memory_space<vmem>>, vector<2x1x16x16xf32>
    %170 = vector.shape_cast %169 : vector<2x1x16x16xf32> to vector<2x16x16xf32>
    %c28_115 = arith.constant 28 : index
    %171 = memref.load %arg3[%c28_115] : memref<128xf32, #tpu.memory_space<smem>>
    %172 = vector.broadcast %171 : f32 to vector<2x16x16xf32>
    %173 = arith.mulf %170, %172 : vector<2x16x16xf32>
    %174 = arith.addf %168, %173 : vector<2x16x16xf32>
    %c0_116 = arith.constant 0 : index
    %c29 = arith.constant 29 : index
    %c0_117 = arith.constant 0 : index
    %c0_118 = arith.constant 0 : index
    %175 = vector.load %arg2[%c0_116, %c29, %c0_117, %c0_118] : memref<2x128x16x16xf32, #tpu.memory_space<vmem>>, vector<2x1x16x16xf32>
    %176 = vector.shape_cast %175 : vector<2x1x16x16xf32> to vector<2x16x16xf32>
    %c29_119 = arith.constant 29 : index
    %177 = memref.load %arg3[%c29_119] : memref<128xf32, #tpu.memory_space<smem>>
    %178 = vector.broadcast %177 : f32 to vector<2x16x16xf32>
    %179 = arith.mulf %176, %178 : vector<2x16x16xf32>
    %180 = arith.addf %174, %179 : vector<2x16x16xf32>
    %c0_120 = arith.constant 0 : index
    %c30 = arith.constant 30 : index
    %c0_121 = arith.constant 0 : index
    %c0_122 = arith.constant 0 : index
    %181 = vector.load %arg2[%c0_120, %c30, %c0_121, %c0_122] : memref<2x128x16x16xf32, #tpu.memory_space<vmem>>, vector<2x1x16x16xf32>
    %182 = vector.shape_cast %181 : vector<2x1x16x16xf32> to vector<2x16x16xf32>
    %c30_123 = arith.constant 30 : index
    %183 = memref.load %arg3[%c30_123] : memref<128xf32, #tpu.memory_space<smem>>
    %184 = vector.broadcast %183 : f32 to vector<2x16x16xf32>
    %185 = arith.mulf %182, %184 : vector<2x16x16xf32>
    %186 = arith.addf %180, %185 : vector<2x16x16xf32>
    %c0_124 = arith.constant 0 : index
    %c31 = arith.constant 31 : index
    %c0_125 = arith.constant 0 : index
    %c0_126 = arith.constant 0 : index
    %187 = vector.load %arg2[%c0_124, %c31, %c0_125, %c0_126] : memref<2x128x16x16xf32, #tpu.memory_space<vmem>>, vector<2x1x16x16xf32>
    %188 = vector.shape_cast %187 : vector<2x1x16x16xf32> to vector<2x16x16xf32>
    %c31_127 = arith.constant 31 : index
    %189 = memref.load %arg3[%c31_127] : memref<128xf32, #tpu.memory_space<smem>>
    %190 = vector.broadcast %189 : f32 to vector<2x16x16xf32>
    %191 = arith.mulf %188, %190 : vector<2x16x16xf32>
    %192 = arith.addf %186, %191 : vector<2x16x16xf32>
    %c0_128 = arith.constant 0 : index
    %c32 = arith.constant 32 : index
    %c0_129 = arith.constant 0 : index
    %c0_130 = arith.constant 0 : index
    %193 = vector.load %arg2[%c0_128, %c32, %c0_129, %c0_130] : memref<2x128x16x16xf32, #tpu.memory_space<vmem>>, vector<2x1x16x16xf32>
    %194 = vector.shape_cast %193 : vector<2x1x16x16xf32> to vector<2x16x16xf32>
    %c32_131 = arith.constant 32 : index
    %195 = memref.load %arg3[%c32_131] : memref<128xf32, #tpu.memory_space<smem>>
    %196 = vector.broadcast %195 : f32 to vector<2x16x16xf32>
    %197 = arith.mulf %194, %196 : vector<2x16x16xf32>
    %198 = arith.addf %192, %197 : vector<2x16x16xf32>
    %c0_132 = arith.constant 0 : index
    %c33 = arith.constant 33 : index
    %c0_133 = arith.constant 0 : index
    %c0_134 = arith.constant 0 : index
    %199 = vector.load %arg2[%c0_132, %c33, %c0_133, %c0_134] : memref<2x128x16x16xf32, #tpu.memory_space<vmem>>, vector<2x1x16x16xf32>
    %200 = vector.shape_cast %199 : vector<2x1x16x16xf32> to vector<2x16x16xf32>
    %c33_135 = arith.constant 33 : index
    %201 = memref.load %arg3[%c33_135] : memref<128xf32, #tpu.memory_space<smem>>
    %202 = vector.broadcast %201 : f32 to vector<2x16x16xf32>
    %203 = arith.mulf %200, %202 : vector<2x16x16xf32>
    %204 = arith.addf %198, %203 : vector<2x16x16xf32>
    %c0_136 = arith.constant 0 : index
    %c34 = arith.constant 34 : index
    %c0_137 = arith.constant 0 : index
    %c0_138 = arith.constant 0 : index
    %205 = vector.load %arg2[%c0_136, %c34, %c0_137, %c0_138] : memref<2x128x16x16xf32, #tpu.memory_space<vmem>>, vector<2x1x16x16xf32>
    %206 = vector.shape_cast %205 : vector<2x1x16x16xf32> to vector<2x16x16xf32>
    %c34_139 = arith.constant 34 : index
    %207 = memref.load %arg3[%c34_139] : memref<128xf32, #tpu.memory_space<smem>>
    %208 = vector.broadcast %207 : f32 to vector<2x16x16xf32>
    %209 = arith.mulf %206, %208 : vector<2x16x16xf32>
    %210 = arith.addf %204, %209 : vector<2x16x16xf32>
    %c0_140 = arith.constant 0 : index
    %c35 = arith.constant 35 : index
    %c0_141 = arith.constant 0 : index
    %c0_142 = arith.constant 0 : index
    %211 = vector.load %arg2[%c0_140, %c35, %c0_141, %c0_142] : memref<2x128x16x16xf32, #tpu.memory_space<vmem>>, vector<2x1x16x16xf32>
    %212 = vector.shape_cast %211 : vector<2x1x16x16xf32> to vector<2x16x16xf32>
    %c35_143 = arith.constant 35 : index
    %213 = memref.load %arg3[%c35_143] : memref<128xf32, #tpu.memory_space<smem>>
    %214 = vector.broadcast %213 : f32 to vector<2x16x16xf32>
    %215 = arith.mulf %212, %214 : vector<2x16x16xf32>
    %216 = arith.addf %210, %215 : vector<2x16x16xf32>
    %c0_144 = arith.constant 0 : index
    %c36 = arith.constant 36 : index
    %c0_145 = arith.constant 0 : index
    %c0_146 = arith.constant 0 : index
    %217 = vector.load %arg2[%c0_144, %c36, %c0_145, %c0_146] : memref<2x128x16x16xf32, #tpu.memory_space<vmem>>, vector<2x1x16x16xf32>
    %218 = vector.shape_cast %217 : vector<2x1x16x16xf32> to vector<2x16x16xf32>
    %c36_147 = arith.constant 36 : index
    %219 = memref.load %arg3[%c36_147] : memref<128xf32, #tpu.memory_space<smem>>
    %220 = vector.broadcast %219 : f32 to vector<2x16x16xf32>
    %221 = arith.mulf %218, %220 : vector<2x16x16xf32>
    %222 = arith.addf %216, %221 : vector<2x16x16xf32>
    %c0_148 = arith.constant 0 : index
    %c37 = arith.constant 37 : index
    %c0_149 = arith.constant 0 : index
    %c0_150 = arith.constant 0 : index
    %223 = vector.load %arg2[%c0_148, %c37, %c0_149, %c0_150] : memref<2x128x16x16xf32, #tpu.memory_space<vmem>>, vector<2x1x16x16xf32>
    %224 = vector.shape_cast %223 : vector<2x1x16x16xf32> to vector<2x16x16xf32>
    %c37_151 = arith.constant 37 : index
    %225 = memref.load %arg3[%c37_151] : memref<128xf32, #tpu.memory_space<smem>>
    %226 = vector.broadcast %225 : f32 to vector<2x16x16xf32>
    %227 = arith.mulf %224, %226 : vector<2x16x16xf32>
    %228 = arith.addf %222, %227 : vector<2x16x16xf32>
    %c0_152 = arith.constant 0 : index
    %c38 = arith.constant 38 : index
    %c0_153 = arith.constant 0 : index
    %c0_154 = arith.constant 0 : index
    %229 = vector.load %arg2[%c0_152, %c38, %c0_153, %c0_154] : memref<2x128x16x16xf32, #tpu.memory_space<vmem>>, vector<2x1x16x16xf32>
    %230 = vector.shape_cast %229 : vector<2x1x16x16xf32> to vector<2x16x16xf32>
    %c38_155 = arith.constant 38 : index
    %231 = memref.load %arg3[%c38_155] : memref<128xf32, #tpu.memory_space<smem>>
    %232 = vector.broadcast %231 : f32 to vector<2x16x16xf32>
    %233 = arith.mulf %230, %232 : vector<2x16x16xf32>
    %234 = arith.addf %228, %233 : vector<2x16x16xf32>
    %c0_156 = arith.constant 0 : index
    %c39 = arith.constant 39 : index
    %c0_157 = arith.constant 0 : index
    %c0_158 = arith.constant 0 : index
    %235 = vector.load %arg2[%c0_156, %c39, %c0_157, %c0_158] : memref<2x128x16x16xf32, #tpu.memory_space<vmem>>, vector<2x1x16x16xf32>
    %236 = vector.shape_cast %235 : vector<2x1x16x16xf32> to vector<2x16x16xf32>
    %c39_159 = arith.constant 39 : index
    %237 = memref.load %arg3[%c39_159] : memref<128xf32, #tpu.memory_space<smem>>
    %238 = vector.broadcast %237 : f32 to vector<2x16x16xf32>
    %239 = arith.mulf %236, %238 : vector<2x16x16xf32>
    %240 = arith.addf %234, %239 : vector<2x16x16xf32>
    %c0_160 = arith.constant 0 : index
    %c40 = arith.constant 40 : index
    %c0_161 = arith.constant 0 : index
    %c0_162 = arith.constant 0 : index
    %241 = vector.load %arg2[%c0_160, %c40, %c0_161, %c0_162] : memref<2x128x16x16xf32, #tpu.memory_space<vmem>>, vector<2x1x16x16xf32>
    %242 = vector.shape_cast %241 : vector<2x1x16x16xf32> to vector<2x16x16xf32>
    %c40_163 = arith.constant 40 : index
    %243 = memref.load %arg3[%c40_163] : memref<128xf32, #tpu.memory_space<smem>>
    %244 = vector.broadcast %243 : f32 to vector<2x16x16xf32>
    %245 = arith.mulf %242, %244 : vector<2x16x16xf32>
    %246 = arith.addf %240, %245 : vector<2x16x16xf32>
    %c0_164 = arith.constant 0 : index
    %c41 = arith.constant 41 : index
    %c0_165 = arith.constant 0 : index
    %c0_166 = arith.constant 0 : index
    %247 = vector.load %arg2[%c0_164, %c41, %c0_165, %c0_166] : memref<2x128x16x16xf32, #tpu.memory_space<vmem>>, vector<2x1x16x16xf32>
    %248 = vector.shape_cast %247 : vector<2x1x16x16xf32> to vector<2x16x16xf32>
    %c41_167 = arith.constant 41 : index
    %249 = memref.load %arg3[%c41_167] : memref<128xf32, #tpu.memory_space<smem>>
    %250 = vector.broadcast %249 : f32 to vector<2x16x16xf32>
    %251 = arith.mulf %248, %250 : vector<2x16x16xf32>
    %252 = arith.addf %246, %251 : vector<2x16x16xf32>
    %c0_168 = arith.constant 0 : index
    %c42 = arith.constant 42 : index
    %c0_169 = arith.constant 0 : index
    %c0_170 = arith.constant 0 : index
    %253 = vector.load %arg2[%c0_168, %c42, %c0_169, %c0_170] : memref<2x128x16x16xf32, #tpu.memory_space<vmem>>, vector<2x1x16x16xf32>
    %254 = vector.shape_cast %253 : vector<2x1x16x16xf32> to vector<2x16x16xf32>
    %c42_171 = arith.constant 42 : index
    %255 = memref.load %arg3[%c42_171] : memref<128xf32, #tpu.memory_space<smem>>
    %256 = vector.broadcast %255 : f32 to vector<2x16x16xf32>
    %257 = arith.mulf %254, %256 : vector<2x16x16xf32>
    %258 = arith.addf %252, %257 : vector<2x16x16xf32>
    %c0_172 = arith.constant 0 : index
    %c43 = arith.constant 43 : index
    %c0_173 = arith.constant 0 : index
    %c0_174 = arith.constant 0 : index
    %259 = vector.load %arg2[%c0_172, %c43, %c0_173, %c0_174] : memref<2x128x16x16xf32, #tpu.memory_space<vmem>>, vector<2x1x16x16xf32>
    %260 = vector.shape_cast %259 : vector<2x1x16x16xf32> to vector<2x16x16xf32>
    %c43_175 = arith.constant 43 : index
    %261 = memref.load %arg3[%c43_175] : memref<128xf32, #tpu.memory_space<smem>>
    %262 = vector.broadcast %261 : f32 to vector<2x16x16xf32>
    %263 = arith.mulf %260, %262 : vector<2x16x16xf32>
    %264 = arith.addf %258, %263 : vector<2x16x16xf32>
    %c0_176 = arith.constant 0 : index
    %c44 = arith.constant 44 : index
    %c0_177 = arith.constant 0 : index
    %c0_178 = arith.constant 0 : index
    %265 = vector.load %arg2[%c0_176, %c44, %c0_177, %c0_178] : memref<2x128x16x16xf32, #tpu.memory_space<vmem>>, vector<2x1x16x16xf32>
    %266 = vector.shape_cast %265 : vector<2x1x16x16xf32> to vector<2x16x16xf32>
    %c44_179 = arith.constant 44 : index
    %267 = memref.load %arg3[%c44_179] : memref<128xf32, #tpu.memory_space<smem>>
    %268 = vector.broadcast %267 : f32 to vector<2x16x16xf32>
    %269 = arith.mulf %266, %268 : vector<2x16x16xf32>
    %270 = arith.addf %264, %269 : vector<2x16x16xf32>
    %c0_180 = arith.constant 0 : index
    %c45 = arith.constant 45 : index
    %c0_181 = arith.constant 0 : index
    %c0_182 = arith.constant 0 : index
    %271 = vector.load %arg2[%c0_180, %c45, %c0_181, %c0_182] : memref<2x128x16x16xf32, #tpu.memory_space<vmem>>, vector<2x1x16x16xf32>
    %272 = vector.shape_cast %271 : vector<2x1x16x16xf32> to vector<2x16x16xf32>
    %c45_183 = arith.constant 45 : index
    %273 = memref.load %arg3[%c45_183] : memref<128xf32, #tpu.memory_space<smem>>
    %274 = vector.broadcast %273 : f32 to vector<2x16x16xf32>
    %275 = arith.mulf %272, %274 : vector<2x16x16xf32>
    %276 = arith.addf %270, %275 : vector<2x16x16xf32>
    %c0_184 = arith.constant 0 : index
    %c46 = arith.constant 46 : index
    %c0_185 = arith.constant 0 : index
    %c0_186 = arith.constant 0 : index
    %277 = vector.load %arg2[%c0_184, %c46, %c0_185, %c0_186] : memref<2x128x16x16xf32, #tpu.memory_space<vmem>>, vector<2x1x16x16xf32>
    %278 = vector.shape_cast %277 : vector<2x1x16x16xf32> to vector<2x16x16xf32>
    %c46_187 = arith.constant 46 : index
    %279 = memref.load %arg3[%c46_187] : memref<128xf32, #tpu.memory_space<smem>>
    %280 = vector.broadcast %279 : f32 to vector<2x16x16xf32>
    %281 = arith.mulf %278, %280 : vector<2x16x16xf32>
    %282 = arith.addf %276, %281 : vector<2x16x16xf32>
    %c0_188 = arith.constant 0 : index
    %c47 = arith.constant 47 : index
    %c0_189 = arith.constant 0 : index
    %c0_190 = arith.constant 0 : index
    %283 = vector.load %arg2[%c0_188, %c47, %c0_189, %c0_190] : memref<2x128x16x16xf32, #tpu.memory_space<vmem>>, vector<2x1x16x16xf32>
    %284 = vector.shape_cast %283 : vector<2x1x16x16xf32> to vector<2x16x16xf32>
    %c47_191 = arith.constant 47 : index
    %285 = memref.load %arg3[%c47_191] : memref<128xf32, #tpu.memory_space<smem>>
    %286 = vector.broadcast %285 : f32 to vector<2x16x16xf32>
    %287 = arith.mulf %284, %286 : vector<2x16x16xf32>
    %288 = arith.addf %282, %287 : vector<2x16x16xf32>
    %c0_192 = arith.constant 0 : index
    %c48 = arith.constant 48 : index
    %c0_193 = arith.constant 0 : index
    %c0_194 = arith.constant 0 : index
    %289 = vector.load %arg2[%c0_192, %c48, %c0_193, %c0_194] : memref<2x128x16x16xf32, #tpu.memory_space<vmem>>, vector<2x1x16x16xf32>
    %290 = vector.shape_cast %289 : vector<2x1x16x16xf32> to vector<2x16x16xf32>
    %c48_195 = arith.constant 48 : index
    %291 = memref.load %arg3[%c48_195] : memref<128xf32, #tpu.memory_space<smem>>
    %292 = vector.broadcast %291 : f32 to vector<2x16x16xf32>
    %293 = arith.mulf %290, %292 : vector<2x16x16xf32>
    %294 = arith.addf %288, %293 : vector<2x16x16xf32>
    %c0_196 = arith.constant 0 : index
    %c49 = arith.constant 49 : index
    %c0_197 = arith.constant 0 : index
    %c0_198 = arith.constant 0 : index
    %295 = vector.load %arg2[%c0_196, %c49, %c0_197, %c0_198] : memref<2x128x16x16xf32, #tpu.memory_space<vmem>>, vector<2x1x16x16xf32>
    %296 = vector.shape_cast %295 : vector<2x1x16x16xf32> to vector<2x16x16xf32>
    %c49_199 = arith.constant 49 : index
    %297 = memref.load %arg3[%c49_199] : memref<128xf32, #tpu.memory_space<smem>>
    %298 = vector.broadcast %297 : f32 to vector<2x16x16xf32>
    %299 = arith.mulf %296, %298 : vector<2x16x16xf32>
    %300 = arith.addf %294, %299 : vector<2x16x16xf32>
    %c0_200 = arith.constant 0 : index
    %c50 = arith.constant 50 : index
    %c0_201 = arith.constant 0 : index
    %c0_202 = arith.constant 0 : index
    %301 = vector.load %arg2[%c0_200, %c50, %c0_201, %c0_202] : memref<2x128x16x16xf32, #tpu.memory_space<vmem>>, vector<2x1x16x16xf32>
    %302 = vector.shape_cast %301 : vector<2x1x16x16xf32> to vector<2x16x16xf32>
    %c50_203 = arith.constant 50 : index
    %303 = memref.load %arg3[%c50_203] : memref<128xf32, #tpu.memory_space<smem>>
    %304 = vector.broadcast %303 : f32 to vector<2x16x16xf32>
    %305 = arith.mulf %302, %304 : vector<2x16x16xf32>
    %306 = arith.addf %300, %305 : vector<2x16x16xf32>
    %c0_204 = arith.constant 0 : index
    %c51 = arith.constant 51 : index
    %c0_205 = arith.constant 0 : index
    %c0_206 = arith.constant 0 : index
    %307 = vector.load %arg2[%c0_204, %c51, %c0_205, %c0_206] : memref<2x128x16x16xf32, #tpu.memory_space<vmem>>, vector<2x1x16x16xf32>
    %308 = vector.shape_cast %307 : vector<2x1x16x16xf32> to vector<2x16x16xf32>
    %c51_207 = arith.constant 51 : index
    %309 = memref.load %arg3[%c51_207] : memref<128xf32, #tpu.memory_space<smem>>
    %310 = vector.broadcast %309 : f32 to vector<2x16x16xf32>
    %311 = arith.mulf %308, %310 : vector<2x16x16xf32>
    %312 = arith.addf %306, %311 : vector<2x16x16xf32>
    %c0_208 = arith.constant 0 : index
    %c52 = arith.constant 52 : index
    %c0_209 = arith.constant 0 : index
    %c0_210 = arith.constant 0 : index
    %313 = vector.load %arg2[%c0_208, %c52, %c0_209, %c0_210] : memref<2x128x16x16xf32, #tpu.memory_space<vmem>>, vector<2x1x16x16xf32>
    %314 = vector.shape_cast %313 : vector<2x1x16x16xf32> to vector<2x16x16xf32>
    %c52_211 = arith.constant 52 : index
    %315 = memref.load %arg3[%c52_211] : memref<128xf32, #tpu.memory_space<smem>>
    %316 = vector.broadcast %315 : f32 to vector<2x16x16xf32>
    %317 = arith.mulf %314, %316 : vector<2x16x16xf32>
    %318 = arith.addf %312, %317 : vector<2x16x16xf32>
    %c0_212 = arith.constant 0 : index
    %c53 = arith.constant 53 : index
    %c0_213 = arith.constant 0 : index
    %c0_214 = arith.constant 0 : index
    %319 = vector.load %arg2[%c0_212, %c53, %c0_213, %c0_214] : memref<2x128x16x16xf32, #tpu.memory_space<vmem>>, vector<2x1x16x16xf32>
    %320 = vector.shape_cast %319 : vector<2x1x16x16xf32> to vector<2x16x16xf32>
    %c53_215 = arith.constant 53 : index
    %321 = memref.load %arg3[%c53_215] : memref<128xf32, #tpu.memory_space<smem>>
    %322 = vector.broadcast %321 : f32 to vector<2x16x16xf32>
    %323 = arith.mulf %320, %322 : vector<2x16x16xf32>
    %324 = arith.addf %318, %323 : vector<2x16x16xf32>
    %c0_216 = arith.constant 0 : index
    %c54 = arith.constant 54 : index
    %c0_217 = arith.constant 0 : index
    %c0_218 = arith.constant 0 : index
    %325 = vector.load %arg2[%c0_216, %c54, %c0_217, %c0_218] : memref<2x128x16x16xf32, #tpu.memory_space<vmem>>, vector<2x1x16x16xf32>
    %326 = vector.shape_cast %325 : vector<2x1x16x16xf32> to vector<2x16x16xf32>
    %c54_219 = arith.constant 54 : index
    %327 = memref.load %arg3[%c54_219] : memref<128xf32, #tpu.memory_space<smem>>
    %328 = vector.broadcast %327 : f32 to vector<2x16x16xf32>
    %329 = arith.mulf %326, %328 : vector<2x16x16xf32>
    %330 = arith.addf %324, %329 : vector<2x16x16xf32>
    %c0_220 = arith.constant 0 : index
    %c55 = arith.constant 55 : index
    %c0_221 = arith.constant 0 : index
    %c0_222 = arith.constant 0 : index
    %331 = vector.load %arg2[%c0_220, %c55, %c0_221, %c0_222] : memref<2x128x16x16xf32, #tpu.memory_space<vmem>>, vector<2x1x16x16xf32>
    %332 = vector.shape_cast %331 : vector<2x1x16x16xf32> to vector<2x16x16xf32>
    %c55_223 = arith.constant 55 : index
    %333 = memref.load %arg3[%c55_223] : memref<128xf32, #tpu.memory_space<smem>>
    %334 = vector.broadcast %333 : f32 to vector<2x16x16xf32>
    %335 = arith.mulf %332, %334 : vector<2x16x16xf32>
    %336 = arith.addf %330, %335 : vector<2x16x16xf32>
    %c0_224 = arith.constant 0 : index
    %c56 = arith.constant 56 : index
    %c0_225 = arith.constant 0 : index
    %c0_226 = arith.constant 0 : index
    %337 = vector.load %arg2[%c0_224, %c56, %c0_225, %c0_226] : memref<2x128x16x16xf32, #tpu.memory_space<vmem>>, vector<2x1x16x16xf32>
    %338 = vector.shape_cast %337 : vector<2x1x16x16xf32> to vector<2x16x16xf32>
    %c56_227 = arith.constant 56 : index
    %339 = memref.load %arg3[%c56_227] : memref<128xf32, #tpu.memory_space<smem>>
    %340 = vector.broadcast %339 : f32 to vector<2x16x16xf32>
    %341 = arith.mulf %338, %340 : vector<2x16x16xf32>
    %342 = arith.addf %336, %341 : vector<2x16x16xf32>
    %c0_228 = arith.constant 0 : index
    %c57 = arith.constant 57 : index
    %c0_229 = arith.constant 0 : index
    %c0_230 = arith.constant 0 : index
    %343 = vector.load %arg2[%c0_228, %c57, %c0_229, %c0_230] : memref<2x128x16x16xf32, #tpu.memory_space<vmem>>, vector<2x1x16x16xf32>
    %344 = vector.shape_cast %343 : vector<2x1x16x16xf32> to vector<2x16x16xf32>
    %c57_231 = arith.constant 57 : index
    %345 = memref.load %arg3[%c57_231] : memref<128xf32, #tpu.memory_space<smem>>
    %346 = vector.broadcast %345 : f32 to vector<2x16x16xf32>
    %347 = arith.mulf %344, %346 : vector<2x16x16xf32>
    %348 = arith.addf %342, %347 : vector<2x16x16xf32>
    %c0_232 = arith.constant 0 : index
    %c58 = arith.constant 58 : index
    %c0_233 = arith.constant 0 : index
    %c0_234 = arith.constant 0 : index
    %349 = vector.load %arg2[%c0_232, %c58, %c0_233, %c0_234] : memref<2x128x16x16xf32, #tpu.memory_space<vmem>>, vector<2x1x16x16xf32>
    %350 = vector.shape_cast %349 : vector<2x1x16x16xf32> to vector<2x16x16xf32>
    %c58_235 = arith.constant 58 : index
    %351 = memref.load %arg3[%c58_235] : memref<128xf32, #tpu.memory_space<smem>>
    %352 = vector.broadcast %351 : f32 to vector<2x16x16xf32>
    %353 = arith.mulf %350, %352 : vector<2x16x16xf32>
    %354 = arith.addf %348, %353 : vector<2x16x16xf32>
    %c0_236 = arith.constant 0 : index
    %c59 = arith.constant 59 : index
    %c0_237 = arith.constant 0 : index
    %c0_238 = arith.constant 0 : index
    %355 = vector.load %arg2[%c0_236, %c59, %c0_237, %c0_238] : memref<2x128x16x16xf32, #tpu.memory_space<vmem>>, vector<2x1x16x16xf32>
    %356 = vector.shape_cast %355 : vector<2x1x16x16xf32> to vector<2x16x16xf32>
    %c59_239 = arith.constant 59 : index
    %357 = memref.load %arg3[%c59_239] : memref<128xf32, #tpu.memory_space<smem>>
    %358 = vector.broadcast %357 : f32 to vector<2x16x16xf32>
    %359 = arith.mulf %356, %358 : vector<2x16x16xf32>
    %360 = arith.addf %354, %359 : vector<2x16x16xf32>
    %c0_240 = arith.constant 0 : index
    %c60 = arith.constant 60 : index
    %c0_241 = arith.constant 0 : index
    %c0_242 = arith.constant 0 : index
    %361 = vector.load %arg2[%c0_240, %c60, %c0_241, %c0_242] : memref<2x128x16x16xf32, #tpu.memory_space<vmem>>, vector<2x1x16x16xf32>
    %362 = vector.shape_cast %361 : vector<2x1x16x16xf32> to vector<2x16x16xf32>
    %c60_243 = arith.constant 60 : index
    %363 = memref.load %arg3[%c60_243] : memref<128xf32, #tpu.memory_space<smem>>
    %364 = vector.broadcast %363 : f32 to vector<2x16x16xf32>
    %365 = arith.mulf %362, %364 : vector<2x16x16xf32>
    %366 = arith.addf %360, %365 : vector<2x16x16xf32>
    %c0_244 = arith.constant 0 : index
    %c61 = arith.constant 61 : index
    %c0_245 = arith.constant 0 : index
    %c0_246 = arith.constant 0 : index
    %367 = vector.load %arg2[%c0_244, %c61, %c0_245, %c0_246] : memref<2x128x16x16xf32, #tpu.memory_space<vmem>>, vector<2x1x16x16xf32>
    %368 = vector.shape_cast %367 : vector<2x1x16x16xf32> to vector<2x16x16xf32>
    %c61_247 = arith.constant 61 : index
    %369 = memref.load %arg3[%c61_247] : memref<128xf32, #tpu.memory_space<smem>>
    %370 = vector.broadcast %369 : f32 to vector<2x16x16xf32>
    %371 = arith.mulf %368, %370 : vector<2x16x16xf32>
    %372 = arith.addf %366, %371 : vector<2x16x16xf32>
    %c0_248 = arith.constant 0 : index
    %c62 = arith.constant 62 : index
    %c0_249 = arith.constant 0 : index
    %c0_250 = arith.constant 0 : index
    %373 = vector.load %arg2[%c0_248, %c62, %c0_249, %c0_250] : memref<2x128x16x16xf32, #tpu.memory_space<vmem>>, vector<2x1x16x16xf32>
    %374 = vector.shape_cast %373 : vector<2x1x16x16xf32> to vector<2x16x16xf32>
    %c62_251 = arith.constant 62 : index
    %375 = memref.load %arg3[%c62_251] : memref<128xf32, #tpu.memory_space<smem>>
    %376 = vector.broadcast %375 : f32 to vector<2x16x16xf32>
    %377 = arith.mulf %374, %376 : vector<2x16x16xf32>
    %378 = arith.addf %372, %377 : vector<2x16x16xf32>
    %c0_252 = arith.constant 0 : index
    %c63 = arith.constant 63 : index
    %c0_253 = arith.constant 0 : index
    %c0_254 = arith.constant 0 : index
    %379 = vector.load %arg2[%c0_252, %c63, %c0_253, %c0_254] : memref<2x128x16x16xf32, #tpu.memory_space<vmem>>, vector<2x1x16x16xf32>
    %380 = vector.shape_cast %379 : vector<2x1x16x16xf32> to vector<2x16x16xf32>
    %c63_255 = arith.constant 63 : index
    %381 = memref.load %arg3[%c63_255] : memref<128xf32, #tpu.memory_space<smem>>
    %382 = vector.broadcast %381 : f32 to vector<2x16x16xf32>
    %383 = arith.mulf %380, %382 : vector<2x16x16xf32>
    %384 = arith.addf %378, %383 : vector<2x16x16xf32>
    %c0_256 = arith.constant 0 : index
    %c64 = arith.constant 64 : index
    %c0_257 = arith.constant 0 : index
    %c0_258 = arith.constant 0 : index
    %385 = vector.load %arg2[%c0_256, %c64, %c0_257, %c0_258] : memref<2x128x16x16xf32, #tpu.memory_space<vmem>>, vector<2x1x16x16xf32>
    %386 = vector.shape_cast %385 : vector<2x1x16x16xf32> to vector<2x16x16xf32>
    %c64_259 = arith.constant 64 : index
    %387 = memref.load %arg3[%c64_259] : memref<128xf32, #tpu.memory_space<smem>>
    %388 = vector.broadcast %387 : f32 to vector<2x16x16xf32>
    %389 = arith.mulf %386, %388 : vector<2x16x16xf32>
    %390 = arith.addf %384, %389 : vector<2x16x16xf32>
    %c0_260 = arith.constant 0 : index
    %c65 = arith.constant 65 : index
    %c0_261 = arith.constant 0 : index
    %c0_262 = arith.constant 0 : index
    %391 = vector.load %arg2[%c0_260, %c65, %c0_261, %c0_262] : memref<2x128x16x16xf32, #tpu.memory_space<vmem>>, vector<2x1x16x16xf32>
    %392 = vector.shape_cast %391 : vector<2x1x16x16xf32> to vector<2x16x16xf32>
    %c65_263 = arith.constant 65 : index
    %393 = memref.load %arg3[%c65_263] : memref<128xf32, #tpu.memory_space<smem>>
    %394 = vector.broadcast %393 : f32 to vector<2x16x16xf32>
    %395 = arith.mulf %392, %394 : vector<2x16x16xf32>
    %396 = arith.addf %390, %395 : vector<2x16x16xf32>
    %c0_264 = arith.constant 0 : index
    %c66 = arith.constant 66 : index
    %c0_265 = arith.constant 0 : index
    %c0_266 = arith.constant 0 : index
    %397 = vector.load %arg2[%c0_264, %c66, %c0_265, %c0_266] : memref<2x128x16x16xf32, #tpu.memory_space<vmem>>, vector<2x1x16x16xf32>
    %398 = vector.shape_cast %397 : vector<2x1x16x16xf32> to vector<2x16x16xf32>
    %c66_267 = arith.constant 66 : index
    %399 = memref.load %arg3[%c66_267] : memref<128xf32, #tpu.memory_space<smem>>
    %400 = vector.broadcast %399 : f32 to vector<2x16x16xf32>
    %401 = arith.mulf %398, %400 : vector<2x16x16xf32>
    %402 = arith.addf %396, %401 : vector<2x16x16xf32>
    %c0_268 = arith.constant 0 : index
    %c67 = arith.constant 67 : index
    %c0_269 = arith.constant 0 : index
    %c0_270 = arith.constant 0 : index
    %403 = vector.load %arg2[%c0_268, %c67, %c0_269, %c0_270] : memref<2x128x16x16xf32, #tpu.memory_space<vmem>>, vector<2x1x16x16xf32>
    %404 = vector.shape_cast %403 : vector<2x1x16x16xf32> to vector<2x16x16xf32>
    %c67_271 = arith.constant 67 : index
    %405 = memref.load %arg3[%c67_271] : memref<128xf32, #tpu.memory_space<smem>>
    %406 = vector.broadcast %405 : f32 to vector<2x16x16xf32>
    %407 = arith.mulf %404, %406 : vector<2x16x16xf32>
    %408 = arith.addf %402, %407 : vector<2x16x16xf32>
    %c0_272 = arith.constant 0 : index
    %c68 = arith.constant 68 : index
    %c0_273 = arith.constant 0 : index
    %c0_274 = arith.constant 0 : index
    %409 = vector.load %arg2[%c0_272, %c68, %c0_273, %c0_274] : memref<2x128x16x16xf32, #tpu.memory_space<vmem>>, vector<2x1x16x16xf32>
    %410 = vector.shape_cast %409 : vector<2x1x16x16xf32> to vector<2x16x16xf32>
    %c68_275 = arith.constant 68 : index
    %411 = memref.load %arg3[%c68_275] : memref<128xf32, #tpu.memory_space<smem>>
    %412 = vector.broadcast %411 : f32 to vector<2x16x16xf32>
    %413 = arith.mulf %410, %412 : vector<2x16x16xf32>
    %414 = arith.addf %408, %413 : vector<2x16x16xf32>
    %c0_276 = arith.constant 0 : index
    %c69 = arith.constant 69 : index
    %c0_277 = arith.constant 0 : index
    %c0_278 = arith.constant 0 : index
    %415 = vector.load %arg2[%c0_276, %c69, %c0_277, %c0_278] : memref<2x128x16x16xf32, #tpu.memory_space<vmem>>, vector<2x1x16x16xf32>
    %416 = vector.shape_cast %415 : vector<2x1x16x16xf32> to vector<2x16x16xf32>
    %c69_279 = arith.constant 69 : index
    %417 = memref.load %arg3[%c69_279] : memref<128xf32, #tpu.memory_space<smem>>
    %418 = vector.broadcast %417 : f32 to vector<2x16x16xf32>
    %419 = arith.mulf %416, %418 : vector<2x16x16xf32>
    %420 = arith.addf %414, %419 : vector<2x16x16xf32>
    %c0_280 = arith.constant 0 : index
    %c70 = arith.constant 70 : index
    %c0_281 = arith.constant 0 : index
    %c0_282 = arith.constant 0 : index
    %421 = vector.load %arg2[%c0_280, %c70, %c0_281, %c0_282] : memref<2x128x16x16xf32, #tpu.memory_space<vmem>>, vector<2x1x16x16xf32>
    %422 = vector.shape_cast %421 : vector<2x1x16x16xf32> to vector<2x16x16xf32>
    %c70_283 = arith.constant 70 : index
    %423 = memref.load %arg3[%c70_283] : memref<128xf32, #tpu.memory_space<smem>>
    %424 = vector.broadcast %423 : f32 to vector<2x16x16xf32>
    %425 = arith.mulf %422, %424 : vector<2x16x16xf32>
    %426 = arith.addf %420, %425 : vector<2x16x16xf32>
    %c0_284 = arith.constant 0 : index
    %c71 = arith.constant 71 : index
    %c0_285 = arith.constant 0 : index
    %c0_286 = arith.constant 0 : index
    %427 = vector.load %arg2[%c0_284, %c71, %c0_285, %c0_286] : memref<2x128x16x16xf32, #tpu.memory_space<vmem>>, vector<2x1x16x16xf32>
    %428 = vector.shape_cast %427 : vector<2x1x16x16xf32> to vector<2x16x16xf32>
    %c71_287 = arith.constant 71 : index
    %429 = memref.load %arg3[%c71_287] : memref<128xf32, #tpu.memory_space<smem>>
    %430 = vector.broadcast %429 : f32 to vector<2x16x16xf32>
    %431 = arith.mulf %428, %430 : vector<2x16x16xf32>
    %432 = arith.addf %426, %431 : vector<2x16x16xf32>
    %c0_288 = arith.constant 0 : index
    %c72 = arith.constant 72 : index
    %c0_289 = arith.constant 0 : index
    %c0_290 = arith.constant 0 : index
    %433 = vector.load %arg2[%c0_288, %c72, %c0_289, %c0_290] : memref<2x128x16x16xf32, #tpu.memory_space<vmem>>, vector<2x1x16x16xf32>
    %434 = vector.shape_cast %433 : vector<2x1x16x16xf32> to vector<2x16x16xf32>
    %c72_291 = arith.constant 72 : index
    %435 = memref.load %arg3[%c72_291] : memref<128xf32, #tpu.memory_space<smem>>
    %436 = vector.broadcast %435 : f32 to vector<2x16x16xf32>
    %437 = arith.mulf %434, %436 : vector<2x16x16xf32>
    %438 = arith.addf %432, %437 : vector<2x16x16xf32>
    %c0_292 = arith.constant 0 : index
    %c73 = arith.constant 73 : index
    %c0_293 = arith.constant 0 : index
    %c0_294 = arith.constant 0 : index
    %439 = vector.load %arg2[%c0_292, %c73, %c0_293, %c0_294] : memref<2x128x16x16xf32, #tpu.memory_space<vmem>>, vector<2x1x16x16xf32>
    %440 = vector.shape_cast %439 : vector<2x1x16x16xf32> to vector<2x16x16xf32>
    %c73_295 = arith.constant 73 : index
    %441 = memref.load %arg3[%c73_295] : memref<128xf32, #tpu.memory_space<smem>>
    %442 = vector.broadcast %441 : f32 to vector<2x16x16xf32>
    %443 = arith.mulf %440, %442 : vector<2x16x16xf32>
    %444 = arith.addf %438, %443 : vector<2x16x16xf32>
    %c0_296 = arith.constant 0 : index
    %c74 = arith.constant 74 : index
    %c0_297 = arith.constant 0 : index
    %c0_298 = arith.constant 0 : index
    %445 = vector.load %arg2[%c0_296, %c74, %c0_297, %c0_298] : memref<2x128x16x16xf32, #tpu.memory_space<vmem>>, vector<2x1x16x16xf32>
    %446 = vector.shape_cast %445 : vector<2x1x16x16xf32> to vector<2x16x16xf32>
    %c74_299 = arith.constant 74 : index
    %447 = memref.load %arg3[%c74_299] : memref<128xf32, #tpu.memory_space<smem>>
    %448 = vector.broadcast %447 : f32 to vector<2x16x16xf32>
    %449 = arith.mulf %446, %448 : vector<2x16x16xf32>
    %450 = arith.addf %444, %449 : vector<2x16x16xf32>
    %c0_300 = arith.constant 0 : index
    %c75 = arith.constant 75 : index
    %c0_301 = arith.constant 0 : index
    %c0_302 = arith.constant 0 : index
    %451 = vector.load %arg2[%c0_300, %c75, %c0_301, %c0_302] : memref<2x128x16x16xf32, #tpu.memory_space<vmem>>, vector<2x1x16x16xf32>
    %452 = vector.shape_cast %451 : vector<2x1x16x16xf32> to vector<2x16x16xf32>
    %c75_303 = arith.constant 75 : index
    %453 = memref.load %arg3[%c75_303] : memref<128xf32, #tpu.memory_space<smem>>
    %454 = vector.broadcast %453 : f32 to vector<2x16x16xf32>
    %455 = arith.mulf %452, %454 : vector<2x16x16xf32>
    %456 = arith.addf %450, %455 : vector<2x16x16xf32>
    %c0_304 = arith.constant 0 : index
    %c76 = arith.constant 76 : index
    %c0_305 = arith.constant 0 : index
    %c0_306 = arith.constant 0 : index
    %457 = vector.load %arg2[%c0_304, %c76, %c0_305, %c0_306] : memref<2x128x16x16xf32, #tpu.memory_space<vmem>>, vector<2x1x16x16xf32>
    %458 = vector.shape_cast %457 : vector<2x1x16x16xf32> to vector<2x16x16xf32>
    %c76_307 = arith.constant 76 : index
    %459 = memref.load %arg3[%c76_307] : memref<128xf32, #tpu.memory_space<smem>>
    %460 = vector.broadcast %459 : f32 to vector<2x16x16xf32>
    %461 = arith.mulf %458, %460 : vector<2x16x16xf32>
    %462 = arith.addf %456, %461 : vector<2x16x16xf32>
    %c0_308 = arith.constant 0 : index
    %c77 = arith.constant 77 : index
    %c0_309 = arith.constant 0 : index
    %c0_310 = arith.constant 0 : index
    %463 = vector.load %arg2[%c0_308, %c77, %c0_309, %c0_310] : memref<2x128x16x16xf32, #tpu.memory_space<vmem>>, vector<2x1x16x16xf32>
    %464 = vector.shape_cast %463 : vector<2x1x16x16xf32> to vector<2x16x16xf32>
    %c77_311 = arith.constant 77 : index
    %465 = memref.load %arg3[%c77_311] : memref<128xf32, #tpu.memory_space<smem>>
    %466 = vector.broadcast %465 : f32 to vector<2x16x16xf32>
    %467 = arith.mulf %464, %466 : vector<2x16x16xf32>
    %468 = arith.addf %462, %467 : vector<2x16x16xf32>
    %c0_312 = arith.constant 0 : index
    %c78 = arith.constant 78 : index
    %c0_313 = arith.constant 0 : index
    %c0_314 = arith.constant 0 : index
    %469 = vector.load %arg2[%c0_312, %c78, %c0_313, %c0_314] : memref<2x128x16x16xf32, #tpu.memory_space<vmem>>, vector<2x1x16x16xf32>
    %470 = vector.shape_cast %469 : vector<2x1x16x16xf32> to vector<2x16x16xf32>
    %c78_315 = arith.constant 78 : index
    %471 = memref.load %arg3[%c78_315] : memref<128xf32, #tpu.memory_space<smem>>
    %472 = vector.broadcast %471 : f32 to vector<2x16x16xf32>
    %473 = arith.mulf %470, %472 : vector<2x16x16xf32>
    %474 = arith.addf %468, %473 : vector<2x16x16xf32>
    %c0_316 = arith.constant 0 : index
    %c79 = arith.constant 79 : index
    %c0_317 = arith.constant 0 : index
    %c0_318 = arith.constant 0 : index
    %475 = vector.load %arg2[%c0_316, %c79, %c0_317, %c0_318] : memref<2x128x16x16xf32, #tpu.memory_space<vmem>>, vector<2x1x16x16xf32>
    %476 = vector.shape_cast %475 : vector<2x1x16x16xf32> to vector<2x16x16xf32>
    %c79_319 = arith.constant 79 : index
    %477 = memref.load %arg3[%c79_319] : memref<128xf32, #tpu.memory_space<smem>>
    %478 = vector.broadcast %477 : f32 to vector<2x16x16xf32>
    %479 = arith.mulf %476, %478 : vector<2x16x16xf32>
    %480 = arith.addf %474, %479 : vector<2x16x16xf32>
    %c0_320 = arith.constant 0 : index
    %c80 = arith.constant 80 : index
    %c0_321 = arith.constant 0 : index
    %c0_322 = arith.constant 0 : index
    %481 = vector.load %arg2[%c0_320, %c80, %c0_321, %c0_322] : memref<2x128x16x16xf32, #tpu.memory_space<vmem>>, vector<2x1x16x16xf32>
    %482 = vector.shape_cast %481 : vector<2x1x16x16xf32> to vector<2x16x16xf32>
    %c80_323 = arith.constant 80 : index
    %483 = memref.load %arg3[%c80_323] : memref<128xf32, #tpu.memory_space<smem>>
    %484 = vector.broadcast %483 : f32 to vector<2x16x16xf32>
    %485 = arith.mulf %482, %484 : vector<2x16x16xf32>
    %486 = arith.addf %480, %485 : vector<2x16x16xf32>
    %c0_324 = arith.constant 0 : index
    %c81 = arith.constant 81 : index
    %c0_325 = arith.constant 0 : index
    %c0_326 = arith.constant 0 : index
    %487 = vector.load %arg2[%c0_324, %c81, %c0_325, %c0_326] : memref<2x128x16x16xf32, #tpu.memory_space<vmem>>, vector<2x1x16x16xf32>
    %488 = vector.shape_cast %487 : vector<2x1x16x16xf32> to vector<2x16x16xf32>
    %c81_327 = arith.constant 81 : index
    %489 = memref.load %arg3[%c81_327] : memref<128xf32, #tpu.memory_space<smem>>
    %490 = vector.broadcast %489 : f32 to vector<2x16x16xf32>
    %491 = arith.mulf %488, %490 : vector<2x16x16xf32>
    %492 = arith.addf %486, %491 : vector<2x16x16xf32>
    %c0_328 = arith.constant 0 : index
    %c82 = arith.constant 82 : index
    %c0_329 = arith.constant 0 : index
    %c0_330 = arith.constant 0 : index
    %493 = vector.load %arg2[%c0_328, %c82, %c0_329, %c0_330] : memref<2x128x16x16xf32, #tpu.memory_space<vmem>>, vector<2x1x16x16xf32>
    %494 = vector.shape_cast %493 : vector<2x1x16x16xf32> to vector<2x16x16xf32>
    %c82_331 = arith.constant 82 : index
    %495 = memref.load %arg3[%c82_331] : memref<128xf32, #tpu.memory_space<smem>>
    %496 = vector.broadcast %495 : f32 to vector<2x16x16xf32>
    %497 = arith.mulf %494, %496 : vector<2x16x16xf32>
    %498 = arith.addf %492, %497 : vector<2x16x16xf32>
    %c0_332 = arith.constant 0 : index
    %c83 = arith.constant 83 : index
    %c0_333 = arith.constant 0 : index
    %c0_334 = arith.constant 0 : index
    %499 = vector.load %arg2[%c0_332, %c83, %c0_333, %c0_334] : memref<2x128x16x16xf32, #tpu.memory_space<vmem>>, vector<2x1x16x16xf32>
    %500 = vector.shape_cast %499 : vector<2x1x16x16xf32> to vector<2x16x16xf32>
    %c83_335 = arith.constant 83 : index
    %501 = memref.load %arg3[%c83_335] : memref<128xf32, #tpu.memory_space<smem>>
    %502 = vector.broadcast %501 : f32 to vector<2x16x16xf32>
    %503 = arith.mulf %500, %502 : vector<2x16x16xf32>
    %504 = arith.addf %498, %503 : vector<2x16x16xf32>
    %c0_336 = arith.constant 0 : index
    %c84 = arith.constant 84 : index
    %c0_337 = arith.constant 0 : index
    %c0_338 = arith.constant 0 : index
    %505 = vector.load %arg2[%c0_336, %c84, %c0_337, %c0_338] : memref<2x128x16x16xf32, #tpu.memory_space<vmem>>, vector<2x1x16x16xf32>
    %506 = vector.shape_cast %505 : vector<2x1x16x16xf32> to vector<2x16x16xf32>
    %c84_339 = arith.constant 84 : index
    %507 = memref.load %arg3[%c84_339] : memref<128xf32, #tpu.memory_space<smem>>
    %508 = vector.broadcast %507 : f32 to vector<2x16x16xf32>
    %509 = arith.mulf %506, %508 : vector<2x16x16xf32>
    %510 = arith.addf %504, %509 : vector<2x16x16xf32>
    %c0_340 = arith.constant 0 : index
    %c85 = arith.constant 85 : index
    %c0_341 = arith.constant 0 : index
    %c0_342 = arith.constant 0 : index
    %511 = vector.load %arg2[%c0_340, %c85, %c0_341, %c0_342] : memref<2x128x16x16xf32, #tpu.memory_space<vmem>>, vector<2x1x16x16xf32>
    %512 = vector.shape_cast %511 : vector<2x1x16x16xf32> to vector<2x16x16xf32>
    %c85_343 = arith.constant 85 : index
    %513 = memref.load %arg3[%c85_343] : memref<128xf32, #tpu.memory_space<smem>>
    %514 = vector.broadcast %513 : f32 to vector<2x16x16xf32>
    %515 = arith.mulf %512, %514 : vector<2x16x16xf32>
    %516 = arith.addf %510, %515 : vector<2x16x16xf32>
    %c0_344 = arith.constant 0 : index
    %c86 = arith.constant 86 : index
    %c0_345 = arith.constant 0 : index
    %c0_346 = arith.constant 0 : index
    %517 = vector.load %arg2[%c0_344, %c86, %c0_345, %c0_346] : memref<2x128x16x16xf32, #tpu.memory_space<vmem>>, vector<2x1x16x16xf32>
    %518 = vector.shape_cast %517 : vector<2x1x16x16xf32> to vector<2x16x16xf32>
    %c86_347 = arith.constant 86 : index
    %519 = memref.load %arg3[%c86_347] : memref<128xf32, #tpu.memory_space<smem>>
    %520 = vector.broadcast %519 : f32 to vector<2x16x16xf32>
    %521 = arith.mulf %518, %520 : vector<2x16x16xf32>
    %522 = arith.addf %516, %521 : vector<2x16x16xf32>
    %c0_348 = arith.constant 0 : index
    %c87 = arith.constant 87 : index
    %c0_349 = arith.constant 0 : index
    %c0_350 = arith.constant 0 : index
    %523 = vector.load %arg2[%c0_348, %c87, %c0_349, %c0_350] : memref<2x128x16x16xf32, #tpu.memory_space<vmem>>, vector<2x1x16x16xf32>
    %524 = vector.shape_cast %523 : vector<2x1x16x16xf32> to vector<2x16x16xf32>
    %c87_351 = arith.constant 87 : index
    %525 = memref.load %arg3[%c87_351] : memref<128xf32, #tpu.memory_space<smem>>
    %526 = vector.broadcast %525 : f32 to vector<2x16x16xf32>
    %527 = arith.mulf %524, %526 : vector<2x16x16xf32>
    %528 = arith.addf %522, %527 : vector<2x16x16xf32>
    %c0_352 = arith.constant 0 : index
    %c88 = arith.constant 88 : index
    %c0_353 = arith.constant 0 : index
    %c0_354 = arith.constant 0 : index
    %529 = vector.load %arg2[%c0_352, %c88, %c0_353, %c0_354] : memref<2x128x16x16xf32, #tpu.memory_space<vmem>>, vector<2x1x16x16xf32>
    %530 = vector.shape_cast %529 : vector<2x1x16x16xf32> to vector<2x16x16xf32>
    %c88_355 = arith.constant 88 : index
    %531 = memref.load %arg3[%c88_355] : memref<128xf32, #tpu.memory_space<smem>>
    %532 = vector.broadcast %531 : f32 to vector<2x16x16xf32>
    %533 = arith.mulf %530, %532 : vector<2x16x16xf32>
    %534 = arith.addf %528, %533 : vector<2x16x16xf32>
    %c0_356 = arith.constant 0 : index
    %c89 = arith.constant 89 : index
    %c0_357 = arith.constant 0 : index
    %c0_358 = arith.constant 0 : index
    %535 = vector.load %arg2[%c0_356, %c89, %c0_357, %c0_358] : memref<2x128x16x16xf32, #tpu.memory_space<vmem>>, vector<2x1x16x16xf32>
    %536 = vector.shape_cast %535 : vector<2x1x16x16xf32> to vector<2x16x16xf32>
    %c89_359 = arith.constant 89 : index
    %537 = memref.load %arg3[%c89_359] : memref<128xf32, #tpu.memory_space<smem>>
    %538 = vector.broadcast %537 : f32 to vector<2x16x16xf32>
    %539 = arith.mulf %536, %538 : vector<2x16x16xf32>
    %540 = arith.addf %534, %539 : vector<2x16x16xf32>
    %c0_360 = arith.constant 0 : index
    %c90 = arith.constant 90 : index
    %c0_361 = arith.constant 0 : index
    %c0_362 = arith.constant 0 : index
    %541 = vector.load %arg2[%c0_360, %c90, %c0_361, %c0_362] : memref<2x128x16x16xf32, #tpu.memory_space<vmem>>, vector<2x1x16x16xf32>
    %542 = vector.shape_cast %541 : vector<2x1x16x16xf32> to vector<2x16x16xf32>
    %c90_363 = arith.constant 90 : index
    %543 = memref.load %arg3[%c90_363] : memref<128xf32, #tpu.memory_space<smem>>
    %544 = vector.broadcast %543 : f32 to vector<2x16x16xf32>
    %545 = arith.mulf %542, %544 : vector<2x16x16xf32>
    %546 = arith.addf %540, %545 : vector<2x16x16xf32>
    %c0_364 = arith.constant 0 : index
    %c91 = arith.constant 91 : index
    %c0_365 = arith.constant 0 : index
    %c0_366 = arith.constant 0 : index
    %547 = vector.load %arg2[%c0_364, %c91, %c0_365, %c0_366] : memref<2x128x16x16xf32, #tpu.memory_space<vmem>>, vector<2x1x16x16xf32>
    %548 = vector.shape_cast %547 : vector<2x1x16x16xf32> to vector<2x16x16xf32>
    %c91_367 = arith.constant 91 : index
    %549 = memref.load %arg3[%c91_367] : memref<128xf32, #tpu.memory_space<smem>>
    %550 = vector.broadcast %549 : f32 to vector<2x16x16xf32>
    %551 = arith.mulf %548, %550 : vector<2x16x16xf32>
    %552 = arith.addf %546, %551 : vector<2x16x16xf32>
    %c0_368 = arith.constant 0 : index
    %c92 = arith.constant 92 : index
    %c0_369 = arith.constant 0 : index
    %c0_370 = arith.constant 0 : index
    %553 = vector.load %arg2[%c0_368, %c92, %c0_369, %c0_370] : memref<2x128x16x16xf32, #tpu.memory_space<vmem>>, vector<2x1x16x16xf32>
    %554 = vector.shape_cast %553 : vector<2x1x16x16xf32> to vector<2x16x16xf32>
    %c92_371 = arith.constant 92 : index
    %555 = memref.load %arg3[%c92_371] : memref<128xf32, #tpu.memory_space<smem>>
    %556 = vector.broadcast %555 : f32 to vector<2x16x16xf32>
    %557 = arith.mulf %554, %556 : vector<2x16x16xf32>
    %558 = arith.addf %552, %557 : vector<2x16x16xf32>
    %c0_372 = arith.constant 0 : index
    %c93 = arith.constant 93 : index
    %c0_373 = arith.constant 0 : index
    %c0_374 = arith.constant 0 : index
    %559 = vector.load %arg2[%c0_372, %c93, %c0_373, %c0_374] : memref<2x128x16x16xf32, #tpu.memory_space<vmem>>, vector<2x1x16x16xf32>
    %560 = vector.shape_cast %559 : vector<2x1x16x16xf32> to vector<2x16x16xf32>
    %c93_375 = arith.constant 93 : index
    %561 = memref.load %arg3[%c93_375] : memref<128xf32, #tpu.memory_space<smem>>
    %562 = vector.broadcast %561 : f32 to vector<2x16x16xf32>
    %563 = arith.mulf %560, %562 : vector<2x16x16xf32>
    %564 = arith.addf %558, %563 : vector<2x16x16xf32>
    %c0_376 = arith.constant 0 : index
    %c94 = arith.constant 94 : index
    %c0_377 = arith.constant 0 : index
    %c0_378 = arith.constant 0 : index
    %565 = vector.load %arg2[%c0_376, %c94, %c0_377, %c0_378] : memref<2x128x16x16xf32, #tpu.memory_space<vmem>>, vector<2x1x16x16xf32>
    %566 = vector.shape_cast %565 : vector<2x1x16x16xf32> to vector<2x16x16xf32>
    %c94_379 = arith.constant 94 : index
    %567 = memref.load %arg3[%c94_379] : memref<128xf32, #tpu.memory_space<smem>>
    %568 = vector.broadcast %567 : f32 to vector<2x16x16xf32>
    %569 = arith.mulf %566, %568 : vector<2x16x16xf32>
    %570 = arith.addf %564, %569 : vector<2x16x16xf32>
    %c0_380 = arith.constant 0 : index
    %c95 = arith.constant 95 : index
    %c0_381 = arith.constant 0 : index
    %c0_382 = arith.constant 0 : index
    %571 = vector.load %arg2[%c0_380, %c95, %c0_381, %c0_382] : memref<2x128x16x16xf32, #tpu.memory_space<vmem>>, vector<2x1x16x16xf32>
    %572 = vector.shape_cast %571 : vector<2x1x16x16xf32> to vector<2x16x16xf32>
    %c95_383 = arith.constant 95 : index
    %573 = memref.load %arg3[%c95_383] : memref<128xf32, #tpu.memory_space<smem>>
    %574 = vector.broadcast %573 : f32 to vector<2x16x16xf32>
    %575 = arith.mulf %572, %574 : vector<2x16x16xf32>
    %576 = arith.addf %570, %575 : vector<2x16x16xf32>
    %c0_384 = arith.constant 0 : index
    %c96 = arith.constant 96 : index
    %c0_385 = arith.constant 0 : index
    %c0_386 = arith.constant 0 : index
    %577 = vector.load %arg2[%c0_384, %c96, %c0_385, %c0_386] : memref<2x128x16x16xf32, #tpu.memory_space<vmem>>, vector<2x1x16x16xf32>
    %578 = vector.shape_cast %577 : vector<2x1x16x16xf32> to vector<2x16x16xf32>
    %c96_387 = arith.constant 96 : index
    %579 = memref.load %arg3[%c96_387] : memref<128xf32, #tpu.memory_space<smem>>
    %580 = vector.broadcast %579 : f32 to vector<2x16x16xf32>
    %581 = arith.mulf %578, %580 : vector<2x16x16xf32>
    %582 = arith.addf %576, %581 : vector<2x16x16xf32>
    %c0_388 = arith.constant 0 : index
    %c97 = arith.constant 97 : index
    %c0_389 = arith.constant 0 : index
    %c0_390 = arith.constant 0 : index
    %583 = vector.load %arg2[%c0_388, %c97, %c0_389, %c0_390] : memref<2x128x16x16xf32, #tpu.memory_space<vmem>>, vector<2x1x16x16xf32>
    %584 = vector.shape_cast %583 : vector<2x1x16x16xf32> to vector<2x16x16xf32>
    %c97_391 = arith.constant 97 : index
    %585 = memref.load %arg3[%c97_391] : memref<128xf32, #tpu.memory_space<smem>>
    %586 = vector.broadcast %585 : f32 to vector<2x16x16xf32>
    %587 = arith.mulf %584, %586 : vector<2x16x16xf32>
    %588 = arith.addf %582, %587 : vector<2x16x16xf32>
    %c0_392 = arith.constant 0 : index
    %c98 = arith.constant 98 : index
    %c0_393 = arith.constant 0 : index
    %c0_394 = arith.constant 0 : index
    %589 = vector.load %arg2[%c0_392, %c98, %c0_393, %c0_394] : memref<2x128x16x16xf32, #tpu.memory_space<vmem>>, vector<2x1x16x16xf32>
    %590 = vector.shape_cast %589 : vector<2x1x16x16xf32> to vector<2x16x16xf32>
    %c98_395 = arith.constant 98 : index
    %591 = memref.load %arg3[%c98_395] : memref<128xf32, #tpu.memory_space<smem>>
    %592 = vector.broadcast %591 : f32 to vector<2x16x16xf32>
    %593 = arith.mulf %590, %592 : vector<2x16x16xf32>
    %594 = arith.addf %588, %593 : vector<2x16x16xf32>
    %c0_396 = arith.constant 0 : index
    %c99 = arith.constant 99 : index
    %c0_397 = arith.constant 0 : index
    %c0_398 = arith.constant 0 : index
    %595 = vector.load %arg2[%c0_396, %c99, %c0_397, %c0_398] : memref<2x128x16x16xf32, #tpu.memory_space<vmem>>, vector<2x1x16x16xf32>
    %596 = vector.shape_cast %595 : vector<2x1x16x16xf32> to vector<2x16x16xf32>
    %c99_399 = arith.constant 99 : index
    %597 = memref.load %arg3[%c99_399] : memref<128xf32, #tpu.memory_space<smem>>
    %598 = vector.broadcast %597 : f32 to vector<2x16x16xf32>
    %599 = arith.mulf %596, %598 : vector<2x16x16xf32>
    %600 = arith.addf %594, %599 : vector<2x16x16xf32>
    %c0_400 = arith.constant 0 : index
    %c100 = arith.constant 100 : index
    %c0_401 = arith.constant 0 : index
    %c0_402 = arith.constant 0 : index
    %601 = vector.load %arg2[%c0_400, %c100, %c0_401, %c0_402] : memref<2x128x16x16xf32, #tpu.memory_space<vmem>>, vector<2x1x16x16xf32>
    %602 = vector.shape_cast %601 : vector<2x1x16x16xf32> to vector<2x16x16xf32>
    %c100_403 = arith.constant 100 : index
    %603 = memref.load %arg3[%c100_403] : memref<128xf32, #tpu.memory_space<smem>>
    %604 = vector.broadcast %603 : f32 to vector<2x16x16xf32>
    %605 = arith.mulf %602, %604 : vector<2x16x16xf32>
    %606 = arith.addf %600, %605 : vector<2x16x16xf32>
    %c0_404 = arith.constant 0 : index
    %c101 = arith.constant 101 : index
    %c0_405 = arith.constant 0 : index
    %c0_406 = arith.constant 0 : index
    %607 = vector.load %arg2[%c0_404, %c101, %c0_405, %c0_406] : memref<2x128x16x16xf32, #tpu.memory_space<vmem>>, vector<2x1x16x16xf32>
    %608 = vector.shape_cast %607 : vector<2x1x16x16xf32> to vector<2x16x16xf32>
    %c101_407 = arith.constant 101 : index
    %609 = memref.load %arg3[%c101_407] : memref<128xf32, #tpu.memory_space<smem>>
    %610 = vector.broadcast %609 : f32 to vector<2x16x16xf32>
    %611 = arith.mulf %608, %610 : vector<2x16x16xf32>
    %612 = arith.addf %606, %611 : vector<2x16x16xf32>
    %c0_408 = arith.constant 0 : index
    %c102 = arith.constant 102 : index
    %c0_409 = arith.constant 0 : index
    %c0_410 = arith.constant 0 : index
    %613 = vector.load %arg2[%c0_408, %c102, %c0_409, %c0_410] : memref<2x128x16x16xf32, #tpu.memory_space<vmem>>, vector<2x1x16x16xf32>
    %614 = vector.shape_cast %613 : vector<2x1x16x16xf32> to vector<2x16x16xf32>
    %c102_411 = arith.constant 102 : index
    %615 = memref.load %arg3[%c102_411] : memref<128xf32, #tpu.memory_space<smem>>
    %616 = vector.broadcast %615 : f32 to vector<2x16x16xf32>
    %617 = arith.mulf %614, %616 : vector<2x16x16xf32>
    %618 = arith.addf %612, %617 : vector<2x16x16xf32>
    %c0_412 = arith.constant 0 : index
    %c103 = arith.constant 103 : index
    %c0_413 = arith.constant 0 : index
    %c0_414 = arith.constant 0 : index
    %619 = vector.load %arg2[%c0_412, %c103, %c0_413, %c0_414] : memref<2x128x16x16xf32, #tpu.memory_space<vmem>>, vector<2x1x16x16xf32>
    %620 = vector.shape_cast %619 : vector<2x1x16x16xf32> to vector<2x16x16xf32>
    %c103_415 = arith.constant 103 : index
    %621 = memref.load %arg3[%c103_415] : memref<128xf32, #tpu.memory_space<smem>>
    %622 = vector.broadcast %621 : f32 to vector<2x16x16xf32>
    %623 = arith.mulf %620, %622 : vector<2x16x16xf32>
    %624 = arith.addf %618, %623 : vector<2x16x16xf32>
    %c0_416 = arith.constant 0 : index
    %c104 = arith.constant 104 : index
    %c0_417 = arith.constant 0 : index
    %c0_418 = arith.constant 0 : index
    %625 = vector.load %arg2[%c0_416, %c104, %c0_417, %c0_418] : memref<2x128x16x16xf32, #tpu.memory_space<vmem>>, vector<2x1x16x16xf32>
    %626 = vector.shape_cast %625 : vector<2x1x16x16xf32> to vector<2x16x16xf32>
    %c104_419 = arith.constant 104 : index
    %627 = memref.load %arg3[%c104_419] : memref<128xf32, #tpu.memory_space<smem>>
    %628 = vector.broadcast %627 : f32 to vector<2x16x16xf32>
    %629 = arith.mulf %626, %628 : vector<2x16x16xf32>
    %630 = arith.addf %624, %629 : vector<2x16x16xf32>
    %c0_420 = arith.constant 0 : index
    %c105 = arith.constant 105 : index
    %c0_421 = arith.constant 0 : index
    %c0_422 = arith.constant 0 : index
    %631 = vector.load %arg2[%c0_420, %c105, %c0_421, %c0_422] : memref<2x128x16x16xf32, #tpu.memory_space<vmem>>, vector<2x1x16x16xf32>
    %632 = vector.shape_cast %631 : vector<2x1x16x16xf32> to vector<2x16x16xf32>
    %c105_423 = arith.constant 105 : index
    %633 = memref.load %arg3[%c105_423] : memref<128xf32, #tpu.memory_space<smem>>
    %634 = vector.broadcast %633 : f32 to vector<2x16x16xf32>
    %635 = arith.mulf %632, %634 : vector<2x16x16xf32>
    %636 = arith.addf %630, %635 : vector<2x16x16xf32>
    %c0_424 = arith.constant 0 : index
    %c106 = arith.constant 106 : index
    %c0_425 = arith.constant 0 : index
    %c0_426 = arith.constant 0 : index
    %637 = vector.load %arg2[%c0_424, %c106, %c0_425, %c0_426] : memref<2x128x16x16xf32, #tpu.memory_space<vmem>>, vector<2x1x16x16xf32>
    %638 = vector.shape_cast %637 : vector<2x1x16x16xf32> to vector<2x16x16xf32>
    %c106_427 = arith.constant 106 : index
    %639 = memref.load %arg3[%c106_427] : memref<128xf32, #tpu.memory_space<smem>>
    %640 = vector.broadcast %639 : f32 to vector<2x16x16xf32>
    %641 = arith.mulf %638, %640 : vector<2x16x16xf32>
    %642 = arith.addf %636, %641 : vector<2x16x16xf32>
    %c0_428 = arith.constant 0 : index
    %c107 = arith.constant 107 : index
    %c0_429 = arith.constant 0 : index
    %c0_430 = arith.constant 0 : index
    %643 = vector.load %arg2[%c0_428, %c107, %c0_429, %c0_430] : memref<2x128x16x16xf32, #tpu.memory_space<vmem>>, vector<2x1x16x16xf32>
    %644 = vector.shape_cast %643 : vector<2x1x16x16xf32> to vector<2x16x16xf32>
    %c107_431 = arith.constant 107 : index
    %645 = memref.load %arg3[%c107_431] : memref<128xf32, #tpu.memory_space<smem>>
    %646 = vector.broadcast %645 : f32 to vector<2x16x16xf32>
    %647 = arith.mulf %644, %646 : vector<2x16x16xf32>
    %648 = arith.addf %642, %647 : vector<2x16x16xf32>
    %c0_432 = arith.constant 0 : index
    %c108 = arith.constant 108 : index
    %c0_433 = arith.constant 0 : index
    %c0_434 = arith.constant 0 : index
    %649 = vector.load %arg2[%c0_432, %c108, %c0_433, %c0_434] : memref<2x128x16x16xf32, #tpu.memory_space<vmem>>, vector<2x1x16x16xf32>
    %650 = vector.shape_cast %649 : vector<2x1x16x16xf32> to vector<2x16x16xf32>
    %c108_435 = arith.constant 108 : index
    %651 = memref.load %arg3[%c108_435] : memref<128xf32, #tpu.memory_space<smem>>
    %652 = vector.broadcast %651 : f32 to vector<2x16x16xf32>
    %653 = arith.mulf %650, %652 : vector<2x16x16xf32>
    %654 = arith.addf %648, %653 : vector<2x16x16xf32>
    %c0_436 = arith.constant 0 : index
    %c109 = arith.constant 109 : index
    %c0_437 = arith.constant 0 : index
    %c0_438 = arith.constant 0 : index
    %655 = vector.load %arg2[%c0_436, %c109, %c0_437, %c0_438] : memref<2x128x16x16xf32, #tpu.memory_space<vmem>>, vector<2x1x16x16xf32>
    %656 = vector.shape_cast %655 : vector<2x1x16x16xf32> to vector<2x16x16xf32>
    %c109_439 = arith.constant 109 : index
    %657 = memref.load %arg3[%c109_439] : memref<128xf32, #tpu.memory_space<smem>>
    %658 = vector.broadcast %657 : f32 to vector<2x16x16xf32>
    %659 = arith.mulf %656, %658 : vector<2x16x16xf32>
    %660 = arith.addf %654, %659 : vector<2x16x16xf32>
    %c0_440 = arith.constant 0 : index
    %c110 = arith.constant 110 : index
    %c0_441 = arith.constant 0 : index
    %c0_442 = arith.constant 0 : index
    %661 = vector.load %arg2[%c0_440, %c110, %c0_441, %c0_442] : memref<2x128x16x16xf32, #tpu.memory_space<vmem>>, vector<2x1x16x16xf32>
    %662 = vector.shape_cast %661 : vector<2x1x16x16xf32> to vector<2x16x16xf32>
    %c110_443 = arith.constant 110 : index
    %663 = memref.load %arg3[%c110_443] : memref<128xf32, #tpu.memory_space<smem>>
    %664 = vector.broadcast %663 : f32 to vector<2x16x16xf32>
    %665 = arith.mulf %662, %664 : vector<2x16x16xf32>
    %666 = arith.addf %660, %665 : vector<2x16x16xf32>
    %c0_444 = arith.constant 0 : index
    %c111 = arith.constant 111 : index
    %c0_445 = arith.constant 0 : index
    %c0_446 = arith.constant 0 : index
    %667 = vector.load %arg2[%c0_444, %c111, %c0_445, %c0_446] : memref<2x128x16x16xf32, #tpu.memory_space<vmem>>, vector<2x1x16x16xf32>
    %668 = vector.shape_cast %667 : vector<2x1x16x16xf32> to vector<2x16x16xf32>
    %c111_447 = arith.constant 111 : index
    %669 = memref.load %arg3[%c111_447] : memref<128xf32, #tpu.memory_space<smem>>
    %670 = vector.broadcast %669 : f32 to vector<2x16x16xf32>
    %671 = arith.mulf %668, %670 : vector<2x16x16xf32>
    %672 = arith.addf %666, %671 : vector<2x16x16xf32>
    %c0_448 = arith.constant 0 : index
    %c112 = arith.constant 112 : index
    %c0_449 = arith.constant 0 : index
    %c0_450 = arith.constant 0 : index
    %673 = vector.load %arg2[%c0_448, %c112, %c0_449, %c0_450] : memref<2x128x16x16xf32, #tpu.memory_space<vmem>>, vector<2x1x16x16xf32>
    %674 = vector.shape_cast %673 : vector<2x1x16x16xf32> to vector<2x16x16xf32>
    %c112_451 = arith.constant 112 : index
    %675 = memref.load %arg3[%c112_451] : memref<128xf32, #tpu.memory_space<smem>>
    %676 = vector.broadcast %675 : f32 to vector<2x16x16xf32>
    %677 = arith.mulf %674, %676 : vector<2x16x16xf32>
    %678 = arith.addf %672, %677 : vector<2x16x16xf32>
    %c0_452 = arith.constant 0 : index
    %c113 = arith.constant 113 : index
    %c0_453 = arith.constant 0 : index
    %c0_454 = arith.constant 0 : index
    %679 = vector.load %arg2[%c0_452, %c113, %c0_453, %c0_454] : memref<2x128x16x16xf32, #tpu.memory_space<vmem>>, vector<2x1x16x16xf32>
    %680 = vector.shape_cast %679 : vector<2x1x16x16xf32> to vector<2x16x16xf32>
    %c113_455 = arith.constant 113 : index
    %681 = memref.load %arg3[%c113_455] : memref<128xf32, #tpu.memory_space<smem>>
    %682 = vector.broadcast %681 : f32 to vector<2x16x16xf32>
    %683 = arith.mulf %680, %682 : vector<2x16x16xf32>
    %684 = arith.addf %678, %683 : vector<2x16x16xf32>
    %c0_456 = arith.constant 0 : index
    %c114 = arith.constant 114 : index
    %c0_457 = arith.constant 0 : index
    %c0_458 = arith.constant 0 : index
    %685 = vector.load %arg2[%c0_456, %c114, %c0_457, %c0_458] : memref<2x128x16x16xf32, #tpu.memory_space<vmem>>, vector<2x1x16x16xf32>
    %686 = vector.shape_cast %685 : vector<2x1x16x16xf32> to vector<2x16x16xf32>
    %c114_459 = arith.constant 114 : index
    %687 = memref.load %arg3[%c114_459] : memref<128xf32, #tpu.memory_space<smem>>
    %688 = vector.broadcast %687 : f32 to vector<2x16x16xf32>
    %689 = arith.mulf %686, %688 : vector<2x16x16xf32>
    %690 = arith.addf %684, %689 : vector<2x16x16xf32>
    %c0_460 = arith.constant 0 : index
    %c115 = arith.constant 115 : index
    %c0_461 = arith.constant 0 : index
    %c0_462 = arith.constant 0 : index
    %691 = vector.load %arg2[%c0_460, %c115, %c0_461, %c0_462] : memref<2x128x16x16xf32, #tpu.memory_space<vmem>>, vector<2x1x16x16xf32>
    %692 = vector.shape_cast %691 : vector<2x1x16x16xf32> to vector<2x16x16xf32>
    %c115_463 = arith.constant 115 : index
    %693 = memref.load %arg3[%c115_463] : memref<128xf32, #tpu.memory_space<smem>>
    %694 = vector.broadcast %693 : f32 to vector<2x16x16xf32>
    %695 = arith.mulf %692, %694 : vector<2x16x16xf32>
    %696 = arith.addf %690, %695 : vector<2x16x16xf32>
    %c0_464 = arith.constant 0 : index
    %c116 = arith.constant 116 : index
    %c0_465 = arith.constant 0 : index
    %c0_466 = arith.constant 0 : index
    %697 = vector.load %arg2[%c0_464, %c116, %c0_465, %c0_466] : memref<2x128x16x16xf32, #tpu.memory_space<vmem>>, vector<2x1x16x16xf32>
    %698 = vector.shape_cast %697 : vector<2x1x16x16xf32> to vector<2x16x16xf32>
    %c116_467 = arith.constant 116 : index
    %699 = memref.load %arg3[%c116_467] : memref<128xf32, #tpu.memory_space<smem>>
    %700 = vector.broadcast %699 : f32 to vector<2x16x16xf32>
    %701 = arith.mulf %698, %700 : vector<2x16x16xf32>
    %702 = arith.addf %696, %701 : vector<2x16x16xf32>
    %c0_468 = arith.constant 0 : index
    %c117 = arith.constant 117 : index
    %c0_469 = arith.constant 0 : index
    %c0_470 = arith.constant 0 : index
    %703 = vector.load %arg2[%c0_468, %c117, %c0_469, %c0_470] : memref<2x128x16x16xf32, #tpu.memory_space<vmem>>, vector<2x1x16x16xf32>
    %704 = vector.shape_cast %703 : vector<2x1x16x16xf32> to vector<2x16x16xf32>
    %c117_471 = arith.constant 117 : index
    %705 = memref.load %arg3[%c117_471] : memref<128xf32, #tpu.memory_space<smem>>
    %706 = vector.broadcast %705 : f32 to vector<2x16x16xf32>
    %707 = arith.mulf %704, %706 : vector<2x16x16xf32>
    %708 = arith.addf %702, %707 : vector<2x16x16xf32>
    %c0_472 = arith.constant 0 : index
    %c118 = arith.constant 118 : index
    %c0_473 = arith.constant 0 : index
    %c0_474 = arith.constant 0 : index
    %709 = vector.load %arg2[%c0_472, %c118, %c0_473, %c0_474] : memref<2x128x16x16xf32, #tpu.memory_space<vmem>>, vector<2x1x16x16xf32>
    %710 = vector.shape_cast %709 : vector<2x1x16x16xf32> to vector<2x16x16xf32>
    %c118_475 = arith.constant 118 : index
    %711 = memref.load %arg3[%c118_475] : memref<128xf32, #tpu.memory_space<smem>>
    %712 = vector.broadcast %711 : f32 to vector<2x16x16xf32>
    %713 = arith.mulf %710, %712 : vector<2x16x16xf32>
    %714 = arith.addf %708, %713 : vector<2x16x16xf32>
    %c0_476 = arith.constant 0 : index
    %c119 = arith.constant 119 : index
    %c0_477 = arith.constant 0 : index
    %c0_478 = arith.constant 0 : index
    %715 = vector.load %arg2[%c0_476, %c119, %c0_477, %c0_478] : memref<2x128x16x16xf32, #tpu.memory_space<vmem>>, vector<2x1x16x16xf32>
    %716 = vector.shape_cast %715 : vector<2x1x16x16xf32> to vector<2x16x16xf32>
    %c119_479 = arith.constant 119 : index
    %717 = memref.load %arg3[%c119_479] : memref<128xf32, #tpu.memory_space<smem>>
    %718 = vector.broadcast %717 : f32 to vector<2x16x16xf32>
    %719 = arith.mulf %716, %718 : vector<2x16x16xf32>
    %720 = arith.addf %714, %719 : vector<2x16x16xf32>
    %c0_480 = arith.constant 0 : index
    %c120 = arith.constant 120 : index
    %c0_481 = arith.constant 0 : index
    %c0_482 = arith.constant 0 : index
    %721 = vector.load %arg2[%c0_480, %c120, %c0_481, %c0_482] : memref<2x128x16x16xf32, #tpu.memory_space<vmem>>, vector<2x1x16x16xf32>
    %722 = vector.shape_cast %721 : vector<2x1x16x16xf32> to vector<2x16x16xf32>
    %c120_483 = arith.constant 120 : index
    %723 = memref.load %arg3[%c120_483] : memref<128xf32, #tpu.memory_space<smem>>
    %724 = vector.broadcast %723 : f32 to vector<2x16x16xf32>
    %725 = arith.mulf %722, %724 : vector<2x16x16xf32>
    %726 = arith.addf %720, %725 : vector<2x16x16xf32>
    %c0_484 = arith.constant 0 : index
    %c121 = arith.constant 121 : index
    %c0_485 = arith.constant 0 : index
    %c0_486 = arith.constant 0 : index
    %727 = vector.load %arg2[%c0_484, %c121, %c0_485, %c0_486] : memref<2x128x16x16xf32, #tpu.memory_space<vmem>>, vector<2x1x16x16xf32>
    %728 = vector.shape_cast %727 : vector<2x1x16x16xf32> to vector<2x16x16xf32>
    %c121_487 = arith.constant 121 : index
    %729 = memref.load %arg3[%c121_487] : memref<128xf32, #tpu.memory_space<smem>>
    %730 = vector.broadcast %729 : f32 to vector<2x16x16xf32>
    %731 = arith.mulf %728, %730 : vector<2x16x16xf32>
    %732 = arith.addf %726, %731 : vector<2x16x16xf32>
    %c0_488 = arith.constant 0 : index
    %c122 = arith.constant 122 : index
    %c0_489 = arith.constant 0 : index
    %c0_490 = arith.constant 0 : index
    %733 = vector.load %arg2[%c0_488, %c122, %c0_489, %c0_490] : memref<2x128x16x16xf32, #tpu.memory_space<vmem>>, vector<2x1x16x16xf32>
    %734 = vector.shape_cast %733 : vector<2x1x16x16xf32> to vector<2x16x16xf32>
    %c122_491 = arith.constant 122 : index
    %735 = memref.load %arg3[%c122_491] : memref<128xf32, #tpu.memory_space<smem>>
    %736 = vector.broadcast %735 : f32 to vector<2x16x16xf32>
    %737 = arith.mulf %734, %736 : vector<2x16x16xf32>
    %738 = arith.addf %732, %737 : vector<2x16x16xf32>
    %c0_492 = arith.constant 0 : index
    %c123 = arith.constant 123 : index
    %c0_493 = arith.constant 0 : index
    %c0_494 = arith.constant 0 : index
    %739 = vector.load %arg2[%c0_492, %c123, %c0_493, %c0_494] : memref<2x128x16x16xf32, #tpu.memory_space<vmem>>, vector<2x1x16x16xf32>
    %740 = vector.shape_cast %739 : vector<2x1x16x16xf32> to vector<2x16x16xf32>
    %c123_495 = arith.constant 123 : index
    %741 = memref.load %arg3[%c123_495] : memref<128xf32, #tpu.memory_space<smem>>
    %742 = vector.broadcast %741 : f32 to vector<2x16x16xf32>
    %743 = arith.mulf %740, %742 : vector<2x16x16xf32>
    %744 = arith.addf %738, %743 : vector<2x16x16xf32>
    %c0_496 = arith.constant 0 : index
    %c124 = arith.constant 124 : index
    %c0_497 = arith.constant 0 : index
    %c0_498 = arith.constant 0 : index
    %745 = vector.load %arg2[%c0_496, %c124, %c0_497, %c0_498] : memref<2x128x16x16xf32, #tpu.memory_space<vmem>>, vector<2x1x16x16xf32>
    %746 = vector.shape_cast %745 : vector<2x1x16x16xf32> to vector<2x16x16xf32>
    %c124_499 = arith.constant 124 : index
    %747 = memref.load %arg3[%c124_499] : memref<128xf32, #tpu.memory_space<smem>>
    %748 = vector.broadcast %747 : f32 to vector<2x16x16xf32>
    %749 = arith.mulf %746, %748 : vector<2x16x16xf32>
    %750 = arith.addf %744, %749 : vector<2x16x16xf32>
    %c0_500 = arith.constant 0 : index
    %c125 = arith.constant 125 : index
    %c0_501 = arith.constant 0 : index
    %c0_502 = arith.constant 0 : index
    %751 = vector.load %arg2[%c0_500, %c125, %c0_501, %c0_502] : memref<2x128x16x16xf32, #tpu.memory_space<vmem>>, vector<2x1x16x16xf32>
    %752 = vector.shape_cast %751 : vector<2x1x16x16xf32> to vector<2x16x16xf32>
    %c125_503 = arith.constant 125 : index
    %753 = memref.load %arg3[%c125_503] : memref<128xf32, #tpu.memory_space<smem>>
    %754 = vector.broadcast %753 : f32 to vector<2x16x16xf32>
    %755 = arith.mulf %752, %754 : vector<2x16x16xf32>
    %756 = arith.addf %750, %755 : vector<2x16x16xf32>
    %c0_504 = arith.constant 0 : index
    %c126 = arith.constant 126 : index
    %c0_505 = arith.constant 0 : index
    %c0_506 = arith.constant 0 : index
    %757 = vector.load %arg2[%c0_504, %c126, %c0_505, %c0_506] : memref<2x128x16x16xf32, #tpu.memory_space<vmem>>, vector<2x1x16x16xf32>
    %758 = vector.shape_cast %757 : vector<2x1x16x16xf32> to vector<2x16x16xf32>
    %c126_507 = arith.constant 126 : index
    %759 = memref.load %arg3[%c126_507] : memref<128xf32, #tpu.memory_space<smem>>
    %760 = vector.broadcast %759 : f32 to vector<2x16x16xf32>
    %761 = arith.mulf %758, %760 : vector<2x16x16xf32>
    %762 = arith.addf %756, %761 : vector<2x16x16xf32>
    %c0_508 = arith.constant 0 : index
    %c127 = arith.constant 127 : index
    %c0_509 = arith.constant 0 : index
    %c0_510 = arith.constant 0 : index
    %763 = vector.load %arg2[%c0_508, %c127, %c0_509, %c0_510] : memref<2x128x16x16xf32, #tpu.memory_space<vmem>>, vector<2x1x16x16xf32>
    %764 = vector.shape_cast %763 : vector<2x1x16x16xf32> to vector<2x16x16xf32>
    %c127_511 = arith.constant 127 : index
    %765 = memref.load %arg3[%c127_511] : memref<128xf32, #tpu.memory_space<smem>>
    %766 = vector.broadcast %765 : f32 to vector<2x16x16xf32>
    %767 = arith.mulf %764, %766 : vector<2x16x16xf32>
    %768 = arith.addf %762, %767 : vector<2x16x16xf32>
    %769 = vector.shape_cast %768 : vector<2x16x16xf32> to vector<2x8x2x16xf32>
    %cst_512 = arith.constant dense<0xFF800000> : vector<2x8x16xf32>
    %770 = vector.multi_reduction <maximumf>, %769, %cst_512 [2] : vector<2x8x2x16xf32> to vector<2x8x16xf32>
    %771 = vector.shape_cast %770 : vector<2x8x16xf32> to vector<2x8x8x2xf32>
    %cst_513 = arith.constant dense<0xFF800000> : vector<2x8x8xf32>
    %772 = vector.multi_reduction <maximumf>, %771, %cst_513 [3] : vector<2x8x8x2xf32> to vector<2x8x8xf32>
    %c0_514 = arith.constant 0 : index
    %773 = memref.load %arg4[%c0_514] : memref<1xf32, #tpu.memory_space<smem>>
    %774 = vector.broadcast %773 : f32 to vector<2x8x8xf32>
    %775 = arith.addf %772, %774 : vector<2x8x8xf32>
    %776 = arith.negf %775 : vector<2x8x8xf32>
    %777 = math.exp %776 : vector<2x8x8xf32>
    %cst_515 = arith.constant 1.000000e+00 : f32
    %778 = vector.broadcast %cst_515 : f32 to vector<2x8x8xf32>
    %779 = arith.addf %778, %777 : vector<2x8x8xf32>
    %780 = arith.divf %778, %779 : vector<2x8x8xf32>
    %c0_516 = arith.constant 0 : index
    %c0_517 = arith.constant 0 : index
    %c0_518 = arith.constant 0 : index
    %781 = vector.load %arg5[%c0_516, %c0_517, %c0_518] : memref<2x8x8xf32, #tpu.memory_space<vmem>>, vector<2x8x8xf32>
    tpu.vector_store %arg5[%c0_516, %c0_517, %c0_518], %780 {strides = array<i32>} : memref<2x8x8xf32, #tpu.memory_space<vmem>>, vector<2x8x8xf32>,
    return
  }
  func.func @transform_0(%arg0: i32, %arg1: i32) -> (i32, i32, i32, i32) {
    %c0_i32 = arith.constant 0 : i32
    %c0_i32_0 = arith.constant 0 : i32
    %c0_i32_1 = arith.constant 0 : i32
    return %arg0, %c0_i32, %arg1, %c0_i32_0 : i32, i32, i32, i32
  }
  func.func @transform_1(%arg0: i32, %arg1: i32) -> i32 {
    %c0_i32 = arith.constant 0 : i32
    %c0_i32_0 = arith.constant 0 : i32
    return %c0_i32 : i32
  }
  func.func @transform_2(%arg0: i32, %arg1: i32) -> i32 {
    %c0_i32 = arith.constant 0 : i32
    %c0_i32_0 = arith.constant 0 : i32
    return %c0_i32 : i32
  }
  func.func @transform_3(%arg0: i32, %arg1: i32) -> (i32, i32, i32) {
    %c0_i32 = arith.constant 0 : i32
    %c0_i32_0 = arith.constant 0 : i32
    return %arg0, %arg1, %c0_i32 : i32, i32, i32
  }
}

</mosaic_0001>

<llo_original>
// kernel: pixel_attention.1
$region0: #{pixel_attention.1}
  #allocation0 [shape = 'u32[]', space=smem, size = 0x4, offset = 0x4, fixed_abs, tag = 'smem constant byte address 0x4 - core index']
  #allocation1 [shape = 'u32[72,128]{1,0:T(1,128)}', space=vmem, size = 0x9000, scoped, tag = 'internal scratch']
  #allocation2 [shape = 'f32[1]{0:T(128)S(6)}', space=smem, size = 0x200, scoped, tag = 'scoped memory for pixel_attention.1']
  %s0 = inlined_call_operand.vmem [shape: f32[2,128,16,16], index: 0, kind: input, shape index: {}]
  %s1 = inlined_call_operand.vmem [shape: f32[128], index: 1, kind: input, shape index: {}]
  %s2 = inlined_call_operand.<no memory space> [shape: f32[1], index: 2, kind: input, shape index: {}]
  %s3 = inlined_call_operand.hbm [shape: f32[2,8,8], index: 3, kind: output, shape index: {}]
  %s4 = sld [smem:[#allocation0]]
  $region26: #{pixel_attention.1} parent=0
    _
  %s6 = ssub.s32 1, %s4
  %s7 = scalar_select 0, %s6, %s4
  %8 = sst [smem:[#allocation2]] %s2
  $region1: #{pixel_attention.1} parent=0
    #allocation3 [shape = 'u8[512]{0}', space=smem, size = 0x200, scoped, tag = 'input window, operand 1, single buffered']
    #allocation4 [shape = 's32[1]{0}', space=sflag, size = 0x4, scoped, tag = 'scoped memory for pixel_attention.1']
    #allocation5 [shape = 's32[1]{0}', space=sflag, size = 0x4, scoped, tag = 'scoped memory for pixel_attention.1']
    #allocation6 [shape = 'u8[8192]{0}', space=vmem, size = 0x2000, scoped, tag = 'output window, operand 0, single buffered']
    %9 = vsyncpa [#allocation5], 0
    %10 = vsyncpa [#allocation4], 0
    // Predicated region
    $region2: #{pixel_attention.1} parent=1 // pred_check
      _
    $region3: #{pixel_attention.1} parent=1 // pred_check_branch
      %12 = sbr.rel (0) target = $region5
    $region4: #{pixel_attention.1} parent=1 // pred_region
      _
    $region5: #{pixel_attention.1} parent=1 // pred_fallthru
      _
    // Predicated region
    $region6: #{pixel_attention.1} parent=1 // pred_check
      _
    $region7: #{pixel_attention.1} parent=1 // pred_check_branch
      %14 = sbr.rel (0) target = $region9
    $region8: #{pixel_attention.1} parent=1 // pred_region
      %16 = vsyncadd [#allocation5], 0
      %s18 = sshll.u32 %s1, 4
      %s19 = int_to_ptr.vmem [resolvable:$true] %s18
      %21 = dma.vmem_to_smem %s19, 16, [#allocation3], [#allocation5]
    $region9: #{pixel_attention.1} parent=1 // pred_fallthru
      _
    // Predicated region
    $region10: #{pixel_attention.1} parent=1 // pred_check
      _
    $region11: #{pixel_attention.1} parent=1 // pred_check_branch
      %23 = sbr.rel (0) target = $region13
    $region12: #{pixel_attention.1} parent=1 // pred_region
      _
    $region13: #{pixel_attention.1} parent=1 // pred_fallthru
      _
    // Predicated region
    $region14: #{pixel_attention.1} parent=1 // pred_check
      _
    $region15: #{pixel_attention.1} parent=1 // pred_check_branch
      %25 = sbr.rel (0) target = $region17
    $region16: #{pixel_attention.1} parent=1 // pred_region
      %27 = dma.done [#allocation5], 16
    $region17: #{pixel_attention.1} parent=1 // pred_fallthru
      _
    %28 = sfence
    %v29 = vld [vmem:[%s0] sm:$0xff]
    %v30 = vld [vmem:[%s0 + $0x8] sm:$0xff]
    %v31 = vld [vmem:[%s0 + $0x800] sm:$0xff]
    %v32 = vld [vmem:[%s0 + $0x808] sm:$0xff]
    %s33 = sld [smem:[#allocation3]]
    %v34 = vstv %s33
    %v35 = vmul.f32 %v29, %v34
    %v36 = vmul.f32 %v30, %v34
    %v37 = vmul.f32 %v31, %v34
    %v38 = vmul.f32 %v32, %v34
    %v39 = vadd.f32 %v35, 0.0
    %v40 = vadd.f32 %v36, 0.0
    %v41 = vadd.f32 %v37, 0.0
    %v42 = vadd.f32 %v38, 0.0
    %s43 = scalar_lea.vmem %s0, 16
    %v44 = vld [vmem:[%s43] sm:$0xff]
    %v45 = vld [vmem:[%s43 + $0x8] sm:$0xff]
    %v46 = vld [vmem:[%s43 + $0x800] sm:$0xff]
    %v47 = vld [vmem:[%s43 + $0x808] sm:$0xff]
    %s48 = sld [smem:[#allocation3 + $0x1]]
    %v49 = vstv %s48
    %v50 = vmul.f32 %v44, %v49
    %v51 = vmul.f32 %v45, %v49
    %v52 = vmul.f32 %v46, %v49
    %v53 = vmul.f32 %v47, %v49
    %v54 = vadd.f32 %v39, %v50
    %v55 = vadd.f32 %v40, %v51
    %v56 = vadd.f32 %v41, %v52
    %v57 = vadd.f32 %v42, %v53
    %s58 = scalar_lea.vmem %s0, 32
    %v59 = vld [vmem:[%s58] sm:$0xff]
    %v60 = vld [vmem:[%s58 + $0x8] sm:$0xff]
    %v61 = vld [vmem:[%s58 + $0x800] sm:$0xff]
    %v62 = vld [vmem:[%s58 + $0x808] sm:$0xff]
    %s63 = sld [smem:[#allocation3 + $0x2]]
    %v64 = vstv %s63
    %v65 = vmul.f32 %v59, %v64
    %v66 = vmul.f32 %v60, %v64
    %v67 = vmul.f32 %v61, %v64
    %v68 = vmul.f32 %v62, %v64
    %v69 = vadd.f32 %v54, %v65
    %v70 = vadd.f32 %v55, %v66
    %v71 = vadd.f32 %v56, %v67
    %v72 = vadd.f32 %v57, %v68
    %s73 = scalar_lea.vmem %s0, 48
    %v74 = vld [vmem:[%s73] sm:$0xff]
    %v75 = vld [vmem:[%s73 + $0x8] sm:$0xff]
    %v76 = vld [vmem:[%s73 + $0x800] sm:$0xff]
    %v77 = vld [vmem:[%s73 + $0x808] sm:$0xff]
    %s78 = sld [smem:[#allocation3 + $0x3]]
    %v79 = vstv %s78
    %v80 = vmul.f32 %v74, %v79
    %v81 = vmul.f32 %v75, %v79
    %v82 = vmul.f32 %v76, %v79
    %v83 = vmul.f32 %v77, %v79
    %v84 = vadd.f32 %v69, %v80
    %v85 = vadd.f32 %v70, %v81
    %v86 = vadd.f32 %v71, %v82
    %v87 = vadd.f32 %v72, %v83
    %s88 = scalar_lea.vmem %s0, 64
    %v89 = vld [vmem:[%s88] sm:$0xff]
    %v90 = vld [vmem:[%s88 + $0x8] sm:$0xff]
    %v91 = vld [vmem:[%s88 + $0x800] sm:$0xff]
    %v92 = vld [vmem:[%s88 + $0x808] sm:$0xff]
    %s93 = sld [smem:[#allocation3 + $0x4]]
    %v94 = vstv %s93
    %v95 = vmul.f32 %v89, %v94
    %v96 = vmul.f32 %v90, %v94
    %v97 = vmul.f32 %v91, %v94
    %v98 = vmul.f32 %v92, %v94
    %v99 = vadd.f32 %v84, %v95
    %v100 = vadd.f32 %v85, %v96
    %v101 = vadd.f32 %v86, %v97
    %v102 = vadd.f32 %v87, %v98
    %s103 = scalar_lea.vmem %s0, 80
    %v104 = vld [vmem:[%s103] sm:$0xff]
    %v105 = vld [vmem:[%s103 + $0x8] sm:$0xff]
    %v106 = vld [vmem:[%s103 + $0x800] sm:$0xff]
    %v107 = vld [vmem:[%s103 + $0x808] sm:$0xff]
    %s108 = sld [smem:[#allocation3 + $0x5]]
    %v109 = vstv %s108
    %v110 = vmul.f32 %v104, %v109
    %v111 = vmul.f32 %v105, %v109
    %v112 = vmul.f32 %v106, %v109
    %v113 = vmul.f32 %v107, %v109
    %v114 = vadd.f32 %v99, %v110
    %v115 = vadd.f32 %v100, %v111
    %v116 = vadd.f32 %v101, %v112
    %v117 = vadd.f32 %v102, %v113
    %s118 = scalar_lea.vmem %s0, 96
    %v119 = vld [vmem:[%s118] sm:$0xff]
    %v120 = vld [vmem:[%s118 + $0x8] sm:$0xff]
    %v121 = vld [vmem:[%s118 + $0x800] sm:$0xff]
    %v122 = vld [vmem:[%s118 + $0x808] sm:$0xff]
    %s123 = sld [smem:[#allocation3 + $0x6]]
    %v124 = vstv %s123
    %v125 = vmul.f32 %v119, %v124
    %v126 = vmul.f32 %v120, %v124
    %v127 = vmul.f32 %v121, %v124
    %v128 = vmul.f32 %v122, %v124
    %v129 = vadd.f32 %v114, %v125
    %v130 = vadd.f32 %v115, %v126
    %v131 = vadd.f32 %v116, %v127
    %v132 = vadd.f32 %v117, %v128
    %s133 = scalar_lea.vmem %s0, 112
    %v134 = vld [vmem:[%s133] sm:$0xff]
    %v135 = vld [vmem:[%s133 + $0x8] sm:$0xff]
    %v136 = vld [vmem:[%s133 + $0x800] sm:$0xff]
    %v137 = vld [vmem:[%s133 + $0x808] sm:$0xff]
    %s138 = sld [smem:[#allocation3 + $0x7]]
    %v139 = vstv %s138
    %v140 = vmul.f32 %v134, %v139
    %v141 = vmul.f32 %v135, %v139
    %v142 = vmul.f32 %v136, %v139
    %v143 = vmul.f32 %v137, %v139
    %v144 = vadd.f32 %v129, %v140
    %v145 = vadd.f32 %v130, %v141
    %v146 = vadd.f32 %v131, %v142
    %v147 = vadd.f32 %v132, %v143
    %s148 = scalar_lea.vmem %s0, 128
    %v149 = vld [vmem:[%s148] sm:$0xff]
    %v150 = vld [vmem:[%s148 + $0x8] sm:$0xff]
    %v151 = vld [vmem:[%s148 + $0x800] sm:$0xff]
    %v152 = vld [vmem:[%s148 + $0x808] sm:$0xff]
    %s153 = sld [smem:[#allocation3 + $0x8]]
    %v154 = vstv %s153
    %v155 = vmul.f32 %v149, %v154
    %v156 = vmul.f32 %v150, %v154
    %v157 = vmul.f32 %v151, %v154
    %v158 = vmul.f32 %v152, %v154
    %v159 = vadd.f32 %v144, %v155
    %v160 = vadd.f32 %v145, %v156
    %v161 = vadd.f32 %v146, %v157
    %v162 = vadd.f32 %v147, %v158
    %s163 = scalar_lea.vmem %s0, 144
    %v164 = vld [vmem:[%s163] sm:$0xff]
    %v165 = vld [vmem:[%s163 + $0x8] sm:$0xff]
    %v166 = vld [vmem:[%s163 + $0x800] sm:$0xff]
    %v167 = vld [vmem:[%s163 + $0x808] sm:$0xff]
    %s168 = sld [smem:[#allocation3 + $0x9]]
    %v169 = vstv %s168
    %v170 = vmul.f32 %v164, %v169
    %v171 = vmul.f32 %v165, %v169
    %v172 = vmul.f32 %v166, %v169
    %v173 = vmul.f32 %v167, %v169
    %v174 = vadd.f32 %v159, %v170
    %v175 = vadd.f32 %v160, %v171
    %v176 = vadd.f32 %v161, %v172
    %v177 = vadd.f32 %v162, %v173
    %s178 = scalar_lea.vmem %s0, 160
    %v179 = vld [vmem:[%s178] sm:$0xff]
    %v180 = vld [vmem:[%s178 + $0x8] sm:$0xff]
    %v181 = vld [vmem:[%s178 + $0x800] sm:$0xff]
    %v182 = vld [vmem:[%s178 + $0x808] sm:$0xff]
    %s183 = sld [smem:[#allocation3 + $0xa]]
    %v184 = vstv %s183
    %v185 = vmul.f32 %v179, %v184
    %v186 = vmul.f32 %v180, %v184
    %v187 = vmul.f32 %v181, %v184
    %v188 = vmul.f32 %v182, %v184
    %v189 = vadd.f32 %v174, %v185
    %v190 = vadd.f32 %v175, %v186
    %v191 = vadd.f32 %v176, %v187
    %v192 = vadd.f32 %v177, %v188
    %s193 = scalar_lea.vmem %s0, 176
    %v194 = vld [vmem:[%s193] sm:$0xff]
    %v195 = vld [vmem:[%s193 + $0x8] sm:$0xff]
    %v196 = vld [vmem:[%s193 + $0x800] sm:$0xff]
    %v197 = vld [vmem:[%s193 + $0x808] sm:$0xff]
    %s198 = sld [smem:[#allocation3 + $0xb]]
    %v199 = vstv %s198
    %v200 = vmul.f32 %v194, %v199
    %v201 = vmul.f32 %v195, %v199
    %v202 = vmul.f32 %v196, %v199
    %v203 = vmul.f32 %v197, %v199
    %v204 = vadd.f32 %v189, %v200
    %v205 = vadd.f32 %v190, %v201
    %v206 = vadd.f32 %v191, %v202
    %v207 = vadd.f32 %v192, %v203
    %s208 = scalar_lea.vmem %s0, 192
    %v209 = vld [vmem:[%s208] sm:$0xff]
    %v210 = vld [vmem:[%s208 + $0x8] sm:$0xff]
    %v211 = vld [vmem:[%s208 + $0x800] sm:$0xff]
    %v212 = vld [vmem:[%s208 + $0x808] sm:$0xff]
    %s213 = sld [smem:[#allocation3 + $0xc]]
    %v214 = vstv %s213
    %v215 = vmul.f32 %v209, %v214
    %v216 = vmul.f32 %v210, %v214
    %v217 = vmul.f32 %v211, %v214
    %v218 = vmul.f32 %v212, %v214
    %v219 = vadd.f32 %v204, %v215
    %v220 = vadd.f32 %v205, %v216
    %v221 = vadd.f32 %v206, %v217
    %v222 = vadd.f32 %v207, %v218
    %s223 = scalar_lea.vmem %s0, 208
    %v224 = vld [vmem:[%s223] sm:$0xff]
    %v225 = vld [vmem:[%s223 + $0x8] sm:$0xff]
    %v226 = vld [vmem:[%s223 + $0x800] sm:$0xff]
    %v227 = vld [vmem:[%s223 + $0x808] sm:$0xff]
    %s228 = sld [smem:[#allocation3 + $0xd]]
    %v229 = vstv %s228
    %v230 = vmul.f32 %v224, %v229
    %v231 = vmul.f32 %v225, %v229
    %v232 = vmul.f32 %v226, %v229
    %v233 = vmul.f32 %v227, %v229
    %v234 = vadd.f32 %v219, %v230
    %v235 = vadd.f32 %v220, %v231
    %v236 = vadd.f32 %v221, %v232
    %v237 = vadd.f32 %v222, %v233
    %s238 = scalar_lea.vmem %s0, 224
    %v239 = vld [vmem:[%s238] sm:$0xff]
    %v240 = vld [vmem:[%s238 + $0x8] sm:$0xff]
    %v241 = vld [vmem:[%s238 + $0x800] sm:$0xff]
    %v242 = vld [vmem:[%s238 + $0x808] sm:$0xff]
    %s243 = sld [smem:[#allocation3 + $0xe]]
    %v244 = vstv %s243
    %v245 = vmul.f32 %v239, %v244
    %v246 = vmul.f32 %v240, %v244
    %v247 = vmul.f32 %v241, %v244
    %v248 = vmul.f32 %v242, %v244
    %v249 = vadd.f32 %v234, %v245
    %v250 = vadd.f32 %v235, %v246
    %v251 = vadd.f32 %v236, %v247
    %v252 = vadd.f32 %v237, %v248
    %s253 = scalar_lea.vmem %s0, 240
    %v254 = vld [vmem:[%s253] sm:$0xff]
    %v255 = vld [vmem:[%s253 + $0x8] sm:$0xff]
    %v256 = vld [vmem:[%s253 + $0x800] sm:$0xff]
    %v257 = vld [vmem:[%s253 + $0x808] sm:$0xff]
    %s258 = sld [smem:[#allocation3 + $0xf]]
    %v259 = vstv %s258
    %v260 = vmul.f32 %v254, %v259
    %v261 = vmul.f32 %v255, %v259
    %v262 = vmul.f32 %v256, %v259
    %v263 = vmul.f32 %v257, %v259
    %v264 = vadd.f32 %v249, %v260
    %v265 = vadd.f32 %v250, %v261
    %v266 = vadd.f32 %v251, %v262
    %v267 = vadd.f32 %v252, %v263
    %s268 = scalar_lea.vmem %s0, 256
    %v269 = vld [vmem:[%s268] sm:$0xff]
    %v270 = vld [vmem:[%s268 + $0x8] sm:$0xff]
    %v271 = vld [vmem:[%s268 + $0x800] sm:$0xff]
    %v272 = vld [vmem:[%s268 + $0x808] sm:$0xff]
    %s273 = sld [smem:[#allocation3 + $0x10]]
    %v274 = vstv %s273
    %v275 = vmul.f32 %v269, %v274
    %v276 = vmul.f32 %v270, %v274
    %v277 = vmul.f32 %v271, %v274
    %v278 = vmul.f32 %v272, %v274
    %v279 = vadd.f32 %v264, %v275
    %v280 = vadd.f32 %v265, %v276
    %v281 = vadd.f32 %v266, %v277
    %v282 = vadd.f32 %v267, %v278
    %s283 = scalar_lea.vmem %s0, 272
    %v284 = vld [vmem:[%s283] sm:$0xff]
    %v285 = vld [vmem:[%s283 + $0x8] sm:$0xff]
    %v286 = vld [vmem:[%s283 + $0x800] sm:$0xff]
    %v287 = vld [vmem:[%s283 + $0x808] sm:$0xff]
    %s288 = sld [smem:[#allocation3 + $0x11]]
    %v289 = vstv %s288
    %v290 = vmul.f32 %v284, %v289
    %v291 = vmul.f32 %v285, %v289
    %v292 = vmul.f32 %v286, %v289
    %v293 = vmul.f32 %v287, %v289
    %v294 = vadd.f32 %v279, %v290
    %v295 = vadd.f32 %v280, %v291
    %v296 = vadd.f32 %v281, %v292
    %v297 = vadd.f32 %v282, %v293
    %s298 = scalar_lea.vmem %s0, 288
    %v299 = vld [vmem:[%s298] sm:$0xff]
    %v300 = vld [vmem:[%s298 + $0x8] sm:$0xff]
    %v301 = vld [vmem:[%s298 + $0x800] sm:$0xff]
    %v302 = vld [vmem:[%s298 + $0x808] sm:$0xff]
    %s303 = sld [smem:[#allocation3 + $0x12]]
    %v304 = vstv %s303
    %v305 = vmul.f32 %v299, %v304
    %v306 = vmul.f32 %v300, %v304
    %v307 = vmul.f32 %v301, %v304
    %v308 = vmul.f32 %v302, %v304
    %v309 = vadd.f32 %v294, %v305
    %v310 = vadd.f32 %v295, %v306
    %v311 = vadd.f32 %v296, %v307
    %v312 = vadd.f32 %v297, %v308
    %s313 = scalar_lea.vmem %s0, 304
    %v314 = vld [vmem:[%s313] sm:$0xff]
    %v315 = vld [vmem:[%s313 + $0x8] sm:$0xff]
    %v316 = vld [vmem:[%s313 + $0x800] sm:$0xff]
    %v317 = vld [vmem:[%s313 + $0x808] sm:$0xff]
    %s318 = sld [smem:[#allocation3 + $0x13]]
    %v319 = vstv %s318
    %v320 = vmul.f32 %v314, %v319
    %v321 = vmul.f32 %v315, %v319
    %v322 = vmul.f32 %v316, %v319
    %v323 = vmul.f32 %v317, %v319
    %v324 = vadd.f32 %v309, %v320
    %v325 = vadd.f32 %v310, %v321
    %v326 = vadd.f32 %v311, %v322
    %v327 = vadd.f32 %v312, %v323
    %s328 = scalar_lea.vmem %s0, 320
    %v329 = vld [vmem:[%s328] sm:$0xff]
    %v330 = vld [vmem:[%s328 + $0x8] sm:$0xff]
    %v331 = vld [vmem:[%s328 + $0x800] sm:$0xff]
    %v332 = vld [vmem:[%s328 + $0x808] sm:$0xff]
    %s333 = sld [smem:[#allocation3 + $0x14]]
    %v334 = vstv %s333
    %v335 = vmul.f32 %v329, %v334
    %v336 = vmul.f32 %v330, %v334
    %v337 = vmul.f32 %v331, %v334
    %v338 = vmul.f32 %v332, %v334
    %v339 = vadd.f32 %v324, %v335
    %v340 = vadd.f32 %v325, %v336
    %v341 = vadd.f32 %v326, %v337
    %v342 = vadd.f32 %v327, %v338
    %s343 = scalar_lea.vmem %s0, 336
    %v344 = vld [vmem:[%s343] sm:$0xff]
    %v345 = vld [vmem:[%s343 + $0x8] sm:$0xff]
    %v346 = vld [vmem:[%s343 + $0x800] sm:$0xff]
    %v347 = vld [vmem:[%s343 + $0x808] sm:$0xff]
    %s348 = sld [smem:[#allocation3 + $0x15]]
    %v349 = vstv %s348
    %v350 = vmul.f32 %v344, %v349
    %v351 = vmul.f32 %v345, %v349
    %v352 = vmul.f32 %v346, %v349
    %v353 = vmul.f32 %v347, %v349
    %v354 = vadd.f32 %v339, %v350
    %v355 = vadd.f32 %v340, %v351
    %v356 = vadd.f32 %v341, %v352
    %v357 = vadd.f32 %v342, %v353
    %s358 = scalar_lea.vmem %s0, 352
    %v359 = vld [vmem:[%s358] sm:$0xff]
    %v360 = vld [vmem:[%s358 + $0x8] sm:$0xff]
    %v361 = vld [vmem:[%s358 + $0x800] sm:$0xff]
    %v362 = vld [vmem:[%s358 + $0x808] sm:$0xff]
    %s363 = sld [smem:[#allocation3 + $0x16]]
    %v364 = vstv %s363
    %v365 = vmul.f32 %v359, %v364
    %v366 = vmul.f32 %v360, %v364
    %v367 = vmul.f32 %v361, %v364
    %v368 = vmul.f32 %v362, %v364
    %v369 = vadd.f32 %v354, %v365
    %v370 = vadd.f32 %v355, %v366
    %v371 = vadd.f32 %v356, %v367
    %v372 = vadd.f32 %v357, %v368
    %s373 = scalar_lea.vmem %s0, 368
    %v374 = vld [vmem:[%s373] sm:$0xff]
    %v375 = vld [vmem:[%s373 + $0x8] sm:$0xff]
    %v376 = vld [vmem:[%s373 + $0x800] sm:$0xff]
    %v377 = vld [vmem:[%s373 + $0x808] sm:$0xff]
    %s378 = sld [smem:[#allocation3 + $0x17]]
    %v379 = vstv %s378
    %v380 = vmul.f32 %v374, %v379
    %v381 = vmul.f32 %v375, %v379
    %v382 = vmul.f32 %v376, %v379
    %v383 = vmul.f32 %v377, %v379
    %v384 = vadd.f32 %v369, %v380
    %v385 = vadd.f32 %v370, %v381
    %v386 = vadd.f32 %v371, %v382
    %v387 = vadd.f32 %v372, %v383
    %s388 = scalar_lea.vmem %s0, 384
    %v389 = vld [vmem:[%s388] sm:$0xff]
    %v390 = vld [vmem:[%s388 + $0x8] sm:$0xff]
    %v391 = vld [vmem:[%s388 + $0x800] sm:$0xff]
    %v392 = vld [vmem:[%s388 + $0x808] sm:$0xff]
    %s393 = sld [smem:[#allocation3 + $0x18]]
    %v394 = vstv %s393
    %v395 = vmul.f32 %v389, %v394
    %v396 = vmul.f32 %v390, %v394
    %v397 = vmul.f32 %v391, %v394
    %v398 = vmul.f32 %v392, %v394
    %v399 = vadd.f32 %v384, %v395
    %v400 = vadd.f32 %v385, %v396
    %v401 = vadd.f32 %v386, %v397
    %v402 = vadd.f32 %v387, %v398
    %s403 = scalar_lea.vmem %s0, 400
    %v404 = vld [vmem:[%s403] sm:$0xff]
    %v405 = vld [vmem:[%s403 + $0x8] sm:$0xff]
    %v406 = vld [vmem:[%s403 + $0x800] sm:$0xff]
    %v407 = vld [vmem:[%s403 + $0x808] sm:$0xff]
    %s408 = sld [smem:[#allocation3 + $0x19]]
    %v409 = vstv %s408
    %v410 = vmul.f32 %v404, %v409
    %v411 = vmul.f32 %v405, %v409
    %v412 = vmul.f32 %v406, %v409
    %v413 = vmul.f32 %v407, %v409
    %v414 = vadd.f32 %v399, %v410
    %v415 = vadd.f32 %v400, %v411
    %v416 = vadd.f32 %v401, %v412
    %v417 = vadd.f32 %v402, %v413
    %s418 = scalar_lea.vmem %s0, 416
    %v419 = vld [vmem:[%s418] sm:$0xff]
    %v420 = vld [vmem:[%s418 + $0x8] sm:$0xff]
    %v421 = vld [vmem:[%s418 + $0x800] sm:$0xff]
    %v422 = vld [vmem:[%s418 + $0x808] sm:$0xff]
    %s423 = sld [smem:[#allocation3 + $0x1a]]
    %v424 = vstv %s423
    %v425 = vmul.f32 %v419, %v424
    %v426 = vmul.f32 %v420, %v424
    %v427 = vmul.f32 %v421, %v424
    %v428 = vmul.f32 %v422, %v424
    %v429 = vadd.f32 %v414, %v425
    %v430 = vadd.f32 %v415, %v426
    %v431 = vadd.f32 %v416, %v427
    %v432 = vadd.f32 %v417, %v428
    %s433 = scalar_lea.vmem %s0, 432
    %v434 = vld [vmem:[%s433] sm:$0xff]
    %v435 = vld [vmem:[%s433 + $0x8] sm:$0xff]
    %v436 = vld [vmem:[%s433 + $0x800] sm:$0xff]
    %v437 = vld [vmem:[%s433 + $0x808] sm:$0xff]
    %s438 = sld [smem:[#allocation3 + $0x1b]]
    %v439 = vstv %s438
    %v440 = vmul.f32 %v434, %v439
    %v441 = vmul.f32 %v435, %v439
    %v442 = vmul.f32 %v436, %v439
    %v443 = vmul.f32 %v437, %v439
    %v444 = vadd.f32 %v429, %v440
    %v445 = vadd.f32 %v430, %v441
    %v446 = vadd.f32 %v431, %v442
    %v447 = vadd.f32 %v432, %v443
    %s448 = scalar_lea.vmem %s0, 448
    %v449 = vld [vmem:[%s448] sm:$0xff]
    %v450 = vld [vmem:[%s448 + $0x8] sm:$0xff]
    %v451 = vld [vmem:[%s448 + $0x800] sm:$0xff]
    %v452 = vld [vmem:[%s448 + $0x808] sm:$0xff]
    %s453 = sld [smem:[#allocation3 + $0x1c]]
    %v454 = vstv %s453
    %v455 = vmul.f32 %v449, %v454
    %v456 = vmul.f32 %v450, %v454
    %v457 = vmul.f32 %v451, %v454
    %v458 = vmul.f32 %v452, %v454
    %v459 = vadd.f32 %v444, %v455
    %v460 = vadd.f32 %v445, %v456
    %v461 = vadd.f32 %v446, %v457
    %v462 = vadd.f32 %v447, %v458
    %s463 = scalar_lea.vmem %s0, 464
    %v464 = vld [vmem:[%s463] sm:$0xff]
    %v465 = vld [vmem:[%s463 + $0x8] sm:$0xff]
    %v466 = vld [vmem:[%s463 + $0x800] sm:$0xff]
    %v467 = vld [vmem:[%s463 + $0x808] sm:$0xff]
    %s468 = sld [smem:[#allocation3 + $0x1d]]
    %v469 = vstv %s468
    %v470 = vmul.f32 %v464, %v469
    %v471 = vmul.f32 %v465, %v469
    %v472 = vmul.f32 %v466, %v469
    %v473 = vmul.f32 %v467, %v469
    %v474 = vadd.f32 %v459, %v470
    %v475 = vadd.f32 %v460, %v471
    %v476 = vadd.f32 %v461, %v472
    %v477 = vadd.f32 %v462, %v473
    %s478 = scalar_lea.vmem %s0, 480
    %v479 = vld [vmem:[%s478] sm:$0xff]
    %v480 = vld [vmem:[%s478 + $0x8] sm:$0xff]
    %v481 = vld [vmem:[%s478 + $0x800] sm:$0xff]
    %v482 = vld [vmem:[%s478 + $0x808] sm:$0xff]
    %s483 = sld [smem:[#allocation3 + $0x1e]]
    %v484 = vstv %s483
    %v485 = vmul.f32 %v479, %v484
    %v486 = vmul.f32 %v480, %v484
    %v487 = vmul.f32 %v481, %v484
    %v488 = vmul.f32 %v482, %v484
    %v489 = vadd.f32 %v474, %v485
    %v490 = vadd.f32 %v475, %v486
    %v491 = vadd.f32 %v476, %v487
    %v492 = vadd.f32 %v477, %v488
    %s493 = scalar_lea.vmem %s0, 496
    %v494 = vld [vmem:[%s493] sm:$0xff]
    %v495 = vld [vmem:[%s493 + $0x8] sm:$0xff]
    %v496 = vld [vmem:[%s493 + $0x800] sm:$0xff]
    %v497 = vld [vmem:[%s493 + $0x808] sm:$0xff]
    %s498 = sld [smem:[#allocation3 + $0x1f]]
    %v499 = vstv %s498
    %v500 = vmul.f32 %v494, %v499
    %v501 = vmul.f32 %v495, %v499
    %v502 = vmul.f32 %v496, %v499
    %v503 = vmul.f32 %v497, %v499
    %v504 = vadd.f32 %v489, %v500
    %v505 = vadd.f32 %v490, %v501
    %v506 = vadd.f32 %v491, %v502
    %v507 = vadd.f32 %v492, %v503
    %s508 = scalar_lea.vmem %s0, 512
    %v509 = vld [vmem:[%s508] sm:$0xff]
    %v510 = vld [vmem:[%s508 + $0x8] sm:$0xff]
    %v511 = vld [vmem:[%s508 + $0x800] sm:$0xff]
    %v512 = vld [vmem:[%s508 + $0x808] sm:$0xff]
    %s513 = sld [smem:[#allocation3 + $0x20]]
    %v514 = vstv %s513
    %v515 = vmul.f32 %v509, %v514
    %v516 = vmul.f32 %v510, %v514
    %v517 = vmul.f32 %v511, %v514
    %v518 = vmul.f32 %v512, %v514
    %v519 = vadd.f32 %v504, %v515
    %v520 = vadd.f32 %v505, %v516
    %v521 = vadd.f32 %v506, %v517
    %v522 = vadd.f32 %v507, %v518
    %s523 = scalar_lea.vmem %s0, 528
    %v524 = vld [vmem:[%s523] sm:$0xff]
    %v525 = vld [vmem:[%s523 + $0x8] sm:$0xff]
    %v526 = vld [vmem:[%s523 + $0x800] sm:$0xff]
    %v527 = vld [vmem:[%s523 + $0x808] sm:$0xff]
    %s528 = sld [smem:[#allocation3 + $0x21]]
    %v529 = vstv %s528
    %v530 = vmul.f32 %v524, %v529
    %v531 = vmul.f32 %v525, %v529
    %v532 = vmul.f32 %v526, %v529
    %v533 = vmul.f32 %v527, %v529
    %v534 = vadd.f32 %v519, %v530
    %v535 = vadd.f32 %v520, %v531
    %v536 = vadd.f32 %v521, %v532
    %v537 = vadd.f32 %v522, %v533
    %s538 = scalar_lea.vmem %s0, 544
    %v539 = vld [vmem:[%s538] sm:$0xff]
    %v540 = vld [vmem:[%s538 + $0x8] sm:$0xff]
    %v541 = vld [vmem:[%s538 + $0x800] sm:$0xff]
    %v542 = vld [vmem:[%s538 + $0x808] sm:$0xff]
    %s543 = sld [smem:[#allocation3 + $0x22]]
    %v544 = vstv %s543
    %v545 = vmul.f32 %v539, %v544
    %v546 = vmul.f32 %v540, %v544
    %v547 = vmul.f32 %v541, %v544
    %v548 = vmul.f32 %v542, %v544
    %v549 = vadd.f32 %v534, %v545
    %v550 = vadd.f32 %v535, %v546
    %v551 = vadd.f32 %v536, %v547
    %v552 = vadd.f32 %v537, %v548
    %s553 = scalar_lea.vmem %s0, 560
    %v554 = vld [vmem:[%s553] sm:$0xff]
    %v555 = vld [vmem:[%s553 + $0x8] sm:$0xff]
    %v556 = vld [vmem:[%s553 + $0x800] sm:$0xff]
    %v557 = vld [vmem:[%s553 + $0x808] sm:$0xff]
    %s558 = sld [smem:[#allocation3 + $0x23]]
    %v559 = vstv %s558
    %v560 = vmul.f32 %v554, %v559
    %v561 = vmul.f32 %v555, %v559
    %v562 = vmul.f32 %v556, %v559
    %v563 = vmul.f32 %v557, %v559
    %v564 = vadd.f32 %v549, %v560
    %v565 = vadd.f32 %v550, %v561
    %v566 = vadd.f32 %v551, %v562
    %v567 = vadd.f32 %v552, %v563
    %s568 = scalar_lea.vmem %s0, 576
    %v569 = vld [vmem:[%s568] sm:$0xff]
    %v570 = vld [vmem:[%s568 + $0x8] sm:$0xff]
    %v571 = vld [vmem:[%s568 + $0x800] sm:$0xff]
    %v572 = vld [vmem:[%s568 + $0x808] sm:$0xff]
    %s573 = sld [smem:[#allocation3 + $0x24]]
    %v574 = vstv %s573
    %v575 = vmul.f32 %v569, %v574
    %v576 = vmul.f32 %v570, %v574
    %v577 = vmul.f32 %v571, %v574
    %v578 = vmul.f32 %v572, %v574
    %v579 = vadd.f32 %v564, %v575
    %v580 = vadd.f32 %v565, %v576
    %v581 = vadd.f32 %v566, %v577
    %v582 = vadd.f32 %v567, %v578
    %s583 = scalar_lea.vmem %s0, 592
    %v584 = vld [vmem:[%s583] sm:$0xff]
    %v585 = vld [vmem:[%s583 + $0x8] sm:$0xff]
    %v586 = vld [vmem:[%s583 + $0x800] sm:$0xff]
    %v587 = vld [vmem:[%s583 + $0x808] sm:$0xff]
    %s588 = sld [smem:[#allocation3 + $0x25]]
    %v589 = vstv %s588
    %v590 = vmul.f32 %v584, %v589
    %v591 = vmul.f32 %v585, %v589
    %v592 = vmul.f32 %v586, %v589
    %v593 = vmul.f32 %v587, %v589
    %v594 = vadd.f32 %v579, %v590
    %v595 = vadd.f32 %v580, %v591
    %v596 = vadd.f32 %v581, %v592
    %v597 = vadd.f32 %v582, %v593
    %s598 = scalar_lea.vmem %s0, 608
    %v599 = vld [vmem:[%s598] sm:$0xff]
    %v600 = vld [vmem:[%s598 + $0x8] sm:$0xff]
    %v601 = vld [vmem:[%s598 + $0x800] sm:$0xff]
    %v602 = vld [vmem:[%s598 + $0x808] sm:$0xff]
    %s603 = sld [smem:[#allocation3 + $0x26]]
    %v604 = vstv %s603
    %v605 = vmul.f32 %v599, %v604
    %v606 = vmul.f32 %v600, %v604
    %v607 = vmul.f32 %v601, %v604
    %v608 = vmul.f32 %v602, %v604
    %v609 = vadd.f32 %v594, %v605
    %v610 = vadd.f32 %v595, %v606
    %v611 = vadd.f32 %v596, %v607
    %v612 = vadd.f32 %v597, %v608
    %s613 = scalar_lea.vmem %s0, 624
    %v614 = vld [vmem:[%s613] sm:$0xff]
    %v615 = vld [vmem:[%s613 + $0x8] sm:$0xff]
    %v616 = vld [vmem:[%s613 + $0x800] sm:$0xff]
    %v617 = vld [vmem:[%s613 + $0x808] sm:$0xff]
    %s618 = sld [smem:[#allocation3 + $0x27]]
    %v619 = vstv %s618
    %v620 = vmul.f32 %v614, %v619
    %v621 = vmul.f32 %v615, %v619
    %v622 = vmul.f32 %v616, %v619
    %v623 = vmul.f32 %v617, %v619
    %v624 = vadd.f32 %v609, %v620
    %v625 = vadd.f32 %v610, %v621
    %v626 = vadd.f32 %v611, %v622
    %v627 = vadd.f32 %v612, %v623
    %s628 = scalar_lea.vmem %s0, 640
    %v629 = vld [vmem:[%s628] sm:$0xff]
    %v630 = vld [vmem:[%s628 + $0x8] sm:$0xff]
    %v631 = vld [vmem:[%s628 + $0x800] sm:$0xff]
    %v632 = vld [vmem:[%s628 + $0x808] sm:$0xff]
    %s633 = sld [smem:[#allocation3 + $0x28]]
    %v634 = vstv %s633
    %v635 = vmul.f32 %v629, %v634
    %v636 = vmul.f32 %v630, %v634
    %v637 = vmul.f32 %v631, %v634
    %v638 = vmul.f32 %v632, %v634
    %v639 = vadd.f32 %v624, %v635
    %v640 = vadd.f32 %v625, %v636
    %v641 = vadd.f32 %v626, %v637
    %v642 = vadd.f32 %v627, %v638
    %s643 = scalar_lea.vmem %s0, 656
    %v644 = vld [vmem:[%s643] sm:$0xff]
    %v645 = vld [vmem:[%s643 + $0x8] sm:$0xff]
    %v646 = vld [vmem:[%s643 + $0x800] sm:$0xff]
    %v647 = vld [vmem:[%s643 + $0x808] sm:$0xff]
    %s648 = sld [smem:[#allocation3 + $0x29]]
    %v649 = vstv %s648
    %v650 = vmul.f32 %v644, %v649
    %v651 = vmul.f32 %v645, %v649
    %v652 = vmul.f32 %v646, %v649
    %v653 = vmul.f32 %v647, %v649
    %v654 = vadd.f32 %v639, %v650
    %v655 = vadd.f32 %v640, %v651
    %v656 = vadd.f32 %v641, %v652
    %v657 = vadd.f32 %v642, %v653
    %s658 = scalar_lea.vmem %s0, 672
    %v659 = vld [vmem:[%s658] sm:$0xff]
    %v660 = vld [vmem:[%s658 + $0x8] sm:$0xff]
    %v661 = vld [vmem:[%s658 + $0x800] sm:$0xff]
    %v662 = vld [vmem:[%s658 + $0x808] sm:$0xff]
    %s663 = sld [smem:[#allocation3 + $0x2a]]
    %v664 = vstv %s663
    %v665 = vmul.f32 %v659, %v664
    %v666 = vmul.f32 %v660, %v664
    %v667 = vmul.f32 %v661, %v664
    %v668 = vmul.f32 %v662, %v664
    %v669 = vadd.f32 %v654, %v665
    %v670 = vadd.f32 %v655, %v666
    %v671 = vadd.f32 %v656, %v667
    %v672 = vadd.f32 %v657, %v668
    %s673 = scalar_lea.vmem %s0, 688
    %v674 = vld [vmem:[%s673] sm:$0xff]
    %v675 = vld [vmem:[%s673 + $0x8] sm:$0xff]
    %v676 = vld [vmem:[%s673 + $0x800] sm:$0xff]
    %v677 = vld [vmem:[%s673 + $0x808] sm:$0xff]
    %s678 = sld [smem:[#allocation3 + $0x2b]]
    %v679 = vstv %s678
    %v680 = vmul.f32 %v674, %v679
    %v681 = vmul.f32 %v675, %v679
    %v682 = vmul.f32 %v676, %v679
    %v683 = vmul.f32 %v677, %v679
    %v684 = vadd.f32 %v669, %v680
    %v685 = vadd.f32 %v670, %v681
    %v686 = vadd.f32 %v671, %v682
    %v687 = vadd.f32 %v672, %v683
    %s688 = scalar_lea.vmem %s0, 704
    %v689 = vld [vmem:[%s688] sm:$0xff]
    %v690 = vld [vmem:[%s688 + $0x8] sm:$0xff]
    %v691 = vld [vmem:[%s688 + $0x800] sm:$0xff]
    %v692 = vld [vmem:[%s688 + $0x808] sm:$0xff]
    %s693 = sld [smem:[#allocation3 + $0x2c]]
    %v694 = vstv %s693
    %v695 = vmul.f32 %v689, %v694
    %v696 = vmul.f32 %v690, %v694
    %v697 = vmul.f32 %v691, %v694
    %v698 = vmul.f32 %v692, %v694
    %v699 = vadd.f32 %v684, %v695
    %v700 = vadd.f32 %v685, %v696
    %v701 = vadd.f32 %v686, %v697
    %v702 = vadd.f32 %v687, %v698
    %s703 = scalar_lea.vmem %s0, 720
    %v704 = vld [vmem:[%s703] sm:$0xff]
    %v705 = vld [vmem:[%s703 + $0x8] sm:$0xff]
    %v706 = vld [vmem:[%s703 + $0x800] sm:$0xff]
    %v707 = vld [vmem:[%s703 + $0x808] sm:$0xff]
    %s708 = sld [smem:[#allocation3 + $0x2d]]
    %v709 = vstv %s708
    %v710 = vmul.f32 %v704, %v709
    %v711 = vmul.f32 %v705, %v709
    %v712 = vmul.f32 %v706, %v709
    %v713 = vmul.f32 %v707, %v709
    %v714 = vadd.f32 %v699, %v710
    %v715 = vadd.f32 %v700, %v711
    %v716 = vadd.f32 %v701, %v712
    %v717 = vadd.f32 %v702, %v713
    %s718 = scalar_lea.vmem %s0, 736
    %v719 = vld [vmem:[%s718] sm:$0xff]
    %v720 = vld [vmem:[%s718 + $0x8] sm:$0xff]
    %v721 = vld [vmem:[%s718 + $0x800] sm:$0xff]
    %v722 = vld [vmem:[%s718 + $0x808] sm:$0xff]
    %s723 = sld [smem:[#allocation3 + $0x2e]]
    %v724 = vstv %s723
    %v725 = vmul.f32 %v719, %v724
    %v726 = vmul.f32 %v720, %v724
    %v727 = vmul.f32 %v721, %v724
    %v728 = vmul.f32 %v722, %v724
    %v729 = vadd.f32 %v714, %v725
    %v730 = vadd.f32 %v715, %v726
    %v731 = vadd.f32 %v716, %v727
    %v732 = vadd.f32 %v717, %v728
    %s733 = scalar_lea.vmem %s0, 752
    %v734 = vld [vmem:[%s733] sm:$0xff]
    %v735 = vld [vmem:[%s733 + $0x8] sm:$0xff]
    %v736 = vld [vmem:[%s733 + $0x800] sm:$0xff]
    %v737 = vld [vmem:[%s733 + $0x808] sm:$0xff]
    %s738 = sld [smem:[#allocation3 + $0x2f]]
    %v739 = vstv %s738
    %v740 = vmul.f32 %v734, %v739
    %v741 = vmul.f32 %v735, %v739
    %v742 = vmul.f32 %v736, %v739
    %v743 = vmul.f32 %v737, %v739
    %v744 = vadd.f32 %v729, %v740
    %v745 = vadd.f32 %v730, %v741
    %v746 = vadd.f32 %v731, %v742
    %v747 = vadd.f32 %v732, %v743
    %s748 = scalar_lea.vmem %s0, 768
    %v749 = vld [vmem:[%s748] sm:$0xff]
    %v750 = vld [vmem:[%s748 + $0x8] sm:$0xff]
    %v751 = vld [vmem:[%s748 + $0x800] sm:$0xff]
    %v752 = vld [vmem:[%s748 + $0x808] sm:$0xff]
    %s753 = sld [smem:[#allocation3 + $0x30]]
    %v754 = vstv %s753
    %v755 = vmul.f32 %v749, %v754
    %v756 = vmul.f32 %v750, %v754
    %v757 = vmul.f32 %v751, %v754
    %v758 = vmul.f32 %v752, %v754
    %v759 = vadd.f32 %v744, %v755
    %v760 = vadd.f32 %v745, %v756
    %v761 = vadd.f32 %v746, %v757
    %v762 = vadd.f32 %v747, %v758
    %s763 = scalar_lea.vmem %s0, 784
    %v764 = vld [vmem:[%s763] sm:$0xff]
    %v765 = vld [vmem:[%s763 + $0x8] sm:$0xff]
    %v766 = vld [vmem:[%s763 + $0x800] sm:$0xff]
    %v767 = vld [vmem:[%s763 + $0x808] sm:$0xff]
    %s768 = sld [smem:[#allocation3 + $0x31]]
    %v769 = vstv %s768
    %v770 = vmul.f32 %v764, %v769
    %v771 = vmul.f32 %v765, %v769
    %v772 = vmul.f32 %v766, %v769
    %v773 = vmul.f32 %v767, %v769
    %v774 = vadd.f32 %v759, %v770
    %v775 = vadd.f32 %v760, %v771
    %v776 = vadd.f32 %v761, %v772
    %v777 = vadd.f32 %v762, %v773
    %s778 = scalar_lea.vmem %s0, 800
    %v779 = vld [vmem:[%s778] sm:$0xff]
    %v780 = vld [vmem:[%s778 + $0x8] sm:$0xff]
    %v781 = vld [vmem:[%s778 + $0x800] sm:$0xff]
    %v782 = vld [vmem:[%s778 + $0x808] sm:$0xff]
    %s783 = sld [smem:[#allocation3 + $0x32]]
    %v784 = vstv %s783
    %v785 = vmul.f32 %v779, %v784
    %v786 = vmul.f32 %v780, %v784
    %v787 = vmul.f32 %v781, %v784
    %v788 = vmul.f32 %v782, %v784
    %v789 = vadd.f32 %v774, %v785
    %v790 = vadd.f32 %v775, %v786
    %v791 = vadd.f32 %v776, %v787
    %v792 = vadd.f32 %v777, %v788
    %s793 = scalar_lea.vmem %s0, 816
    %v794 = vld [vmem:[%s793] sm:$0xff]
    %v795 = vld [vmem:[%s793 + $0x8] sm:$0xff]
    %v796 = vld [vmem:[%s793 + $0x800] sm:$0xff]
    %v797 = vld [vmem:[%s793 + $0x808] sm:$0xff]
    %s798 = sld [smem:[#allocation3 + $0x33]]
    %v799 = vstv %s798
    %v800 = vmul.f32 %v794, %v799
    %v801 = vmul.f32 %v795, %v799
    %v802 = vmul.f32 %v796, %v799
    %v803 = vmul.f32 %v797, %v799
    %v804 = vadd.f32 %v789, %v800
    %v805 = vadd.f32 %v790, %v801
    %v806 = vadd.f32 %v791, %v802
    %v807 = vadd.f32 %v792, %v803
    %s808 = scalar_lea.vmem %s0, 832
    %v809 = vld [vmem:[%s808] sm:$0xff]
    %v810 = vld [vmem:[%s808 + $0x8] sm:$0xff]
    %v811 = vld [vmem:[%s808 + $0x800] sm:$0xff]
    %v812 = vld [vmem:[%s808 + $0x808] sm:$0xff]
    %s813 = sld [smem:[#allocation3 + $0x34]]
    %v814 = vstv %s813
    %v815 = vmul.f32 %v809, %v814
    %v816 = vmul.f32 %v810, %v814
    %v817 = vmul.f32 %v811, %v814
    %v818 = vmul.f32 %v812, %v814
    %v819 = vadd.f32 %v804, %v815
    %v820 = vadd.f32 %v805, %v816
    %v821 = vadd.f32 %v806, %v817
    %v822 = vadd.f32 %v807, %v818
    %s823 = scalar_lea.vmem %s0, 848
    %v824 = vld [vmem:[%s823] sm:$0xff]
    %v825 = vld [vmem:[%s823 + $0x8] sm:$0xff]
    %v826 = vld [vmem:[%s823 + $0x800] sm:$0xff]
    %v827 = vld [vmem:[%s823 + $0x808] sm:$0xff]
    %s828 = sld [smem:[#allocation3 + $0x35]]
    %v829 = vstv %s828
    %v830 = vmul.f32 %v824, %v829
    %v831 = vmul.f32 %v825, %v829
    %v832 = vmul.f32 %v826, %v829
    %v833 = vmul.f32 %v827, %v829
    %v834 = vadd.f32 %v819, %v830
    %v835 = vadd.f32 %v820, %v831
    %v836 = vadd.f32 %v821, %v832
    %v837 = vadd.f32 %v822, %v833
    %s838 = scalar_lea.vmem %s0, 864
    %v839 = vld [vmem:[%s838] sm:$0xff]
    %v840 = vld [vmem:[%s838 + $0x8] sm:$0xff]
    %v841 = vld [vmem:[%s838 + $0x800] sm:$0xff]
    %v842 = vld [vmem:[%s838 + $0x808] sm:$0xff]
    %s843 = sld [smem:[#allocation3 + $0x36]]
    %v844 = vstv %s843
    %v845 = vmul.f32 %v839, %v844
    %v846 = vmul.f32 %v840, %v844
    %v847 = vmul.f32 %v841, %v844
    %v848 = vmul.f32 %v842, %v844
    %v849 = vadd.f32 %v834, %v845
    %v850 = vadd.f32 %v835, %v846
    %v851 = vadd.f32 %v836, %v847
    %v852 = vadd.f32 %v837, %v848
    %s853 = scalar_lea.vmem %s0, 880
    %v854 = vld [vmem:[%s853] sm:$0xff]
    %v855 = vld [vmem:[%s853 + $0x8] sm:$0xff]
    %v856 = vld [vmem:[%s853 + $0x800] sm:$0xff]
    %v857 = vld [vmem:[%s853 + $0x808] sm:$0xff]
    %s858 = sld [smem:[#allocation3 + $0x37]]
    %v859 = vstv %s858
    %v860 = vmul.f32 %v854, %v859
    %v861 = vmul.f32 %v855, %v859
    %v862 = vmul.f32 %v856, %v859
    %v863 = vmul.f32 %v857, %v859
    %v864 = vadd.f32 %v849, %v860
    %v865 = vadd.f32 %v850, %v861
    %v866 = vadd.f32 %v851, %v862
    %v867 = vadd.f32 %v852, %v863
    %s868 = scalar_lea.vmem %s0, 896
    %v869 = vld [vmem:[%s868] sm:$0xff]
    %v870 = vld [vmem:[%s868 + $0x8] sm:$0xff]
    %v871 = vld [vmem:[%s868 + $0x800] sm:$0xff]
    %v872 = vld [vmem:[%s868 + $0x808] sm:$0xff]
    %s873 = sld [smem:[#allocation3 + $0x38]]
    %v874 = vstv %s873
    %v875 = vmul.f32 %v869, %v874
    %v876 = vmul.f32 %v870, %v874
    %v877 = vmul.f32 %v871, %v874
    %v878 = vmul.f32 %v872, %v874
    %v879 = vadd.f32 %v864, %v875
    %v880 = vadd.f32 %v865, %v876
    %v881 = vadd.f32 %v866, %v877
    %v882 = vadd.f32 %v867, %v878
    %s883 = scalar_lea.vmem %s0, 912
    %v884 = vld [vmem:[%s883] sm:$0xff]
    %v885 = vld [vmem:[%s883 + $0x8] sm:$0xff]
    %v886 = vld [vmem:[%s883 + $0x800] sm:$0xff]
    %v887 = vld [vmem:[%s883 + $0x808] sm:$0xff]
    %s888 = sld [smem:[#allocation3 + $0x39]]
    %v889 = vstv %s888
    %v890 = vmul.f32 %v884, %v889
    %v891 = vmul.f32 %v885, %v889
    %v892 = vmul.f32 %v886, %v889
    %v893 = vmul.f32 %v887, %v889
    %v894 = vadd.f32 %v879, %v890
    %v895 = vadd.f32 %v880, %v891
    %v896 = vadd.f32 %v881, %v892
    %v897 = vadd.f32 %v882, %v893
    %s898 = scalar_lea.vmem %s0, 928
    %v899 = vld [vmem:[%s898] sm:$0xff]
    %v900 = vld [vmem:[%s898 + $0x8] sm:$0xff]
    %v901 = vld [vmem:[%s898 + $0x800] sm:$0xff]
    %v902 = vld [vmem:[%s898 + $0x808] sm:$0xff]
    %s903 = sld [smem:[#allocation3 + $0x3a]]
    %v904 = vstv %s903
    %v905 = vmul.f32 %v899, %v904
    %v906 = vmul.f32 %v900, %v904
    %v907 = vmul.f32 %v901, %v904
    %v908 = vmul.f32 %v902, %v904
    %v909 = vadd.f32 %v894, %v905
    %v910 = vadd.f32 %v895, %v906
    %v911 = vadd.f32 %v896, %v907
    %v912 = vadd.f32 %v897, %v908
    %s913 = scalar_lea.vmem %s0, 944
    %v914 = vld [vmem:[%s913] sm:$0xff]
    %v915 = vld [vmem:[%s913 + $0x8] sm:$0xff]
    %v916 = vld [vmem:[%s913 + $0x800] sm:$0xff]
    %v917 = vld [vmem:[%s913 + $0x808] sm:$0xff]
    %s918 = sld [smem:[#allocation3 + $0x3b]]
    %v919 = vstv %s918
    %v920 = vmul.f32 %v914, %v919
    %v921 = vmul.f32 %v915, %v919
    %v922 = vmul.f32 %v916, %v919
    %v923 = vmul.f32 %v917, %v919
    %v924 = vadd.f32 %v909, %v920
    %v925 = vadd.f32 %v910, %v921
    %v926 = vadd.f32 %v911, %v922
    %v927 = vadd.f32 %v912, %v923
    %s928 = scalar_lea.vmem %s0, 960
    %v929 = vld [vmem:[%s928] sm:$0xff]
    %v930 = vld [vmem:[%s928 + $0x8] sm:$0xff]
    %v931 = vld [vmem:[%s928 + $0x800] sm:$0xff]
    %v932 = vld [vmem:[%s928 + $0x808] sm:$0xff]
    %s933 = sld [smem:[#allocation3 + $0x3c]]
    %v934 = vstv %s933
    %v935 = vmul.f32 %v929, %v934
    %v936 = vmul.f32 %v930, %v934
    %v937 = vmul.f32 %v931, %v934
    %v938 = vmul.f32 %v932, %v934
    %v939 = vadd.f32 %v924, %v935
    %v940 = vadd.f32 %v925, %v936
    %v941 = vadd.f32 %v926, %v937
    %v942 = vadd.f32 %v927, %v938
    %s943 = scalar_lea.vmem %s0, 976
    %v944 = vld [vmem:[%s943] sm:$0xff]
    %v945 = vld [vmem:[%s943 + $0x8] sm:$0xff]
    %v946 = vld [vmem:[%s943 + $0x800] sm:$0xff]
    %v947 = vld [vmem:[%s943 + $0x808] sm:$0xff]
    %s948 = sld [smem:[#allocation3 + $0x3d]]
    %v949 = vstv %s948
    %v950 = vmul.f32 %v944, %v949
    %v951 = vmul.f32 %v945, %v949
    %v952 = vmul.f32 %v946, %v949
    %v953 = vmul.f32 %v947, %v949
    %v954 = vadd.f32 %v939, %v950
    %v955 = vadd.f32 %v940, %v951
    %v956 = vadd.f32 %v941, %v952
    %v957 = vadd.f32 %v942, %v953
    %s958 = scalar_lea.vmem %s0, 992
    %v959 = vld [vmem:[%s958] sm:$0xff]
    %v960 = vld [vmem:[%s958 + $0x8] sm:$0xff]
    %v961 = vld [vmem:[%s958 + $0x800] sm:$0xff]
    %v962 = vld [vmem:[%s958 + $0x808] sm:$0xff]
    %s963 = sld [smem:[#allocation3 + $0x3e]]
    %v964 = vstv %s963
    %v965 = vmul.f32 %v959, %v964
    %v966 = vmul.f32 %v960, %v964
    %v967 = vmul.f32 %v961, %v964
    %v968 = vmul.f32 %v962, %v964
    %v969 = vadd.f32 %v954, %v965
    %v970 = vadd.f32 %v955, %v966
    %v971 = vadd.f32 %v956, %v967
    %v972 = vadd.f32 %v957, %v968
    %s973 = scalar_lea.vmem %s0, 1008
    %v974 = vld [vmem:[%s973] sm:$0xff]
    %v975 = vld [vmem:[%s973 + $0x8] sm:$0xff]
    %v976 = vld [vmem:[%s973 + $0x800] sm:$0xff]
    %v977 = vld [vmem:[%s973 + $0x808] sm:$0xff]
    %s978 = sld [smem:[#allocation3 + $0x3f]]
    %v979 = vstv %s978
    %v980 = vmul.f32 %v974, %v979
    %v981 = vmul.f32 %v975, %v979
    %v982 = vmul.f32 %v976, %v979
    %v983 = vmul.f32 %v977, %v979
    %v984 = vadd.f32 %v969, %v980
    %v985 = vadd.f32 %v970, %v981
    %v986 = vadd.f32 %v971, %v982
    %v987 = vadd.f32 %v972, %v983
    %s988 = scalar_lea.vmem %s0, 1024
    %v989 = vld [vmem:[%s988] sm:$0xff]
    %v990 = vld [vmem:[%s988 + $0x8] sm:$0xff]
    %v991 = vld [vmem:[%s988 + $0x800] sm:$0xff]
    %v992 = vld [vmem:[%s988 + $0x808] sm:$0xff]
    %s993 = sld [smem:[#allocation3 + $0x40]]
    %v994 = vstv %s993
    %v995 = vmul.f32 %v989, %v994
    %v996 = vmul.f32 %v990, %v994
    %v997 = vmul.f32 %v991, %v994
    %v998 = vmul.f32 %v992, %v994
    %v999 = vadd.f32 %v984, %v995
    %v1000 = vadd.f32 %v985, %v996
    %v1001 = vadd.f32 %v986, %v997
    %v1002 = vadd.f32 %v987, %v998
    %s1003 = scalar_lea.vmem %s0, 1040
    %v1004 = vld [vmem:[%s1003] sm:$0xff]
    %v1005 = vld [vmem:[%s1003 + $0x8] sm:$0xff]
    %v1006 = vld [vmem:[%s1003 + $0x800] sm:$0xff]
    %v1007 = vld [vmem:[%s1003 + $0x808] sm:$0xff]
    %s1008 = sld [smem:[#allocation3 + $0x41]]
    %v1009 = vstv %s1008
    %v1010 = vmul.f32 %v1004, %v1009
    %v1011 = vmul.f32 %v1005, %v1009
    %v1012 = vmul.f32 %v1006, %v1009
    %v1013 = vmul.f32 %v1007, %v1009
    %v1014 = vadd.f32 %v999, %v1010
    %v1015 = vadd.f32 %v1000, %v1011
    %v1016 = vadd.f32 %v1001, %v1012
    %v1017 = vadd.f32 %v1002, %v1013
    %s1018 = scalar_lea.vmem %s0, 1056
    %v1019 = vld [vmem:[%s1018] sm:$0xff]
    %v1020 = vld [vmem:[%s1018 + $0x8] sm:$0xff]
    %v1021 = vld [vmem:[%s1018 + $0x800] sm:$0xff]
    %v1022 = vld [vmem:[%s1018 + $0x808] sm:$0xff]
    %s1023 = sld [smem:[#allocation3 + $0x42]]
    %v1024 = vstv %s1023
    %v1025 = vmul.f32 %v1019, %v1024
    %v1026 = vmul.f32 %v1020, %v1024
    %v1027 = vmul.f32 %v1021, %v1024
    %v1028 = vmul.f32 %v1022, %v1024
    %v1029 = vadd.f32 %v1014, %v1025
    %v1030 = vadd.f32 %v1015, %v1026
    %v1031 = vadd.f32 %v1016, %v1027
    %v1032 = vadd.f32 %v1017, %v1028
    %s1033 = scalar_lea.vmem %s0, 1072
    %v1034 = vld [vmem:[%s1033] sm:$0xff]
    %v1035 = vld [vmem:[%s1033 + $0x8] sm:$0xff]
    %v1036 = vld [vmem:[%s1033 + $0x800] sm:$0xff]
    %v1037 = vld [vmem:[%s1033 + $0x808] sm:$0xff]
    %s1038 = sld [smem:[#allocation3 + $0x43]]
    %v1039 = vstv %s1038
    %v1040 = vmul.f32 %v1034, %v1039
    %v1041 = vmul.f32 %v1035, %v1039
    %v1042 = vmul.f32 %v1036, %v1039
    %v1043 = vmul.f32 %v1037, %v1039
    %v1044 = vadd.f32 %v1029, %v1040
    %v1045 = vadd.f32 %v1030, %v1041
    %v1046 = vadd.f32 %v1031, %v1042
    %v1047 = vadd.f32 %v1032, %v1043
    %s1048 = scalar_lea.vmem %s0, 1088
    %v1049 = vld [vmem:[%s1048] sm:$0xff]
    %v1050 = vld [vmem:[%s1048 + $0x8] sm:$0xff]
    %v1051 = vld [vmem:[%s1048 + $0x800] sm:$0xff]
    %v1052 = vld [vmem:[%s1048 + $0x808] sm:$0xff]
    %s1053 = sld [smem:[#allocation3 + $0x44]]
    %v1054 = vstv %s1053
    %v1055 = vmul.f32 %v1049, %v1054
    %v1056 = vmul.f32 %v1050, %v1054
    %v1057 = vmul.f32 %v1051, %v1054
    %v1058 = vmul.f32 %v1052, %v1054
    %v1059 = vadd.f32 %v1044, %v1055
    %v1060 = vadd.f32 %v1045, %v1056
    %v1061 = vadd.f32 %v1046, %v1057
    %v1062 = vadd.f32 %v1047, %v1058
    %s1063 = scalar_lea.vmem %s0, 1104
    %v1064 = vld [vmem:[%s1063] sm:$0xff]
    %v1065 = vld [vmem:[%s1063 + $0x8] sm:$0xff]
    %v1066 = vld [vmem:[%s1063 + $0x800] sm:$0xff]
    %v1067 = vld [vmem:[%s1063 + $0x808] sm:$0xff]
    %s1068 = sld [smem:[#allocation3 + $0x45]]
    %v1069 = vstv %s1068
    %v1070 = vmul.f32 %v1064, %v1069
    %v1071 = vmul.f32 %v1065, %v1069
    %v1072 = vmul.f32 %v1066, %v1069
    %v1073 = vmul.f32 %v1067, %v1069
    %v1074 = vadd.f32 %v1059, %v1070
    %v1075 = vadd.f32 %v1060, %v1071
    %v1076 = vadd.f32 %v1061, %v1072
    %v1077 = vadd.f32 %v1062, %v1073
    %s1078 = scalar_lea.vmem %s0, 1120
    %v1079 = vld [vmem:[%s1078] sm:$0xff]
    %v1080 = vld [vmem:[%s1078 + $0x8] sm:$0xff]
    %v1081 = vld [vmem:[%s1078 + $0x800] sm:$0xff]
    %v1082 = vld [vmem:[%s1078 + $0x808] sm:$0xff]
    %s1083 = sld [smem:[#allocation3 + $0x46]]
    %v1084 = vstv %s1083
    %v1085 = vmul.f32 %v1079, %v1084
    %v1086 = vmul.f32 %v1080, %v1084
    %v1087 = vmul.f32 %v1081, %v1084
    %v1088 = vmul.f32 %v1082, %v1084
    %v1089 = vadd.f32 %v1074, %v1085
    %v1090 = vadd.f32 %v1075, %v1086
    %v1091 = vadd.f32 %v1076, %v1087
    %v1092 = vadd.f32 %v1077, %v1088
    %s1093 = scalar_lea.vmem %s0, 1136
    %v1094 = vld [vmem:[%s1093] sm:$0xff]
    %v1095 = vld [vmem:[%s1093 + $0x8] sm:$0xff]
    %v1096 = vld [vmem:[%s1093 + $0x800] sm:$0xff]
    %v1097 = vld [vmem:[%s1093 + $0x808] sm:$0xff]
    %s1098 = sld [smem:[#allocation3 + $0x47]]
    %v1099 = vstv %s1098
    %v1100 = vmul.f32 %v1094, %v1099
    %v1101 = vmul.f32 %v1095, %v1099
    %v1102 = vmul.f32 %v1096, %v1099
    %v1103 = vmul.f32 %v1097, %v1099
    %v1104 = vadd.f32 %v1089, %v1100
    %v1105 = vadd.f32 %v1090, %v1101
    %v1106 = vadd.f32 %v1091, %v1102
    %v1107 = vadd.f32 %v1092, %v1103
    %s1108 = scalar_lea.vmem %s0, 1152
    %v1109 = vld [vmem:[%s1108] sm:$0xff]
    %v1110 = vld [vmem:[%s1108 + $0x8] sm:$0xff]
    %v1111 = vld [vmem:[%s1108 + $0x800] sm:$0xff]
    %v1112 = vld [vmem:[%s1108 + $0x808] sm:$0xff]
    %s1113 = sld [smem:[#allocation3 + $0x48]]
    %v1114 = vstv %s1113
    %v1115 = vmul.f32 %v1109, %v1114
    %v1116 = vmul.f32 %v1110, %v1114
    %v1117 = vmul.f32 %v1111, %v1114
    %v1118 = vmul.f32 %v1112, %v1114
    %v1119 = vadd.f32 %v1104, %v1115
    %v1120 = vadd.f32 %v1105, %v1116
    %v1121 = vadd.f32 %v1106, %v1117
    %v1122 = vadd.f32 %v1107, %v1118
    %s1123 = scalar_lea.vmem %s0, 1168
    %v1124 = vld [vmem:[%s1123] sm:$0xff]
    %v1125 = vld [vmem:[%s1123 + $0x8] sm:$0xff]
    %v1126 = vld [vmem:[%s1123 + $0x800] sm:$0xff]
    %v1127 = vld [vmem:[%s1123 + $0x808] sm:$0xff]
    %s1128 = sld [smem:[#allocation3 + $0x49]]
    %v1129 = vstv %s1128
    %v1130 = vmul.f32 %v1124, %v1129
    %v1131 = vmul.f32 %v1125, %v1129
    %v1132 = vmul.f32 %v1126, %v1129
    %v1133 = vmul.f32 %v1127, %v1129
    %v1134 = vadd.f32 %v1119, %v1130
    %v1135 = vadd.f32 %v1120, %v1131
    %v1136 = vadd.f32 %v1121, %v1132
    %v1137 = vadd.f32 %v1122, %v1133
    %s1138 = scalar_lea.vmem %s0, 1184
    %v1139 = vld [vmem:[%s1138] sm:$0xff]
    %v1140 = vld [vmem:[%s1138 + $0x8] sm:$0xff]
    %v1141 = vld [vmem:[%s1138 + $0x800] sm:$0xff]
    %v1142 = vld [vmem:[%s1138 + $0x808] sm:$0xff]
    %s1143 = sld [smem:[#allocation3 + $0x4a]]
    %v1144 = vstv %s1143
    %v1145 = vmul.f32 %v1139, %v1144
    %v1146 = vmul.f32 %v1140, %v1144
    %v1147 = vmul.f32 %v1141, %v1144
    %v1148 = vmul.f32 %v1142, %v1144
    %v1149 = vadd.f32 %v1134, %v1145
    %v1150 = vadd.f32 %v1135, %v1146
    %v1151 = vadd.f32 %v1136, %v1147
    %v1152 = vadd.f32 %v1137, %v1148
    %s1153 = scalar_lea.vmem %s0, 1200
    %v1154 = vld [vmem:[%s1153] sm:$0xff]
    %v1155 = vld [vmem:[%s1153 + $0x8] sm:$0xff]
    %v1156 = vld [vmem:[%s1153 + $0x800] sm:$0xff]
    %v1157 = vld [vmem:[%s1153 + $0x808] sm:$0xff]
    %s1158 = sld [smem:[#allocation3 + $0x4b]]
    %v1159 = vstv %s1158
    %v1160 = vmul.f32 %v1154, %v1159
    %v1161 = vmul.f32 %v1155, %v1159
    %v1162 = vmul.f32 %v1156, %v1159
    %v1163 = vmul.f32 %v1157, %v1159
    %v1164 = vadd.f32 %v1149, %v1160
    %v1165 = vadd.f32 %v1150, %v1161
    %v1166 = vadd.f32 %v1151, %v1162
    %v1167 = vadd.f32 %v1152, %v1163
    %s1168 = scalar_lea.vmem %s0, 1216
    %v1169 = vld [vmem:[%s1168] sm:$0xff]
    %v1170 = vld [vmem:[%s1168 + $0x8] sm:$0xff]
    %v1171 = vld [vmem:[%s1168 + $0x800] sm:$0xff]
    %v1172 = vld [vmem:[%s1168 + $0x808] sm:$0xff]
    %s1173 = sld [smem:[#allocation3 + $0x4c]]
    %v1174 = vstv %s1173
    %v1175 = vmul.f32 %v1169, %v1174
    %v1176 = vmul.f32 %v1170, %v1174
    %v1177 = vmul.f32 %v1171, %v1174
    %v1178 = vmul.f32 %v1172, %v1174
    %v1179 = vadd.f32 %v1164, %v1175
    %v1180 = vadd.f32 %v1165, %v1176
    %v1181 = vadd.f32 %v1166, %v1177
    %v1182 = vadd.f32 %v1167, %v1178
    %s1183 = scalar_lea.vmem %s0, 1232
    %v1184 = vld [vmem:[%s1183] sm:$0xff]
    %v1185 = vld [vmem:[%s1183 + $0x8] sm:$0xff]
    %v1186 = vld [vmem:[%s1183 + $0x800] sm:$0xff]
    %v1187 = vld [vmem:[%s1183 + $0x808] sm:$0xff]
    %s1188 = sld [smem:[#allocation3 + $0x4d]]
    %v1189 = vstv %s1188
    %v1190 = vmul.f32 %v1184, %v1189
    %v1191 = vmul.f32 %v1185, %v1189
    %v1192 = vmul.f32 %v1186, %v1189
    %v1193 = vmul.f32 %v1187, %v1189
    %v1194 = vadd.f32 %v1179, %v1190
    %v1195 = vadd.f32 %v1180, %v1191
    %v1196 = vadd.f32 %v1181, %v1192
    %v1197 = vadd.f32 %v1182, %v1193
    %s1198 = scalar_lea.vmem %s0, 1248
    %v1199 = vld [vmem:[%s1198] sm:$0xff]
    %v1200 = vld [vmem:[%s1198 + $0x8] sm:$0xff]
    %v1201 = vld [vmem:[%s1198 + $0x800] sm:$0xff]
    %v1202 = vld [vmem:[%s1198 + $0x808] sm:$0xff]
    %s1203 = sld [smem:[#allocation3 + $0x4e]]
    %v1204 = vstv %s1203
    %v1205 = vmul.f32 %v1199, %v1204
    %v1206 = vmul.f32 %v1200, %v1204
    %v1207 = vmul.f32 %v1201, %v1204
    %v1208 = vmul.f32 %v1202, %v1204
    %v1209 = vadd.f32 %v1194, %v1205
    %v1210 = vadd.f32 %v1195, %v1206
    %v1211 = vadd.f32 %v1196, %v1207
    %v1212 = vadd.f32 %v1197, %v1208
    %s1213 = scalar_lea.vmem %s0, 1264
    %v1214 = vld [vmem:[%s1213] sm:$0xff]
    %v1215 = vld [vmem:[%s1213 + $0x8] sm:$0xff]
    %v1216 = vld [vmem:[%s1213 + $0x800] sm:$0xff]
    %v1217 = vld [vmem:[%s1213 + $0x808] sm:$0xff]
    %s1218 = sld [smem:[#allocation3 + $0x4f]]
    %v1219 = vstv %s1218
    %v1220 = vmul.f32 %v1214, %v1219
    %v1221 = vmul.f32 %v1215, %v1219
    %v1222 = vmul.f32 %v1216, %v1219
    %v1223 = vmul.f32 %v1217, %v1219
    %v1224 = vadd.f32 %v1209, %v1220
    %v1225 = vadd.f32 %v1210, %v1221
    %v1226 = vadd.f32 %v1211, %v1222
    %v1227 = vadd.f32 %v1212, %v1223
    %s1228 = scalar_lea.vmem %s0, 1280
    %v1229 = vld [vmem:[%s1228] sm:$0xff]
    %v1230 = vld [vmem:[%s1228 + $0x8] sm:$0xff]
    %v1231 = vld [vmem:[%s1228 + $0x800] sm:$0xff]
    %v1232 = vld [vmem:[%s1228 + $0x808] sm:$0xff]
    %s1233 = sld [smem:[#allocation3 + $0x50]]
    %v1234 = vstv %s1233
    %v1235 = vmul.f32 %v1229, %v1234
    %v1236 = vmul.f32 %v1230, %v1234
    %v1237 = vmul.f32 %v1231, %v1234
    %v1238 = vmul.f32 %v1232, %v1234
    %v1239 = vadd.f32 %v1224, %v1235
    %v1240 = vadd.f32 %v1225, %v1236
    %v1241 = vadd.f32 %v1226, %v1237
    %v1242 = vadd.f32 %v1227, %v1238
    %s1243 = scalar_lea.vmem %s0, 1296
    %v1244 = vld [vmem:[%s1243] sm:$0xff]
    %v1245 = vld [vmem:[%s1243 + $0x8] sm:$0xff]
    %v1246 = vld [vmem:[%s1243 + $0x800] sm:$0xff]
    %v1247 = vld [vmem:[%s1243 + $0x808] sm:$0xff]
    %s1248 = sld [smem:[#allocation3 + $0x51]]
    %v1249 = vstv %s1248
    %v1250 = vmul.f32 %v1244, %v1249
    %v1251 = vmul.f32 %v1245, %v1249
    %v1252 = vmul.f32 %v1246, %v1249
    %v1253 = vmul.f32 %v1247, %v1249
    %v1254 = vadd.f32 %v1239, %v1250
    %v1255 = vadd.f32 %v1240, %v1251
    %v1256 = vadd.f32 %v1241, %v1252
    %v1257 = vadd.f32 %v1242, %v1253
    %s1258 = scalar_lea.vmem %s0, 1312
    %v1259 = vld [vmem:[%s1258] sm:$0xff]
    %v1260 = vld [vmem:[%s1258 + $0x8] sm:$0xff]
    %v1261 = vld [vmem:[%s1258 + $0x800] sm:$0xff]
    %v1262 = vld [vmem:[%s1258 + $0x808] sm:$0xff]
    %s1263 = sld [smem:[#allocation3 + $0x52]]
    %v1264 = vstv %s1263
    %v1265 = vmul.f32 %v1259, %v1264
    %v1266 = vmul.f32 %v1260, %v1264
    %v1267 = vmul.f32 %v1261, %v1264
    %v1268 = vmul.f32 %v1262, %v1264
    %v1269 = vadd.f32 %v1254, %v1265
    %v1270 = vadd.f32 %v1255, %v1266
    %v1271 = vadd.f32 %v1256, %v1267
    %v1272 = vadd.f32 %v1257, %v1268
    %s1273 = scalar_lea.vmem %s0, 1328
    %v1274 = vld [vmem:[%s1273] sm:$0xff]
    %v1275 = vld [vmem:[%s1273 + $0x8] sm:$0xff]
    %v1276 = vld [vmem:[%s1273 + $0x800] sm:$0xff]
    %v1277 = vld [vmem:[%s1273 + $0x808] sm:$0xff]
    %s1278 = sld [smem:[#allocation3 + $0x53]]
    %v1279 = vstv %s1278
    %v1280 = vmul.f32 %v1274, %v1279
    %v1281 = vmul.f32 %v1275, %v1279
    %v1282 = vmul.f32 %v1276, %v1279
    %v1283 = vmul.f32 %v1277, %v1279
    %v1284 = vadd.f32 %v1269, %v1280
    %v1285 = vadd.f32 %v1270, %v1281
    %v1286 = vadd.f32 %v1271, %v1282
    %v1287 = vadd.f32 %v1272, %v1283
    %s1288 = scalar_lea.vmem %s0, 1344
    %v1289 = vld [vmem:[%s1288] sm:$0xff]
    %v1290 = vld [vmem:[%s1288 + $0x8] sm:$0xff]
    %v1291 = vld [vmem:[%s1288 + $0x800] sm:$0xff]
    %v1292 = vld [vmem:[%s1288 + $0x808] sm:$0xff]
    %s1293 = sld [smem:[#allocation3 + $0x54]]
    %v1294 = vstv %s1293
    %v1295 = vmul.f32 %v1289, %v1294
    %v1296 = vmul.f32 %v1290, %v1294
    %v1297 = vmul.f32 %v1291, %v1294
    %v1298 = vmul.f32 %v1292, %v1294
    %v1299 = vadd.f32 %v1284, %v1295
    %v1300 = vadd.f32 %v1285, %v1296
    %v1301 = vadd.f32 %v1286, %v1297
    %v1302 = vadd.f32 %v1287, %v1298
    %s1303 = scalar_lea.vmem %s0, 1360
    %v1304 = vld [vmem:[%s1303] sm:$0xff]
    %v1305 = vld [vmem:[%s1303 + $0x8] sm:$0xff]
    %v1306 = vld [vmem:[%s1303 + $0x800] sm:$0xff]
    %v1307 = vld [vmem:[%s1303 + $0x808] sm:$0xff]
    %s1308 = sld [smem:[#allocation3 + $0x55]]
    %v1309 = vstv %s1308
    %v1310 = vmul.f32 %v1304, %v1309
    %v1311 = vmul.f32 %v1305, %v1309
    %v1312 = vmul.f32 %v1306, %v1309
    %v1313 = vmul.f32 %v1307, %v1309
    %v1314 = vadd.f32 %v1299, %v1310
    %v1315 = vadd.f32 %v1300, %v1311
    %v1316 = vadd.f32 %v1301, %v1312
    %v1317 = vadd.f32 %v1302, %v1313
    %s1318 = scalar_lea.vmem %s0, 1376
    %v1319 = vld [vmem:[%s1318] sm:$0xff]
    %v1320 = vld [vmem:[%s1318 + $0x8] sm:$0xff]
    %v1321 = vld [vmem:[%s1318 + $0x800] sm:$0xff]
    %v1322 = vld [vmem:[%s1318 + $0x808] sm:$0xff]
    %s1323 = sld [smem:[#allocation3 + $0x56]]
    %v1324 = vstv %s1323
    %v1325 = vmul.f32 %v1319, %v1324
    %v1326 = vmul.f32 %v1320, %v1324
    %v1327 = vmul.f32 %v1321, %v1324
    %v1328 = vmul.f32 %v1322, %v1324
    %v1329 = vadd.f32 %v1314, %v1325
    %v1330 = vadd.f32 %v1315, %v1326
    %v1331 = vadd.f32 %v1316, %v1327
    %v1332 = vadd.f32 %v1317, %v1328
    %s1333 = scalar_lea.vmem %s0, 1392
    %v1334 = vld [vmem:[%s1333] sm:$0xff]
    %v1335 = vld [vmem:[%s1333 + $0x8] sm:$0xff]
    %v1336 = vld [vmem:[%s1333 + $0x800] sm:$0xff]
    %v1337 = vld [vmem:[%s1333 + $0x808] sm:$0xff]
    %s1338 = sld [smem:[#allocation3 + $0x57]]
    %v1339 = vstv %s1338
    %v1340 = vmul.f32 %v1334, %v1339
    %v1341 = vmul.f32 %v1335, %v1339
    %v1342 = vmul.f32 %v1336, %v1339
    %v1343 = vmul.f32 %v1337, %v1339
    %v1344 = vadd.f32 %v1329, %v1340
    %v1345 = vadd.f32 %v1330, %v1341
    %v1346 = vadd.f32 %v1331, %v1342
    %v1347 = vadd.f32 %v1332, %v1343
    %s1348 = scalar_lea.vmem %s0, 1408
    %v1349 = vld [vmem:[%s1348] sm:$0xff]
    %v1350 = vld [vmem:[%s1348 + $0x8] sm:$0xff]
    %v1351 = vld [vmem:[%s1348 + $0x800] sm:$0xff]
    %v1352 = vld [vmem:[%s1348 + $0x808] sm:$0xff]
    %s1353 = sld [smem:[#allocation3 + $0x58]]
    %v1354 = vstv %s1353
    %v1355 = vmul.f32 %v1349, %v1354
    %v1356 = vmul.f32 %v1350, %v1354
    %v1357 = vmul.f32 %v1351, %v1354
    %v1358 = vmul.f32 %v1352, %v1354
    %v1359 = vadd.f32 %v1344, %v1355
    %v1360 = vadd.f32 %v1345, %v1356
    %v1361 = vadd.f32 %v1346, %v1357
    %v1362 = vadd.f32 %v1347, %v1358
    %s1363 = scalar_lea.vmem %s0, 1424
    %v1364 = vld [vmem:[%s1363] sm:$0xff]
    %v1365 = vld [vmem:[%s1363 + $0x8] sm:$0xff]
    %v1366 = vld [vmem:[%s1363 + $0x800] sm:$0xff]
    %v1367 = vld [vmem:[%s1363 + $0x808] sm:$0xff]
    %s1368 = sld [smem:[#allocation3 + $0x59]]
    %v1369 = vstv %s1368
    %v1370 = vmul.f32 %v1364, %v1369
    %v1371 = vmul.f32 %v1365, %v1369
    %v1372 = vmul.f32 %v1366, %v1369
    %v1373 = vmul.f32 %v1367, %v1369
    %v1374 = vadd.f32 %v1359, %v1370
    %v1375 = vadd.f32 %v1360, %v1371
    %v1376 = vadd.f32 %v1361, %v1372
    %v1377 = vadd.f32 %v1362, %v1373
    %s1378 = scalar_lea.vmem %s0, 1440
    %v1379 = vld [vmem:[%s1378] sm:$0xff]
    %v1380 = vld [vmem:[%s1378 + $0x8] sm:$0xff]
    %v1381 = vld [vmem:[%s1378 + $0x800] sm:$0xff]
    %v1382 = vld [vmem:[%s1378 + $0x808] sm:$0xff]
    %s1383 = sld [smem:[#allocation3 + $0x5a]]
    %v1384 = vstv %s1383
    %v1385 = vmul.f32 %v1379, %v1384
    %v1386 = vmul.f32 %v1380, %v1384
    %v1387 = vmul.f32 %v1381, %v1384
    %v1388 = vmul.f32 %v1382, %v1384
    %v1389 = vadd.f32 %v1374, %v1385
    %v1390 = vadd.f32 %v1375, %v1386
    %v1391 = vadd.f32 %v1376, %v1387
    %v1392 = vadd.f32 %v1377, %v1388
    %s1393 = scalar_lea.vmem %s0, 1456
    %v1394 = vld [vmem:[%s1393] sm:$0xff]
    %v1395 = vld [vmem:[%s1393 + $0x8] sm:$0xff]
    %v1396 = vld [vmem:[%s1393 + $0x800] sm:$0xff]
    %v1397 = vld [vmem:[%s1393 + $0x808] sm:$0xff]
    %s1398 = sld [smem:[#allocation3 + $0x5b]]
    %v1399 = vstv %s1398
    %v1400 = vmul.f32 %v1394, %v1399
    %v1401 = vmul.f32 %v1395, %v1399
    %v1402 = vmul.f32 %v1396, %v1399
    %v1403 = vmul.f32 %v1397, %v1399
    %v1404 = vadd.f32 %v1389, %v1400
    %v1405 = vadd.f32 %v1390, %v1401
    %v1406 = vadd.f32 %v1391, %v1402
    %v1407 = vadd.f32 %v1392, %v1403
    %s1408 = scalar_lea.vmem %s0, 1472
    %v1409 = vld [vmem:[%s1408] sm:$0xff]
    %v1410 = vld [vmem:[%s1408 + $0x8] sm:$0xff]
    %v1411 = vld [vmem:[%s1408 + $0x800] sm:$0xff]
    %v1412 = vld [vmem:[%s1408 + $0x808] sm:$0xff]
    %s1413 = sld [smem:[#allocation3 + $0x5c]]
    %v1414 = vstv %s1413
    %v1415 = vmul.f32 %v1409, %v1414
    %v1416 = vmul.f32 %v1410, %v1414
    %v1417 = vmul.f32 %v1411, %v1414
    %v1418 = vmul.f32 %v1412, %v1414
    %v1419 = vadd.f32 %v1404, %v1415
    %v1420 = vadd.f32 %v1405, %v1416
    %v1421 = vadd.f32 %v1406, %v1417
    %v1422 = vadd.f32 %v1407, %v1418
    %s1423 = scalar_lea.vmem %s0, 1488
    %v1424 = vld [vmem:[%s1423] sm:$0xff]
    %v1425 = vld [vmem:[%s1423 + $0x8] sm:$0xff]
    %v1426 = vld [vmem:[%s1423 + $0x800] sm:$0xff]
    %v1427 = vld [vmem:[%s1423 + $0x808] sm:$0xff]
    %s1428 = sld [smem:[#allocation3 + $0x5d]]
    %v1429 = vstv %s1428
    %v1430 = vmul.f32 %v1424, %v1429
    %v1431 = vmul.f32 %v1425, %v1429
    %v1432 = vmul.f32 %v1426, %v1429
    %v1433 = vmul.f32 %v1427, %v1429
    %v1434 = vadd.f32 %v1419, %v1430
    %v1435 = vadd.f32 %v1420, %v1431
    %v1436 = vadd.f32 %v1421, %v1432
    %v1437 = vadd.f32 %v1422, %v1433
    %s1438 = scalar_lea.vmem %s0, 1504
    %v1439 = vld [vmem:[%s1438] sm:$0xff]
    %v1440 = vld [vmem:[%s1438 + $0x8] sm:$0xff]
    %v1441 = vld [vmem:[%s1438 + $0x800] sm:$0xff]
    %v1442 = vld [vmem:[%s1438 + $0x808] sm:$0xff]
    %s1443 = sld [smem:[#allocation3 + $0x5e]]
    %v1444 = vstv %s1443
    %v1445 = vmul.f32 %v1439, %v1444
    %v1446 = vmul.f32 %v1440, %v1444
    %v1447 = vmul.f32 %v1441, %v1444
    %v1448 = vmul.f32 %v1442, %v1444
    %v1449 = vadd.f32 %v1434, %v1445
    %v1450 = vadd.f32 %v1435, %v1446
    %v1451 = vadd.f32 %v1436, %v1447
    %v1452 = vadd.f32 %v1437, %v1448
    %s1453 = scalar_lea.vmem %s0, 1520
    %v1454 = vld [vmem:[%s1453] sm:$0xff]
    %v1455 = vld [vmem:[%s1453 + $0x8] sm:$0xff]
    %v1456 = vld [vmem:[%s1453 + $0x800] sm:$0xff]
    %v1457 = vld [vmem:[%s1453 + $0x808] sm:$0xff]
    %s1458 = sld [smem:[#allocation3 + $0x5f]]
    %v1459 = vstv %s1458
    %v1460 = vmul.f32 %v1454, %v1459
    %v1461 = vmul.f32 %v1455, %v1459
    %v1462 = vmul.f32 %v1456, %v1459
    %v1463 = vmul.f32 %v1457, %v1459
    %v1464 = vadd.f32 %v1449, %v1460
    %v1465 = vadd.f32 %v1450, %v1461
    %v1466 = vadd.f32 %v1451, %v1462
    %v1467 = vadd.f32 %v1452, %v1463
    %s1468 = scalar_lea.vmem %s0, 1536
    %v1469 = vld [vmem:[%s1468] sm:$0xff]
    %v1470 = vld [vmem:[%s1468 + $0x8] sm:$0xff]
    %v1471 = vld [vmem:[%s1468 + $0x800] sm:$0xff]
    %v1472 = vld [vmem:[%s1468 + $0x808] sm:$0xff]
    %s1473 = sld [smem:[#allocation3 + $0x60]]
    %v1474 = vstv %s1473
    %v1475 = vmul.f32 %v1469, %v1474
    %v1476 = vmul.f32 %v1470, %v1474
    %v1477 = vmul.f32 %v1471, %v1474
    %v1478 = vmul.f32 %v1472, %v1474
    %v1479 = vadd.f32 %v1464, %v1475
    %v1480 = vadd.f32 %v1465, %v1476
    %v1481 = vadd.f32 %v1466, %v1477
    %v1482 = vadd.f32 %v1467, %v1478
    %s1483 = scalar_lea.vmem %s0, 1552
    %v1484 = vld [vmem:[%s1483] sm:$0xff]
    %v1485 = vld [vmem:[%s1483 + $0x8] sm:$0xff]
    %v1486 = vld [vmem:[%s1483 + $0x800] sm:$0xff]
    %v1487 = vld [vmem:[%s1483 + $0x808] sm:$0xff]
    %s1488 = sld [smem:[#allocation3 + $0x61]]
    %v1489 = vstv %s1488
    %v1490 = vmul.f32 %v1484, %v1489
    %v1491 = vmul.f32 %v1485, %v1489
    %v1492 = vmul.f32 %v1486, %v1489
    %v1493 = vmul.f32 %v1487, %v1489
    %v1494 = vadd.f32 %v1479, %v1490
    %v1495 = vadd.f32 %v1480, %v1491
    %v1496 = vadd.f32 %v1481, %v1492
    %v1497 = vadd.f32 %v1482, %v1493
    %s1498 = scalar_lea.vmem %s0, 1568
    %v1499 = vld [vmem:[%s1498] sm:$0xff]
    %v1500 = vld [vmem:[%s1498 + $0x8] sm:$0xff]
    %v1501 = vld [vmem:[%s1498 + $0x800] sm:$0xff]
    %v1502 = vld [vmem:[%s1498 + $0x808] sm:$0xff]
    %s1503 = sld [smem:[#allocation3 + $0x62]]
    %v1504 = vstv %s1503
    %v1505 = vmul.f32 %v1499, %v1504
    %v1506 = vmul.f32 %v1500, %v1504
    %v1507 = vmul.f32 %v1501, %v1504
    %v1508 = vmul.f32 %v1502, %v1504
    %v1509 = vadd.f32 %v1494, %v1505
    %v1510 = vadd.f32 %v1495, %v1506
    %v1511 = vadd.f32 %v1496, %v1507
    %v1512 = vadd.f32 %v1497, %v1508
    %s1513 = scalar_lea.vmem %s0, 1584
    %v1514 = vld [vmem:[%s1513] sm:$0xff]
    %v1515 = vld [vmem:[%s1513 + $0x8] sm:$0xff]
    %v1516 = vld [vmem:[%s1513 + $0x800] sm:$0xff]
    %v1517 = vld [vmem:[%s1513 + $0x808] sm:$0xff]
    %s1518 = sld [smem:[#allocation3 + $0x63]]
    %v1519 = vstv %s1518
    %v1520 = vmul.f32 %v1514, %v1519
    %v1521 = vmul.f32 %v1515, %v1519
    %v1522 = vmul.f32 %v1516, %v1519
    %v1523 = vmul.f32 %v1517, %v1519
    %v1524 = vadd.f32 %v1509, %v1520
    %v1525 = vadd.f32 %v1510, %v1521
    %v1526 = vadd.f32 %v1511, %v1522
    %v1527 = vadd.f32 %v1512, %v1523
    %s1528 = scalar_lea.vmem %s0, 1600
    %v1529 = vld [vmem:[%s1528] sm:$0xff]
    %v1530 = vld [vmem:[%s1528 + $0x8] sm:$0xff]
    %v1531 = vld [vmem:[%s1528 + $0x800] sm:$0xff]
    %v1532 = vld [vmem:[%s1528 + $0x808] sm:$0xff]
    %s1533 = sld [smem:[#allocation3 + $0x64]]
    %v1534 = vstv %s1533
    %v1535 = vmul.f32 %v1529, %v1534
    %v1536 = vmul.f32 %v1530, %v1534
    %v1537 = vmul.f32 %v1531, %v1534
    %v1538 = vmul.f32 %v1532, %v1534
    %v1539 = vadd.f32 %v1524, %v1535
    %v1540 = vadd.f32 %v1525, %v1536
    %v1541 = vadd.f32 %v1526, %v1537
    %v1542 = vadd.f32 %v1527, %v1538
    %s1543 = scalar_lea.vmem %s0, 1616
    %v1544 = vld [vmem:[%s1543] sm:$0xff]
    %v1545 = vld [vmem:[%s1543 + $0x8] sm:$0xff]
    %v1546 = vld [vmem:[%s1543 + $0x800] sm:$0xff]
    %v1547 = vld [vmem:[%s1543 + $0x808] sm:$0xff]
    %s1548 = sld [smem:[#allocation3 + $0x65]]
    %v1549 = vstv %s1548
    %v1550 = vmul.f32 %v1544, %v1549
    %v1551 = vmul.f32 %v1545, %v1549
    %v1552 = vmul.f32 %v1546, %v1549
    %v1553 = vmul.f32 %v1547, %v1549
    %v1554 = vadd.f32 %v1539, %v1550
    %v1555 = vadd.f32 %v1540, %v1551
    %v1556 = vadd.f32 %v1541, %v1552
    %v1557 = vadd.f32 %v1542, %v1553
    %s1558 = scalar_lea.vmem %s0, 1632
    %v1559 = vld [vmem:[%s1558] sm:$0xff]
    %v1560 = vld [vmem:[%s1558 + $0x8] sm:$0xff]
    %v1561 = vld [vmem:[%s1558 + $0x800] sm:$0xff]
    %v1562 = vld [vmem:[%s1558 + $0x808] sm:$0xff]
    %s1563 = sld [smem:[#allocation3 + $0x66]]
    %v1564 = vstv %s1563
    %v1565 = vmul.f32 %v1559, %v1564
    %v1566 = vmul.f32 %v1560, %v1564
    %v1567 = vmul.f32 %v1561, %v1564
    %v1568 = vmul.f32 %v1562, %v1564
    %v1569 = vadd.f32 %v1554, %v1565
    %v1570 = vadd.f32 %v1555, %v1566
    %v1571 = vadd.f32 %v1556, %v1567
    %v1572 = vadd.f32 %v1557, %v1568
    %s1573 = scalar_lea.vmem %s0, 1648
    %v1574 = vld [vmem:[%s1573] sm:$0xff]
    %v1575 = vld [vmem:[%s1573 + $0x8] sm:$0xff]
    %v1576 = vld [vmem:[%s1573 + $0x800] sm:$0xff]
    %v1577 = vld [vmem:[%s1573 + $0x808] sm:$0xff]
    %s1578 = sld [smem:[#allocation3 + $0x67]]
    %v1579 = vstv %s1578
    %v1580 = vmul.f32 %v1574, %v1579
    %v1581 = vmul.f32 %v1575, %v1579
    %v1582 = vmul.f32 %v1576, %v1579
    %v1583 = vmul.f32 %v1577, %v1579
    %v1584 = vadd.f32 %v1569, %v1580
    %v1585 = vadd.f32 %v1570, %v1581
    %v1586 = vadd.f32 %v1571, %v1582
    %v1587 = vadd.f32 %v1572, %v1583
    %s1588 = scalar_lea.vmem %s0, 1664
    %v1589 = vld [vmem:[%s1588] sm:$0xff]
    %v1590 = vld [vmem:[%s1588 + $0x8] sm:$0xff]
    %v1591 = vld [vmem:[%s1588 + $0x800] sm:$0xff]
    %v1592 = vld [vmem:[%s1588 + $0x808] sm:$0xff]
    %s1593 = sld [smem:[#allocation3 + $0x68]]
    %v1594 = vstv %s1593
    %v1595 = vmul.f32 %v1589, %v1594
    %v1596 = vmul.f32 %v1590, %v1594
    %v1597 = vmul.f32 %v1591, %v1594
    %v1598 = vmul.f32 %v1592, %v1594
    %v1599 = vadd.f32 %v1584, %v1595
    %v1600 = vadd.f32 %v1585, %v1596
    %v1601 = vadd.f32 %v1586, %v1597
    %v1602 = vadd.f32 %v1587, %v1598
    %s1603 = scalar_lea.vmem %s0, 1680
    %v1604 = vld [vmem:[%s1603] sm:$0xff]
    %v1605 = vld [vmem:[%s1603 + $0x8] sm:$0xff]
    %v1606 = vld [vmem:[%s1603 + $0x800] sm:$0xff]
    %v1607 = vld [vmem:[%s1603 + $0x808] sm:$0xff]
    %s1608 = sld [smem:[#allocation3 + $0x69]]
    %v1609 = vstv %s1608
    %v1610 = vmul.f32 %v1604, %v1609
    %v1611 = vmul.f32 %v1605, %v1609
    %v1612 = vmul.f32 %v1606, %v1609
    %v1613 = vmul.f32 %v1607, %v1609
    %v1614 = vadd.f32 %v1599, %v1610
    %v1615 = vadd.f32 %v1600, %v1611
    %v1616 = vadd.f32 %v1601, %v1612
    %v1617 = vadd.f32 %v1602, %v1613
    %s1618 = scalar_lea.vmem %s0, 1696
    %v1619 = vld [vmem:[%s1618] sm:$0xff]
    %v1620 = vld [vmem:[%s1618 + $0x8] sm:$0xff]
    %v1621 = vld [vmem:[%s1618 + $0x800] sm:$0xff]
    %v1622 = vld [vmem:[%s1618 + $0x808] sm:$0xff]
    %s1623 = sld [smem:[#allocation3 + $0x6a]]
    %v1624 = vstv %s1623
    %v1625 = vmul.f32 %v1619, %v1624
    %v1626 = vmul.f32 %v1620, %v1624
    %v1627 = vmul.f32 %v1621, %v1624
    %v1628 = vmul.f32 %v1622, %v1624
    %v1629 = vadd.f32 %v1614, %v1625
    %v1630 = vadd.f32 %v1615, %v1626
    %v1631 = vadd.f32 %v1616, %v1627
    %v1632 = vadd.f32 %v1617, %v1628
    %s1633 = scalar_lea.vmem %s0, 1712
    %v1634 = vld [vmem:[%s1633] sm:$0xff]
    %v1635 = vld [vmem:[%s1633 + $0x8] sm:$0xff]
    %v1636 = vld [vmem:[%s1633 + $0x800] sm:$0xff]
    %v1637 = vld [vmem:[%s1633 + $0x808] sm:$0xff]
    %s1638 = sld [smem:[#allocation3 + $0x6b]]
    %v1639 = vstv %s1638
    %v1640 = vmul.f32 %v1634, %v1639
    %v1641 = vmul.f32 %v1635, %v1639
    %v1642 = vmul.f32 %v1636, %v1639
    %v1643 = vmul.f32 %v1637, %v1639
    %v1644 = vadd.f32 %v1629, %v1640
    %v1645 = vadd.f32 %v1630, %v1641
    %v1646 = vadd.f32 %v1631, %v1642
    %v1647 = vadd.f32 %v1632, %v1643
    %s1648 = scalar_lea.vmem %s0, 1728
    %v1649 = vld [vmem:[%s1648] sm:$0xff]
    %v1650 = vld [vmem:[%s1648 + $0x8] sm:$0xff]
    %v1651 = vld [vmem:[%s1648 + $0x800] sm:$0xff]
    %v1652 = vld [vmem:[%s1648 + $0x808] sm:$0xff]
    %s1653 = sld [smem:[#allocation3 + $0x6c]]
    %v1654 = vstv %s1653
    %v1655 = vmul.f32 %v1649, %v1654
    %v1656 = vmul.f32 %v1650, %v1654
    %v1657 = vmul.f32 %v1651, %v1654
    %v1658 = vmul.f32 %v1652, %v1654
    %v1659 = vadd.f32 %v1644, %v1655
    %v1660 = vadd.f32 %v1645, %v1656
    %v1661 = vadd.f32 %v1646, %v1657
    %v1662 = vadd.f32 %v1647, %v1658
    %s1663 = scalar_lea.vmem %s0, 1744
    %v1664 = vld [vmem:[%s1663] sm:$0xff]
    %v1665 = vld [vmem:[%s1663 + $0x8] sm:$0xff]
    %v1666 = vld [vmem:[%s1663 + $0x800] sm:$0xff]
    %v1667 = vld [vmem:[%s1663 + $0x808] sm:$0xff]
    %s1668 = sld [smem:[#allocation3 + $0x6d]]
    %v1669 = vstv %s1668
    %v1670 = vmul.f32 %v1664, %v1669
    %v1671 = vmul.f32 %v1665, %v1669
    %v1672 = vmul.f32 %v1666, %v1669
    %v1673 = vmul.f32 %v1667, %v1669
    %v1674 = vadd.f32 %v1659, %v1670
    %v1675 = vadd.f32 %v1660, %v1671
    %v1676 = vadd.f32 %v1661, %v1672
    %v1677 = vadd.f32 %v1662, %v1673
    %s1678 = scalar_lea.vmem %s0, 1760
    %v1679 = vld [vmem:[%s1678] sm:$0xff]
    %v1680 = vld [vmem:[%s1678 + $0x8] sm:$0xff]
    %v1681 = vld [vmem:[%s1678 + $0x800] sm:$0xff]
    %v1682 = vld [vmem:[%s1678 + $0x808] sm:$0xff]
    %s1683 = sld [smem:[#allocation3 + $0x6e]]
    %v1684 = vstv %s1683
    %v1685 = vmul.f32 %v1679, %v1684
    %v1686 = vmul.f32 %v1680, %v1684
    %v1687 = vmul.f32 %v1681, %v1684
    %v1688 = vmul.f32 %v1682, %v1684
    %v1689 = vadd.f32 %v1674, %v1685
    %v1690 = vadd.f32 %v1675, %v1686
    %v1691 = vadd.f32 %v1676, %v1687
    %v1692 = vadd.f32 %v1677, %v1688
    %s1693 = scalar_lea.vmem %s0, 1776
    %v1694 = vld [vmem:[%s1693] sm:$0xff]
    %v1695 = vld [vmem:[%s1693 + $0x8] sm:$0xff]
    %v1696 = vld [vmem:[%s1693 + $0x800] sm:$0xff]
    %v1697 = vld [vmem:[%s1693 + $0x808] sm:$0xff]
    %s1698 = sld [smem:[#allocation3 + $0x6f]]
    %v1699 = vstv %s1698
    %v1700 = vmul.f32 %v1694, %v1699
    %v1701 = vmul.f32 %v1695, %v1699
    %v1702 = vmul.f32 %v1696, %v1699
    %v1703 = vmul.f32 %v1697, %v1699
    %v1704 = vadd.f32 %v1689, %v1700
    %v1705 = vadd.f32 %v1690, %v1701
    %v1706 = vadd.f32 %v1691, %v1702
    %v1707 = vadd.f32 %v1692, %v1703
    %s1708 = scalar_lea.vmem %s0, 1792
    %v1709 = vld [vmem:[%s1708] sm:$0xff]
    %v1710 = vld [vmem:[%s1708 + $0x8] sm:$0xff]
    %v1711 = vld [vmem:[%s1708 + $0x800] sm:$0xff]
    %v1712 = vld [vmem:[%s1708 + $0x808] sm:$0xff]
    %s1713 = sld [smem:[#allocation3 + $0x70]]
    %v1714 = vstv %s1713
    %v1715 = vmul.f32 %v1709, %v1714
    %v1716 = vmul.f32 %v1710, %v1714
    %v1717 = vmul.f32 %v1711, %v1714
    %v1718 = vmul.f32 %v1712, %v1714
    %v1719 = vadd.f32 %v1704, %v1715
    %v1720 = vadd.f32 %v1705, %v1716
    %v1721 = vadd.f32 %v1706, %v1717
    %v1722 = vadd.f32 %v1707, %v1718
    %s1723 = scalar_lea.vmem %s0, 1808
    %v1724 = vld [vmem:[%s1723] sm:$0xff]
    %v1725 = vld [vmem:[%s1723 + $0x8] sm:$0xff]
    %v1726 = vld [vmem:[%s1723 + $0x800] sm:$0xff]
    %v1727 = vld [vmem:[%s1723 + $0x808] sm:$0xff]
    %s1728 = sld [smem:[#allocation3 + $0x71]]
    %v1729 = vstv %s1728
    %v1730 = vmul.f32 %v1724, %v1729
    %v1731 = vmul.f32 %v1725, %v1729
    %v1732 = vmul.f32 %v1726, %v1729
    %v1733 = vmul.f32 %v1727, %v1729
    %v1734 = vadd.f32 %v1719, %v1730
    %v1735 = vadd.f32 %v1720, %v1731
    %v1736 = vadd.f32 %v1721, %v1732
    %v1737 = vadd.f32 %v1722, %v1733
    %s1738 = scalar_lea.vmem %s0, 1824
    %v1739 = vld [vmem:[%s1738] sm:$0xff]
    %v1740 = vld [vmem:[%s1738 + $0x8] sm:$0xff]
    %v1741 = vld [vmem:[%s1738 + $0x800] sm:$0xff]
    %v1742 = vld [vmem:[%s1738 + $0x808] sm:$0xff]
    %s1743 = sld [smem:[#allocation3 + $0x72]]
    %v1744 = vstv %s1743
    %v1745 = vmul.f32 %v1739, %v1744
    %v1746 = vmul.f32 %v1740, %v1744
    %v1747 = vmul.f32 %v1741, %v1744
    %v1748 = vmul.f32 %v1742, %v1744
    %v1749 = vadd.f32 %v1734, %v1745
    %v1750 = vadd.f32 %v1735, %v1746
    %v1751 = vadd.f32 %v1736, %v1747
    %v1752 = vadd.f32 %v1737, %v1748
    %s1753 = scalar_lea.vmem %s0, 1840
    %v1754 = vld [vmem:[%s1753] sm:$0xff]
    %v1755 = vld [vmem:[%s1753 + $0x8] sm:$0xff]
    %v1756 = vld [vmem:[%s1753 + $0x800] sm:$0xff]
    %v1757 = vld [vmem:[%s1753 + $0x808] sm:$0xff]
    %s1758 = sld [smem:[#allocation3 + $0x73]]
    %v1759 = vstv %s1758
    %v1760 = vmul.f32 %v1754, %v1759
    %v1761 = vmul.f32 %v1755, %v1759
    %v1762 = vmul.f32 %v1756, %v1759
    %v1763 = vmul.f32 %v1757, %v1759
    %v1764 = vadd.f32 %v1749, %v1760
    %v1765 = vadd.f32 %v1750, %v1761
    %v1766 = vadd.f32 %v1751, %v1762
    %v1767 = vadd.f32 %v1752, %v1763
    %s1768 = scalar_lea.vmem %s0, 1856
    %v1769 = vld [vmem:[%s1768] sm:$0xff]
    %v1770 = vld [vmem:[%s1768 + $0x8] sm:$0xff]
    %v1771 = vld [vmem:[%s1768 + $0x800] sm:$0xff]
    %v1772 = vld [vmem:[%s1768 + $0x808] sm:$0xff]
    %s1773 = sld [smem:[#allocation3 + $0x74]]
    %v1774 = vstv %s1773
    %v1775 = vmul.f32 %v1769, %v1774
    %v1776 = vmul.f32 %v1770, %v1774
    %v1777 = vmul.f32 %v1771, %v1774
    %v1778 = vmul.f32 %v1772, %v1774
    %v1779 = vadd.f32 %v1764, %v1775
    %v1780 = vadd.f32 %v1765, %v1776
    %v1781 = vadd.f32 %v1766, %v1777
    %v1782 = vadd.f32 %v1767, %v1778
    %s1783 = scalar_lea.vmem %s0, 1872
    %v1784 = vld [vmem:[%s1783] sm:$0xff]
    %v1785 = vld [vmem:[%s1783 + $0x8] sm:$0xff]
    %v1786 = vld [vmem:[%s1783 + $0x800] sm:$0xff]
    %v1787 = vld [vmem:[%s1783 + $0x808] sm:$0xff]
    %s1788 = sld [smem:[#allocation3 + $0x75]]
    %v1789 = vstv %s1788
    %v1790 = vmul.f32 %v1784, %v1789
    %v1791 = vmul.f32 %v1785, %v1789
    %v1792 = vmul.f32 %v1786, %v1789
    %v1793 = vmul.f32 %v1787, %v1789
    %v1794 = vadd.f32 %v1779, %v1790
    %v1795 = vadd.f32 %v1780, %v1791
    %v1796 = vadd.f32 %v1781, %v1792
    %v1797 = vadd.f32 %v1782, %v1793
    %s1798 = scalar_lea.vmem %s0, 1888
    %v1799 = vld [vmem:[%s1798] sm:$0xff]
    %v1800 = vld [vmem:[%s1798 + $0x8] sm:$0xff]
    %v1801 = vld [vmem:[%s1798 + $0x800] sm:$0xff]
    %v1802 = vld [vmem:[%s1798 + $0x808] sm:$0xff]
    %s1803 = sld [smem:[#allocation3 + $0x76]]
    %v1804 = vstv %s1803
    %v1805 = vmul.f32 %v1799, %v1804
    %v1806 = vmul.f32 %v1800, %v1804
    %v1807 = vmul.f32 %v1801, %v1804
    %v1808 = vmul.f32 %v1802, %v1804
    %v1809 = vadd.f32 %v1794, %v1805
    %v1810 = vadd.f32 %v1795, %v1806
    %v1811 = vadd.f32 %v1796, %v1807
    %v1812 = vadd.f32 %v1797, %v1808
    %s1813 = scalar_lea.vmem %s0, 1904
    %v1814 = vld [vmem:[%s1813] sm:$0xff]
    %v1815 = vld [vmem:[%s1813 + $0x8] sm:$0xff]
    %v1816 = vld [vmem:[%s1813 + $0x800] sm:$0xff]
    %v1817 = vld [vmem:[%s1813 + $0x808] sm:$0xff]
    %s1818 = sld [smem:[#allocation3 + $0x77]]
    %v1819 = vstv %s1818
    %v1820 = vmul.f32 %v1814, %v1819
    %v1821 = vmul.f32 %v1815, %v1819
    %v1822 = vmul.f32 %v1816, %v1819
    %v1823 = vmul.f32 %v1817, %v1819
    %v1824 = vadd.f32 %v1809, %v1820
    %v1825 = vadd.f32 %v1810, %v1821
    %v1826 = vadd.f32 %v1811, %v1822
    %v1827 = vadd.f32 %v1812, %v1823
    %s1828 = scalar_lea.vmem %s0, 1920
    %v1829 = vld [vmem:[%s1828] sm:$0xff]
    %v1830 = vld [vmem:[%s1828 + $0x8] sm:$0xff]
    %v1831 = vld [vmem:[%s1828 + $0x800] sm:$0xff]
    %v1832 = vld [vmem:[%s1828 + $0x808] sm:$0xff]
    %s1833 = sld [smem:[#allocation3 + $0x78]]
    %v1834 = vstv %s1833
    %v1835 = vmul.f32 %v1829, %v1834
    %v1836 = vmul.f32 %v1830, %v1834
    %v1837 = vmul.f32 %v1831, %v1834
    %v1838 = vmul.f32 %v1832, %v1834
    %v1839 = vadd.f32 %v1824, %v1835
    %v1840 = vadd.f32 %v1825, %v1836
    %v1841 = vadd.f32 %v1826, %v1837
    %v1842 = vadd.f32 %v1827, %v1838
    %s1843 = scalar_lea.vmem %s0, 1936
    %v1844 = vld [vmem:[%s1843] sm:$0xff]
    %v1845 = vld [vmem:[%s1843 + $0x8] sm:$0xff]
    %v1846 = vld [vmem:[%s1843 + $0x800] sm:$0xff]
    %v1847 = vld [vmem:[%s1843 + $0x808] sm:$0xff]
    %s1848 = sld [smem:[#allocation3 + $0x79]]
    %v1849 = vstv %s1848
    %v1850 = vmul.f32 %v1844, %v1849
    %v1851 = vmul.f32 %v1845, %v1849
    %v1852 = vmul.f32 %v1846, %v1849
    %v1853 = vmul.f32 %v1847, %v1849
    %v1854 = vadd.f32 %v1839, %v1850
    %v1855 = vadd.f32 %v1840, %v1851
    %v1856 = vadd.f32 %v1841, %v1852
    %v1857 = vadd.f32 %v1842, %v1853
    %s1858 = scalar_lea.vmem %s0, 1952
    %v1859 = vld [vmem:[%s1858] sm:$0xff]
    %v1860 = vld [vmem:[%s1858 + $0x8] sm:$0xff]
    %v1861 = vld [vmem:[%s1858 + $0x800] sm:$0xff]
    %v1862 = vld [vmem:[%s1858 + $0x808] sm:$0xff]
    %s1863 = sld [smem:[#allocation3 + $0x7a]]
    %v1864 = vstv %s1863
    %v1865 = vmul.f32 %v1859, %v1864
    %v1866 = vmul.f32 %v1860, %v1864
    %v1867 = vmul.f32 %v1861, %v1864
    %v1868 = vmul.f32 %v1862, %v1864
    %v1869 = vadd.f32 %v1854, %v1865
    %v1870 = vadd.f32 %v1855, %v1866
    %v1871 = vadd.f32 %v1856, %v1867
    %v1872 = vadd.f32 %v1857, %v1868
    %s1873 = scalar_lea.vmem %s0, 1968
    %v1874 = vld [vmem:[%s1873] sm:$0xff]
    %v1875 = vld [vmem:[%s1873 + $0x8] sm:$0xff]
    %v1876 = vld [vmem:[%s1873 + $0x800] sm:$0xff]
    %v1877 = vld [vmem:[%s1873 + $0x808] sm:$0xff]
    %s1878 = sld [smem:[#allocation3 + $0x7b]]
    %v1879 = vstv %s1878
    %v1880 = vmul.f32 %v1874, %v1879
    %v1881 = vmul.f32 %v1875, %v1879
    %v1882 = vmul.f32 %v1876, %v1879
    %v1883 = vmul.f32 %v1877, %v1879
    %v1884 = vadd.f32 %v1869, %v1880
    %v1885 = vadd.f32 %v1870, %v1881
    %v1886 = vadd.f32 %v1871, %v1882
    %v1887 = vadd.f32 %v1872, %v1883
    %s1888 = scalar_lea.vmem %s0, 1984
    %v1889 = vld [vmem:[%s1888] sm:$0xff]
    %v1890 = vld [vmem:[%s1888 + $0x8] sm:$0xff]
    %v1891 = vld [vmem:[%s1888 + $0x800] sm:$0xff]
    %v1892 = vld [vmem:[%s1888 + $0x808] sm:$0xff]
    %s1893 = sld [smem:[#allocation3 + $0x7c]]
    %v1894 = vstv %s1893
    %v1895 = vmul.f32 %v1889, %v1894
    %v1896 = vmul.f32 %v1890, %v1894
    %v1897 = vmul.f32 %v1891, %v1894
    %v1898 = vmul.f32 %v1892, %v1894
    %v1899 = vadd.f32 %v1884, %v1895
    %v1900 = vadd.f32 %v1885, %v1896
    %v1901 = vadd.f32 %v1886, %v1897
    %v1902 = vadd.f32 %v1887, %v1898
    %s1903 = scalar_lea.vmem %s0, 2000
    %v1904 = vld [vmem:[%s1903] sm:$0xff]
    %v1905 = vld [vmem:[%s1903 + $0x8] sm:$0xff]
    %v1906 = vld [vmem:[%s1903 + $0x800] sm:$0xff]
    %v1907 = vld [vmem:[%s1903 + $0x808] sm:$0xff]
    %s1908 = sld [smem:[#allocation3 + $0x7d]]
    %v1909 = vstv %s1908
    %v1910 = vmul.f32 %v1904, %v1909
    %v1911 = vmul.f32 %v1905, %v1909
    %v1912 = vmul.f32 %v1906, %v1909
    %v1913 = vmul.f32 %v1907, %v1909
    %v1914 = vadd.f32 %v1899, %v1910
    %v1915 = vadd.f32 %v1900, %v1911
    %v1916 = vadd.f32 %v1901, %v1912
    %v1917 = vadd.f32 %v1902, %v1913
    %s1918 = scalar_lea.vmem %s0, 2016
    %v1919 = vld [vmem:[%s1918] sm:$0xff]
    %v1920 = vld [vmem:[%s1918 + $0x8] sm:$0xff]
    %v1921 = vld [vmem:[%s1918 + $0x800] sm:$0xff]
    %v1922 = vld [vmem:[%s1918 + $0x808] sm:$0xff]
    %s1923 = sld [smem:[#allocation3 + $0x7e]]
    %v1924 = vstv %s1923
    %v1925 = vmul.f32 %v1919, %v1924
    %v1926 = vmul.f32 %v1920, %v1924
    %v1927 = vmul.f32 %v1921, %v1924
    %v1928 = vmul.f32 %v1922, %v1924
    %v1929 = vadd.f32 %v1914, %v1925
    %v1930 = vadd.f32 %v1915, %v1926
    %v1931 = vadd.f32 %v1916, %v1927
    %v1932 = vadd.f32 %v1917, %v1928
    %s1933 = scalar_lea.vmem %s0, 2032
    %v1934 = vld [vmem:[%s1933] sm:$0xff]
    %v1935 = vld [vmem:[%s1933 + $0x8] sm:$0xff]
    %v1936 = vld [vmem:[%s1933 + $0x800] sm:$0xff]
    %v1937 = vld [vmem:[%s1933 + $0x808] sm:$0xff]
    %s1938 = sld [smem:[#allocation3 + $0x7f]]
    %v1939 = vstv %s1938
    %v1940 = vmul.f32 %v1934, %v1939
    %v1941 = vmul.f32 %v1935, %v1939
    %v1942 = vmul.f32 %v1936, %v1939
    %v1943 = vmul.f32 %v1937, %v1939
    %v1944 = vadd.f32 %v1929, %v1940
    %v1945 = vadd.f32 %v1930, %v1941
    %v1946 = vadd.f32 %v1931, %v1942
    %v1947 = vadd.f32 %v1932, %v1943
    %v1952 = vrot.slane %v1944, 2
    %v1953 = vrot.slane %v1944, 4
    %v1954 = vrot.slane %v1944, 6
    %v1955 = vrot.slane %v1945, 2
    %v1956 = vrot.slane %v1945, 4
    %v1957 = vrot.slane %v1945, 6
    %v1958 = vrot.slane %v1946, 2
    %v1959 = vrot.slane %v1946, 4
    %v1960 = vrot.slane %v1946, 6
    %v1961 = vrot.slane %v1947, 2
    %v1962 = vrot.slane %v1947, 4
    %v1963 = vrot.slane %v1947, 6
    %vm1976 = vcmask 123904
    %v1977 = vsel %vm1976, %v1944, -inf
    %v1978 = vrot.slane %v1977, 4
    %v1979 = vmax.f32 %v1977, %v1978
    %v1980 = vrot.slane %v1979, 2
    %v1981 = vmax.f32 %v1979, %v1980
    %v1982 = vrot.slane %v1981, 1
    %v1983 = vmax.f32 %v1981, %v1982
    %v1984 = vsel %vm1976, %v1952, -inf
    %v1985 = vrot.slane %v1984, 4
    %v1986 = vmax.f32 %v1984, %v1985
    %v1987 = vrot.slane %v1986, 2
    %v1988 = vmax.f32 %v1986, %v1987
    %v1989 = vrot.slane %v1988, 1
    %v1990 = vmax.f32 %v1988, %v1989
    %v1991 = vsel %vm1976, %v1953, -inf
    %v1992 = vrot.slane %v1991, 4
    %v1993 = vmax.f32 %v1991, %v1992
    %v1994 = vrot.slane %v1993, 2
    %v1995 = vmax.f32 %v1993, %v1994
    %v1996 = vrot.slane %v1995, 1
    %v1997 = vmax.f32 %v1995, %v1996
    %v1998 = vsel %vm1976, %v1954, -inf
    %v1999 = vrot.slane %v1998, 4
    %v2000 = vmax.f32 %v1998, %v1999
    %v2001 = vrot.slane %v2000, 2
    %v2002 = vmax.f32 %v2000, %v2001
    %v2003 = vrot.slane %v2002, 1
    %v2004 = vmax.f32 %v2002, %v2003
    %v2005 = vsel %vm1976, %v1945, -inf
    %v2006 = vrot.slane %v2005, 4
    %v2007 = vmax.f32 %v2005, %v2006
    %v2008 = vrot.slane %v2007, 2
    %v2009 = vmax.f32 %v2007, %v2008
    %v2010 = vrot.slane %v2009, 1
    %v2011 = vmax.f32 %v2009, %v2010
    %v2012 = vsel %vm1976, %v1955, -inf
    %v2013 = vrot.slane %v2012, 4
    %v2014 = vmax.f32 %v2012, %v2013
    %v2015 = vrot.slane %v2014, 2
    %v2016 = vmax.f32 %v2014, %v2015
    %v2017 = vrot.slane %v2016, 1
    %v2018 = vmax.f32 %v2016, %v2017
    %v2019 = vsel %vm1976, %v1956, -inf
    %v2020 = vrot.slane %v2019, 4
    %v2021 = vmax.f32 %v2019, %v2020
    %v2022 = vrot.slane %v2021, 2
    %v2023 = vmax.f32 %v2021, %v2022
    %v2024 = vrot.slane %v2023, 1
    %v2025 = vmax.f32 %v2023, %v2024
    %v2026 = vsel %vm1976, %v1957, -inf
    %v2027 = vrot.slane %v2026, 4
    %v2028 = vmax.f32 %v2026, %v2027
    %v2029 = vrot.slane %v2028, 2
    %v2030 = vmax.f32 %v2028, %v2029
    %v2031 = vrot.slane %v2030, 1
    %v2032 = vmax.f32 %v2030, %v2031
    %v2033 = vsel %vm1976, %v1946, -inf
    %v2034 = vrot.slane %v2033, 4
    %v2035 = vmax.f32 %v2033, %v2034
    %v2036 = vrot.slane %v2035, 2
    %v2037 = vmax.f32 %v2035, %v2036
    %v2038 = vrot.slane %v2037, 1
    %v2039 = vmax.f32 %v2037, %v2038
    %v2040 = vsel %vm1976, %v1958, -inf
    %v2041 = vrot.slane %v2040, 4
    %v2042 = vmax.f32 %v2040, %v2041
    %v2043 = vrot.slane %v2042, 2
    %v2044 = vmax.f32 %v2042, %v2043
    %v2045 = vrot.slane %v2044, 1
    %v2046 = vmax.f32 %v2044, %v2045
    %v2047 = vsel %vm1976, %v1959, -inf
    %v2048 = vrot.slane %v2047, 4
    %v2049 = vmax.f32 %v2047, %v2048
    %v2050 = vrot.slane %v2049, 2
    %v2051 = vmax.f32 %v2049, %v2050
    %v2052 = vrot.slane %v2051, 1
    %v2053 = vmax.f32 %v2051, %v2052
    %v2054 = vsel %vm1976, %v1960, -inf
    %v2055 = vrot.slane %v2054, 4
    %v2056 = vmax.f32 %v2054, %v2055
    %v2057 = vrot.slane %v2056, 2
    %v2058 = vmax.f32 %v2056, %v2057
    %v2059 = vrot.slane %v2058, 1
    %v2060 = vmax.f32 %v2058, %v2059
    %v2061 = vsel %vm1976, %v1947, -inf
    %v2062 = vrot.slane %v2061, 4
    %v2063 = vmax.f32 %v2061, %v2062
    %v2064 = vrot.slane %v2063, 2
    %v2065 = vmax.f32 %v2063, %v2064
    %v2066 = vrot.slane %v2065, 1
    %v2067 = vmax.f32 %v2065, %v2066
    %v2068 = vsel %vm1976, %v1961, -inf
    %v2069 = vrot.slane %v2068, 4
    %v2070 = vmax.f32 %v2068, %v2069
    %v2071 = vrot.slane %v2070, 2
    %v2072 = vmax.f32 %v2070, %v2071
    %v2073 = vrot.slane %v2072, 1
    %v2074 = vmax.f32 %v2072, %v2073
    %v2075 = vsel %vm1976, %v1962, -inf
    %v2076 = vrot.slane %v2075, 4
    %v2077 = vmax.f32 %v2075, %v2076
    %v2078 = vrot.slane %v2077, 2
    %v2079 = vmax.f32 %v2077, %v2078
    %v2080 = vrot.slane %v2079, 1
    %v2081 = vmax.f32 %v2079, %v2080
    %v2082 = vsel %vm1976, %v1963, -inf
    %v2083 = vrot.slane %v2082, 4
    %v2084 = vmax.f32 %v2082, %v2083
    %v2085 = vrot.slane %v2084, 2
    %v2086 = vmax.f32 %v2084, %v2085
    %v2087 = vrot.slane %v2086, 1
    %v2088 = vmax.f32 %v2086, %v2087
    %2105 = vrot.lane.b32.xlu0 %v1983, 126
    %v2106 = vpop.permute.xlu0 %2105
    %2107 = vrot.lane.b32.xlu0 %v1990, 126
    %v2108 = vpop.permute.xlu0 %2107
    %2109 = vrot.lane.b32.xlu0 %v1997, 126
    %v2110 = vpop.permute.xlu0 %2109
    %2111 = vrot.lane.b32.xlu0 %v2004, 126
    %v2112 = vpop.permute.xlu0 %2111
    %2113 = vrot.lane.b32.xlu0 %v2011, 126
    %v2114 = vpop.permute.xlu0 %2113
    %2115 = vrot.lane.b32.xlu0 %v2018, 126
    %v2116 = vpop.permute.xlu0 %2115
    %2117 = vrot.lane.b32.xlu0 %v2025, 126
    %v2118 = vpop.permute.xlu0 %2117
    %2119 = vrot.lane.b32.xlu0 %v2032, 126
    %v2120 = vpop.permute.xlu0 %2119
    %2121 = vrot.lane.b32.xlu0 %v2039, 126
    %v2122 = vpop.permute.xlu0 %2121
    %2123 = vrot.lane.b32.xlu0 %v2046, 126
    %v2124 = vpop.permute.xlu0 %2123
    %2125 = vrot.lane.b32.xlu0 %v2053, 126
    %v2126 = vpop.permute.xlu0 %2125
    %2127 = vrot.lane.b32.xlu0 %v2060, 126
    %v2128 = vpop.permute.xlu0 %2127
    %2129 = vrot.lane.b32.xlu0 %v2067, 126
    %v2130 = vpop.permute.xlu0 %2129
    %2131 = vrot.lane.b32.xlu0 %v2074, 126
    %v2132 = vpop.permute.xlu0 %2131
    %2133 = vrot.lane.b32.xlu0 %v2081, 126
    %v2134 = vpop.permute.xlu0 %2133
    %2135 = vrot.lane.b32.xlu0 %v2088, 126
    %v2136 = vpop.permute.xlu0 %2135
    %2137 = vrot.lane.b32.xlu0 %v1983, 124
    %v2138 = vpop.permute.xlu0 %2137
    %2139 = vrot.lane.b32.xlu0 %v1990, 124
    %v2140 = vpop.permute.xlu0 %2139
    %2141 = vrot.lane.b32.xlu0 %v1997, 124
    %v2142 = vpop.permute.xlu0 %2141
    %2143 = vrot.lane.b32.xlu0 %v2004, 124
    %v2144 = vpop.permute.xlu0 %2143
    %2145 = vrot.lane.b32.xlu0 %v2011, 124
    %v2146 = vpop.permute.xlu0 %2145
    %2147 = vrot.lane.b32.xlu0 %v2018, 124
    %v2148 = vpop.permute.xlu0 %2147
    %2149 = vrot.lane.b32.xlu0 %v2025, 124
    %v2150 = vpop.permute.xlu0 %2149
    %2151 = vrot.lane.b32.xlu0 %v2032, 124
    %v2152 = vpop.permute.xlu0 %2151
    %2153 = vrot.lane.b32.xlu0 %v2039, 124
    %v2154 = vpop.permute.xlu0 %2153
    %2155 = vrot.lane.b32.xlu0 %v2046, 124
    %v2156 = vpop.permute.xlu0 %2155
    %2157 = vrot.lane.b32.xlu0 %v2053, 124
    %v2158 = vpop.permute.xlu0 %2157
    %2159 = vrot.lane.b32.xlu0 %v2060, 124
    %v2160 = vpop.permute.xlu0 %2159
    %2161 = vrot.lane.b32.xlu0 %v2067, 124
    %v2162 = vpop.permute.xlu0 %2161
    %2163 = vrot.lane.b32.xlu0 %v2074, 124
    %v2164 = vpop.permute.xlu0 %2163
    %2165 = vrot.lane.b32.xlu0 %v2081, 124
    %v2166 = vpop.permute.xlu0 %2165
    %2167 = vrot.lane.b32.xlu0 %v2088, 124
    %v2168 = vpop.permute.xlu0 %2167
    %2169 = vrot.lane.b32.xlu0 %v1983, 122
    %v2170 = vpop.permute.xlu0 %2169
    %2171 = vrot.lane.b32.xlu0 %v1990, 122
    %v2172 = vpop.permute.xlu0 %2171
    %2173 = vrot.lane.b32.xlu0 %v1997, 122
    %v2174 = vpop.permute.xlu0 %2173
    %2175 = vrot.lane.b32.xlu0 %v2004, 122
    %v2176 = vpop.permute.xlu0 %2175
    %2177 = vrot.lane.b32.xlu0 %v2011, 122
    %v2178 = vpop.permute.xlu0 %2177
    %2179 = vrot.lane.b32.xlu0 %v2018, 122
    %v2180 = vpop.permute.xlu0 %2179
    %2181 = vrot.lane.b32.xlu0 %v2025, 122
    %v2182 = vpop.permute.xlu0 %2181
    %2183 = vrot.lane.b32.xlu0 %v2032, 122
    %v2184 = vpop.permute.xlu0 %2183
    %2185 = vrot.lane.b32.xlu0 %v2039, 122
    %v2186 = vpop.permute.xlu0 %2185
    %2187 = vrot.lane.b32.xlu0 %v2046, 122
    %v2188 = vpop.permute.xlu0 %2187
    %2189 = vrot.lane.b32.xlu0 %v2053, 122
    %v2190 = vpop.permute.xlu0 %2189
    %2191 = vrot.lane.b32.xlu0 %v2060, 122
    %v2192 = vpop.permute.xlu0 %2191
    %2193 = vrot.lane.b32.xlu0 %v2067, 122
    %v2194 = vpop.permute.xlu0 %2193
    %2195 = vrot.lane.b32.xlu0 %v2074, 122
    %v2196 = vpop.permute.xlu0 %2195
    %2197 = vrot.lane.b32.xlu0 %v2081, 122
    %v2198 = vpop.permute.xlu0 %2197
    %2199 = vrot.lane.b32.xlu0 %v2088, 122
    %v2200 = vpop.permute.xlu0 %2199
    %2201 = vrot.lane.b32.xlu0 %v1983, 120
    %v2202 = vpop.permute.xlu0 %2201
    %2203 = vrot.lane.b32.xlu0 %v1990, 120
    %v2204 = vpop.permute.xlu0 %2203
    %2205 = vrot.lane.b32.xlu0 %v1997, 120
    %v2206 = vpop.permute.xlu0 %2205
    %2207 = vrot.lane.b32.xlu0 %v2004, 120
    %v2208 = vpop.permute.xlu0 %2207
    %2209 = vrot.lane.b32.xlu0 %v2011, 120
    %v2210 = vpop.permute.xlu0 %2209
    %2211 = vrot.lane.b32.xlu0 %v2018, 120
    %v2212 = vpop.permute.xlu0 %2211
    %2213 = vrot.lane.b32.xlu0 %v2025, 120
    %v2214 = vpop.permute.xlu0 %2213
    %2215 = vrot.lane.b32.xlu0 %v2032, 120
    %v2216 = vpop.permute.xlu0 %2215
    %2217 = vrot.lane.b32.xlu0 %v2039, 120
    %v2218 = vpop.permute.xlu0 %2217
    %2219 = vrot.lane.b32.xlu0 %v2046, 120
    %v2220 = vpop.permute.xlu0 %2219
    %2221 = vrot.lane.b32.xlu0 %v2053, 120
    %v2222 = vpop.permute.xlu0 %2221
    %2223 = vrot.lane.b32.xlu0 %v2060, 120
    %v2224 = vpop.permute.xlu0 %2223
    %2225 = vrot.lane.b32.xlu0 %v2067, 120
    %v2226 = vpop.permute.xlu0 %2225
    %2227 = vrot.lane.b32.xlu0 %v2074, 120
    %v2228 = vpop.permute.xlu0 %2227
    %2229 = vrot.lane.b32.xlu0 %v2081, 120
    %v2230 = vpop.permute.xlu0 %2229
    %2231 = vrot.lane.b32.xlu0 %v2088, 120
    %v2232 = vpop.permute.xlu0 %2231
    %2233 = vrot.lane.b32.xlu0 %v1983, 118
    %v2234 = vpop.permute.xlu0 %2233
    %2235 = vrot.lane.b32.xlu0 %v1990, 118
    %v2236 = vpop.permute.xlu0 %2235
    %2237 = vrot.lane.b32.xlu0 %v1997, 118
    %v2238 = vpop.permute.xlu0 %2237
    %2239 = vrot.lane.b32.xlu0 %v2004, 118
    %v2240 = vpop.permute.xlu0 %2239
    %2241 = vrot.lane.b32.xlu0 %v2011, 118
    %v2242 = vpop.permute.xlu0 %2241
    %2243 = vrot.lane.b32.xlu0 %v2018, 118
    %v2244 = vpop.permute.xlu0 %2243
    %2245 = vrot.lane.b32.xlu0 %v2025, 118
    %v2246 = vpop.permute.xlu0 %2245
    %2247 = vrot.lane.b32.xlu0 %v2032, 118
    %v2248 = vpop.permute.xlu0 %2247
    %2249 = vrot.lane.b32.xlu0 %v2039, 118
    %v2250 = vpop.permute.xlu0 %2249
    %2251 = vrot.lane.b32.xlu0 %v2046, 118
    %v2252 = vpop.permute.xlu0 %2251
    %2253 = vrot.lane.b32.xlu0 %v2053, 118
    %v2254 = vpop.permute.xlu0 %2253
    %2255 = vrot.lane.b32.xlu0 %v2060, 118
    %v2256 = vpop.permute.xlu0 %2255
    %2257 = vrot.lane.b32.xlu0 %v2067, 118
    %v2258 = vpop.permute.xlu0 %2257
    %2259 = vrot.lane.b32.xlu0 %v2074, 118
    %v2260 = vpop.permute.xlu0 %2259
    %2261 = vrot.lane.b32.xlu0 %v2081, 118
    %v2262 = vpop.permute.xlu0 %2261
    %2263 = vrot.lane.b32.xlu0 %v2088, 118
    %v2264 = vpop.permute.xlu0 %2263
    %2265 = vrot.lane.b32.xlu0 %v1983, 116
    %v2266 = vpop.permute.xlu0 %2265
    %2267 = vrot.lane.b32.xlu0 %v1990, 116
    %v2268 = vpop.permute.xlu0 %2267
    %2269 = vrot.lane.b32.xlu0 %v1997, 116
    %v2270 = vpop.permute.xlu0 %2269
    %2271 = vrot.lane.b32.xlu0 %v2004, 116
    %v2272 = vpop.permute.xlu0 %2271
    %2273 = vrot.lane.b32.xlu0 %v2011, 116
    %v2274 = vpop.permute.xlu0 %2273
    %2275 = vrot.lane.b32.xlu0 %v2018, 116
    %v2276 = vpop.permute.xlu0 %2275
    %2277 = vrot.lane.b32.xlu0 %v2025, 116
    %v2278 = vpop.permute.xlu0 %2277
    %2279 = vrot.lane.b32.xlu0 %v2032, 116
    %v2280 = vpop.permute.xlu0 %2279
    %2281 = vrot.lane.b32.xlu0 %v2039, 116
    %v2282 = vpop.permute.xlu0 %2281
    %2283 = vrot.lane.b32.xlu0 %v2046, 116
    %v2284 = vpop.permute.xlu0 %2283
    %2285 = vrot.lane.b32.xlu0 %v2053, 116
    %v2286 = vpop.permute.xlu0 %2285
    %2287 = vrot.lane.b32.xlu0 %v2060, 116
    %v2288 = vpop.permute.xlu0 %2287
    %2289 = vrot.lane.b32.xlu0 %v2067, 116
    %v2290 = vpop.permute.xlu0 %2289
    %2291 = vrot.lane.b32.xlu0 %v2074, 116
    %v2292 = vpop.permute.xlu0 %2291
    %2293 = vrot.lane.b32.xlu0 %v2081, 116
    %v2294 = vpop.permute.xlu0 %2293
    %2295 = vrot.lane.b32.xlu0 %v2088, 116
    %v2296 = vpop.permute.xlu0 %2295
    %2297 = vrot.lane.b32.xlu0 %v1983, 114
    %v2298 = vpop.permute.xlu0 %2297
    %2299 = vrot.lane.b32.xlu0 %v1990, 114
    %v2300 = vpop.permute.xlu0 %2299
    %2301 = vrot.lane.b32.xlu0 %v1997, 114
    %v2302 = vpop.permute.xlu0 %2301
    %2303 = vrot.lane.b32.xlu0 %v2004, 114
    %v2304 = vpop.permute.xlu0 %2303
    %2305 = vrot.lane.b32.xlu0 %v2011, 114
    %v2306 = vpop.permute.xlu0 %2305
    %2307 = vrot.lane.b32.xlu0 %v2018, 114
    %v2308 = vpop.permute.xlu0 %2307
    %2309 = vrot.lane.b32.xlu0 %v2025, 114
    %v2310 = vpop.permute.xlu0 %2309
    %2311 = vrot.lane.b32.xlu0 %v2032, 114
    %v2312 = vpop.permute.xlu0 %2311
    %2313 = vrot.lane.b32.xlu0 %v2039, 114
    %v2314 = vpop.permute.xlu0 %2313
    %2315 = vrot.lane.b32.xlu0 %v2046, 114
    %v2316 = vpop.permute.xlu0 %2315
    %2317 = vrot.lane.b32.xlu0 %v2053, 114
    %v2318 = vpop.permute.xlu0 %2317
    %2319 = vrot.lane.b32.xlu0 %v2060, 114
    %v2320 = vpop.permute.xlu0 %2319
    %2321 = vrot.lane.b32.xlu0 %v2067, 114
    %v2322 = vpop.permute.xlu0 %2321
    %2323 = vrot.lane.b32.xlu0 %v2074, 114
    %v2324 = vpop.permute.xlu0 %2323
    %2325 = vrot.lane.b32.xlu0 %v2081, 114
    %v2326 = vpop.permute.xlu0 %2325
    %2327 = vrot.lane.b32.xlu0 %v2088, 114
    %v2328 = vpop.permute.xlu0 %2327
    %v2329 = vrot.slane %v1990, 7
    %vm2330 = vcmask 1041409
    %v2331 = vsel %vm2330, %v2329, %v1983
    %v2332 = vrot.slane %v1997, 6
    %vm2333 = vcmask 1042434
    %v2334 = vsel %vm2333, %v2332, %v2331
    %v2335 = vrot.slane %v2004, 5
    %vm2336 = vcmask 1043459
    %v2337 = vsel %vm2336, %v2335, %v2334
    %v2338 = vrot.slane %v2011, 4
    %vm2339 = vcmask 1044484
    %v2340 = vsel %vm2339, %v2338, %v2337
    %v2341 = vrot.slane %v2018, 3
    %vm2342 = vcmask 1045509
    %v2343 = vsel %vm2342, %v2341, %v2340
    %v2344 = vrot.slane %v2025, 2
    %vm2345 = vcmask 1046534
    %v2346 = vsel %vm2345, %v2344, %v2343
    %v2347 = vrot.slane %v2032, 1
    %vm2348 = vcmask 1047559
    %v2349 = vsel %vm2348, %v2347, %v2346
    %v2350 = vrot.slane %v2108, 7
    %v2351 = vsel %vm2330, %v2350, %v2106
    %v2352 = vrot.slane %v2110, 6
    %v2353 = vsel %vm2333, %v2352, %v2351
    %v2354 = vrot.slane %v2112, 5
    %v2355 = vsel %vm2336, %v2354, %v2353
    %v2356 = vrot.slane %v2114, 4
    %v2357 = vsel %vm2339, %v2356, %v2355
    %v2358 = vrot.slane %v2116, 3
    %v2359 = vsel %vm2342, %v2358, %v2357
    %v2360 = vrot.slane %v2118, 2
    %v2361 = vsel %vm2345, %v2360, %v2359
    %v2362 = vrot.slane %v2120, 1
    %v2363 = vsel %vm2348, %v2362, %v2361
    %v2364 = vrot.slane %v2140, 7
    %v2365 = vsel %vm2330, %v2364, %v2138
    %v2366 = vrot.slane %v2142, 6
    %v2367 = vsel %vm2333, %v2366, %v2365
    %v2368 = vrot.slane %v2144, 5
    %v2369 = vsel %vm2336, %v2368, %v2367
    %v2370 = vrot.slane %v2146, 4
    %v2371 = vsel %vm2339, %v2370, %v2369
    %v2372 = vrot.slane %v2148, 3
    %v2373 = vsel %vm2342, %v2372, %v2371
    %v2374 = vrot.slane %v2150, 2
    %v2375 = vsel %vm2345, %v2374, %v2373
    %v2376 = vrot.slane %v2152, 1
    %v2377 = vsel %vm2348, %v2376, %v2375
    %v2378 = vrot.slane %v2172, 7
    %v2379 = vsel %vm2330, %v2378, %v2170
    %v2380 = vrot.slane %v2174, 6
    %v2381 = vsel %vm2333, %v2380, %v2379
    %v2382 = vrot.slane %v2176, 5
    %v2383 = vsel %vm2336, %v2382, %v2381
    %v2384 = vrot.slane %v2178, 4
    %v2385 = vsel %vm2339, %v2384, %v2383
    %v2386 = vrot.slane %v2180, 3
    %v2387 = vsel %vm2342, %v2386, %v2385
    %v2388 = vrot.slane %v2182, 2
    %v2389 = vsel %vm2345, %v2388, %v2387
    %v2390 = vrot.slane %v2184, 1
    %v2391 = vsel %vm2348, %v2390, %v2389
    %v2392 = vrot.slane %v2204, 7
    %v2393 = vsel %vm2330, %v2392, %v2202
    %v2394 = vrot.slane %v2206, 6
    %v2395 = vsel %vm2333, %v2394, %v2393
    %v2396 = vrot.slane %v2208, 5
    %v2397 = vsel %vm2336, %v2396, %v2395
    %v2398 = vrot.slane %v2210, 4
    %v2399 = vsel %vm2339, %v2398, %v2397
    %v2400 = vrot.slane %v2212, 3
    %v2401 = vsel %vm2342, %v2400, %v2399
    %v2402 = vrot.slane %v2214, 2
    %v2403 = vsel %vm2345, %v2402, %v2401
    %v2404 = vrot.slane %v2216, 1
    %v2405 = vsel %vm2348, %v2404, %v2403
    %v2406 = vrot.slane %v2236, 7
    %v2407 = vsel %vm2330, %v2406, %v2234
    %v2408 = vrot.slane %v2238, 6
    %v2409 = vsel %vm2333, %v2408, %v2407
    %v2410 = vrot.slane %v2240, 5
    %v2411 = vsel %vm2336, %v2410, %v2409
    %v2412 = vrot.slane %v2242, 4
    %v2413 = vsel %vm2339, %v2412, %v2411
    %v2414 = vrot.slane %v2244, 3
    %v2415 = vsel %vm2342, %v2414, %v2413
    %v2416 = vrot.slane %v2246, 2
    %v2417 = vsel %vm2345, %v2416, %v2415
    %v2418 = vrot.slane %v2248, 1
    %v2419 = vsel %vm2348, %v2418, %v2417
    %v2420 = vrot.slane %v2268, 7
    %v2421 = vsel %vm2330, %v2420, %v2266
    %v2422 = vrot.slane %v2270, 6
    %v2423 = vsel %vm2333, %v2422, %v2421
    %v2424 = vrot.slane %v2272, 5
    %v2425 = vsel %vm2336, %v2424, %v2423
    %v2426 = vrot.slane %v2274, 4
    %v2427 = vsel %vm2339, %v2426, %v2425
    %v2428 = vrot.slane %v2276, 3
    %v2429 = vsel %vm2342, %v2428, %v2427
    %v2430 = vrot.slane %v2278, 2
    %v2431 = vsel %vm2345, %v2430, %v2429
    %v2432 = vrot.slane %v2280, 1
    %v2433 = vsel %vm2348, %v2432, %v2431
    %v2434 = vrot.slane %v2300, 7
    %v2435 = vsel %vm2330, %v2434, %v2298
    %v2436 = vrot.slane %v2302, 6
    %v2437 = vsel %vm2333, %v2436, %v2435
    %v2438 = vrot.slane %v2304, 5
    %v2439 = vsel %vm2336, %v2438, %v2437
    %v2440 = vrot.slane %v2306, 4
    %v2441 = vsel %vm2339, %v2440, %v2439
    %v2442 = vrot.slane %v2308, 3
    %v2443 = vsel %vm2342, %v2442, %v2441
    %v2444 = vrot.slane %v2310, 2
    %v2445 = vsel %vm2345, %v2444, %v2443
    %v2446 = vrot.slane %v2312, 1
    %v2447 = vsel %vm2348, %v2446, %v2445
    %v2448 = vrot.slane %v2046, 7
    %v2449 = vsel %vm2330, %v2448, %v2039
    %v2450 = vrot.slane %v2053, 6
    %v2451 = vsel %vm2333, %v2450, %v2449
    %v2452 = vrot.slane %v2060, 5
    %v2453 = vsel %vm2336, %v2452, %v2451
    %v2454 = vrot.slane %v2067, 4
    %v2455 = vsel %vm2339, %v2454, %v2453
    %v2456 = vrot.slane %v2074, 3
    %v2457 = vsel %vm2342, %v2456, %v2455
    %v2458 = vrot.slane %v2081, 2
    %v2459 = vsel %vm2345, %v2458, %v2457
    %v2460 = vrot.slane %v2088, 1
    %v2461 = vsel %vm2348, %v2460, %v2459
    %v2462 = vrot.slane %v2124, 7
    %v2463 = vsel %vm2330, %v2462, %v2122
    %v2464 = vrot.slane %v2126, 6
    %v2465 = vsel %vm2333, %v2464, %v2463
    %v2466 = vrot.slane %v2128, 5
    %v2467 = vsel %vm2336, %v2466, %v2465
    %v2468 = vrot.slane %v2130, 4
    %v2469 = vsel %vm2339, %v2468, %v2467
    %v2470 = vrot.slane %v2132, 3
    %v2471 = vsel %vm2342, %v2470, %v2469
    %v2472 = vrot.slane %v2134, 2
    %v2473 = vsel %vm2345, %v2472, %v2471
    %v2474 = vrot.slane %v2136, 1
    %v2475 = vsel %vm2348, %v2474, %v2473
    %v2476 = vrot.slane %v2156, 7
    %v2477 = vsel %vm2330, %v2476, %v2154
    %v2478 = vrot.slane %v2158, 6
    %v2479 = vsel %vm2333, %v2478, %v2477
    %v2480 = vrot.slane %v2160, 5
    %v2481 = vsel %vm2336, %v2480, %v2479
    %v2482 = vrot.slane %v2162, 4
    %v2483 = vsel %vm2339, %v2482, %v2481
    %v2484 = vrot.slane %v2164, 3
    %v2485 = vsel %vm2342, %v2484, %v2483
    %v2486 = vrot.slane %v2166, 2
    %v2487 = vsel %vm2345, %v2486, %v2485
    %v2488 = vrot.slane %v2168, 1
    %v2489 = vsel %vm2348, %v2488, %v2487
    %v2490 = vrot.slane %v2188, 7
    %v2491 = vsel %vm2330, %v2490, %v2186
    %v2492 = vrot.slane %v2190, 6
    %v2493 = vsel %vm2333, %v2492, %v2491
    %v2494 = vrot.slane %v2192, 5
    %v2495 = vsel %vm2336, %v2494, %v2493
    %v2496 = vrot.slane %v2194, 4
    %v2497 = vsel %vm2339, %v2496, %v2495
    %v2498 = vrot.slane %v2196, 3
    %v2499 = vsel %vm2342, %v2498, %v2497
    %v2500 = vrot.slane %v2198, 2
    %v2501 = vsel %vm2345, %v2500, %v2499
    %v2502 = vrot.slane %v2200, 1
    %v2503 = vsel %vm2348, %v2502, %v2501
    %v2504 = vrot.slane %v2220, 7
    %v2505 = vsel %vm2330, %v2504, %v2218
    %v2506 = vrot.slane %v2222, 6
    %v2507 = vsel %vm2333, %v2506, %v2505
    %v2508 = vrot.slane %v2224, 5
    %v2509 = vsel %vm2336, %v2508, %v2507
    %v2510 = vrot.slane %v2226, 4
    %v2511 = vsel %vm2339, %v2510, %v2509
    %v2512 = vrot.slane %v2228, 3
    %v2513 = vsel %vm2342, %v2512, %v2511
    %v2514 = vrot.slane %v2230, 2
    %v2515 = vsel %vm2345, %v2514, %v2513
    %v2516 = vrot.slane %v2232, 1
    %v2517 = vsel %vm2348, %v2516, %v2515
    %v2518 = vrot.slane %v2252, 7
    %v2519 = vsel %vm2330, %v2518, %v2250
    %v2520 = vrot.slane %v2254, 6
    %v2521 = vsel %vm2333, %v2520, %v2519
    %v2522 = vrot.slane %v2256, 5
    %v2523 = vsel %vm2336, %v2522, %v2521
    %v2524 = vrot.slane %v2258, 4
    %v2525 = vsel %vm2339, %v2524, %v2523
    %v2526 = vrot.slane %v2260, 3
    %v2527 = vsel %vm2342, %v2526, %v2525
    %v2528 = vrot.slane %v2262, 2
    %v2529 = vsel %vm2345, %v2528, %v2527
    %v2530 = vrot.slane %v2264, 1
    %v2531 = vsel %vm2348, %v2530, %v2529
    %v2532 = vrot.slane %v2284, 7
    %v2533 = vsel %vm2330, %v2532, %v2282
    %v2534 = vrot.slane %v2286, 6
    %v2535 = vsel %vm2333, %v2534, %v2533
    %v2536 = vrot.slane %v2288, 5
    %v2537 = vsel %vm2336, %v2536, %v2535
    %v2538 = vrot.slane %v2290, 4
    %v2539 = vsel %vm2339, %v2538, %v2537
    %v2540 = vrot.slane %v2292, 3
    %v2541 = vsel %vm2342, %v2540, %v2539
    %v2542 = vrot.slane %v2294, 2
    %v2543 = vsel %vm2345, %v2542, %v2541
    %v2544 = vrot.slane %v2296, 1
    %v2545 = vsel %vm2348, %v2544, %v2543
    %v2546 = vrot.slane %v2316, 7
    %v2547 = vsel %vm2330, %v2546, %v2314
    %v2548 = vrot.slane %v2318, 6
    %v2549 = vsel %vm2333, %v2548, %v2547
    %v2550 = vrot.slane %v2320, 5
    %v2551 = vsel %vm2336, %v2550, %v2549
    %v2552 = vrot.slane %v2322, 4
    %v2553 = vsel %vm2339, %v2552, %v2551
    %v2554 = vrot.slane %v2324, 3
    %v2555 = vsel %vm2342, %v2554, %v2553
    %v2556 = vrot.slane %v2326, 2
    %v2557 = vsel %vm2345, %v2556, %v2555
    %v2558 = vrot.slane %v2328, 1
    %v2559 = vsel %vm2348, %v2558, %v2557
    %v2576 = vrot.slane %v2377, 4
    %vm2577 = vcmask 1047556
    %v2578 = vsel %vm2577, %v2576, %v2349
    %v2579 = vrot.slane %v2349, 4
    %v2580 = vsel %vm2577, %v2377, %v2579
    %v2582 = vunpack.c.l.s4 1983009808
    %v2583 = vunpack.c.0.s8 %v2582
    %v2584 = vperm.slane %v2578, %v2583
    %v2586 = vunpack.c.l.s4 1983009808
    %v2587 = vunpack.c.0.s8 %v2586
    %v2588 = vperm.slane %v2580, %v2587
    %v2589 = vrot.slane %v2391, 4
    %v2590 = vsel %vm2577, %v2589, %v2363
    %v2591 = vrot.slane %v2363, 4
    %v2592 = vsel %vm2577, %v2391, %v2591
    %v2594 = vunpack.c.l.s4 1983009808
    %v2595 = vunpack.c.0.s8 %v2594
    %v2596 = vperm.slane %v2590, %v2595
    %v2598 = vunpack.c.l.s4 1983009808
    %v2599 = vunpack.c.0.s8 %v2598
    %v2600 = vperm.slane %v2592, %v2599
    %v2601 = vrot.slane %v2433, 4
    %v2602 = vsel %vm2577, %v2601, %v2405
    %v2603 = vrot.slane %v2405, 4
    %v2604 = vsel %vm2577, %v2433, %v2603
    %v2606 = vunpack.c.l.s4 1983009808
    %v2607 = vunpack.c.0.s8 %v2606
    %v2608 = vperm.slane %v2602, %v2607
    %v2610 = vunpack.c.l.s4 1983009808
    %v2611 = vunpack.c.0.s8 %v2610
    %v2612 = vperm.slane %v2604, %v2611
    %v2613 = vrot.slane %v2447, 4
    %v2614 = vsel %vm2577, %v2613, %v2419
    %v2615 = vrot.slane %v2419, 4
    %v2616 = vsel %vm2577, %v2447, %v2615
    %v2618 = vunpack.c.l.s4 1983009808
    %v2619 = vunpack.c.0.s8 %v2618
    %v2620 = vperm.slane %v2614, %v2619
    %v2622 = vunpack.c.l.s4 1983009808
    %v2623 = vunpack.c.0.s8 %v2622
    %v2624 = vperm.slane %v2616, %v2623
    %v2625 = vrot.slane %v2596, 4
    %v2626 = vsel %vm2577, %v2625, %v2584
    %v2627 = vrot.slane %v2584, 4
    %v2628 = vsel %vm2577, %v2596, %v2627
    %v2630 = vunpack.c.l.s4 1934713408
    %v2631 = vunpack.c.0.s8 %v2630
    %v2632 = vperm.slane %v2626, %v2631
    %v2634 = vunpack.c.l.s4 1934713408
    %v2635 = vunpack.c.0.s8 %v2634
    %v2636 = vperm.slane %v2628, %v2635
    %v2637 = vrot.slane %v2600, 4
    %v2638 = vsel %vm2577, %v2637, %v2588
    %v2639 = vrot.slane %v2588, 4
    %v2640 = vsel %vm2577, %v2600, %v2639
    %v2642 = vunpack.c.l.s4 1934713408
    %v2643 = vunpack.c.0.s8 %v2642
    %v2644 = vperm.slane %v2638, %v2643
    %v2646 = vunpack.c.l.s4 1934713408
    %v2647 = vunpack.c.0.s8 %v2646
    %v2648 = vperm.slane %v2640, %v2647
    %v2649 = vrot.slane %v2620, 4
    %v2650 = vsel %vm2577, %v2649, %v2608
    %v2651 = vrot.slane %v2608, 4
    %v2652 = vsel %vm2577, %v2620, %v2651
    %v2654 = vunpack.c.l.s4 1934713408
    %v2655 = vunpack.c.0.s8 %v2654
    %v2656 = vperm.slane %v2650, %v2655
    %v2658 = vunpack.c.l.s4 1934713408
    %v2659 = vunpack.c.0.s8 %v2658
    %v2660 = vperm.slane %v2652, %v2659
    %v2661 = vrot.slane %v2624, 4
    %v2662 = vsel %vm2577, %v2661, %v2612
    %v2663 = vrot.slane %v2612, 4
    %v2664 = vsel %vm2577, %v2624, %v2663
    %v2666 = vunpack.c.l.s4 1934713408
    %v2667 = vunpack.c.0.s8 %v2666
    %v2668 = vperm.slane %v2662, %v2667
    %v2670 = vunpack.c.l.s4 1934713408
    %v2671 = vunpack.c.0.s8 %v2670
    %v2672 = vperm.slane %v2664, %v2671
    %v2673 = vrot.slane %v2656, 4
    %v2674 = vsel %vm2577, %v2673, %v2632
    %v2675 = vrot.slane %v2632, 4
    %v2676 = vsel %vm2577, %v2656, %v2675
    %v2677 = vrot.slane %v2660, 4
    %v2678 = vsel %vm2577, %v2677, %v2636
    %v2679 = vrot.slane %v2636, 4
    %v2680 = vsel %vm2577, %v2660, %v2679
    %v2681 = vrot.slane %v2668, 4
    %v2682 = vsel %vm2577, %v2681, %v2644
    %v2683 = vrot.slane %v2644, 4
    %v2684 = vsel %vm2577, %v2668, %v2683
    %v2685 = vrot.slane %v2672, 4
    %v2686 = vsel %vm2577, %v2685, %v2648
    %v2687 = vrot.slane %v2648, 4
    %v2688 = vsel %vm2577, %v2672, %v2687
    %v2689 = vrot.slane %v2489, 4
    %v2690 = vsel %vm2577, %v2689, %v2461
    %v2691 = vrot.slane %v2461, 4
    %v2692 = vsel %vm2577, %v2489, %v2691
    %v2694 = vunpack.c.l.s4 1983009808
    %v2695 = vunpack.c.0.s8 %v2694
    %v2696 = vperm.slane %v2690, %v2695
    %v2698 = vunpack.c.l.s4 1983009808
    %v2699 = vunpack.c.0.s8 %v2698
    %v2700 = vperm.slane %v2692, %v2699
    %v2701 = vrot.slane %v2503, 4
    %v2702 = vsel %vm2577, %v2701, %v2475
    %v2703 = vrot.slane %v2475, 4
    %v2704 = vsel %vm2577, %v2503, %v2703
    %v2706 = vunpack.c.l.s4 1983009808
    %v2707 = vunpack.c.0.s8 %v2706
    %v2708 = vperm.slane %v2702, %v2707
    %v2710 = vunpack.c.l.s4 1983009808
    %v2711 = vunpack.c.0.s8 %v2710
    %v2712 = vperm.slane %v2704, %v2711
    %v2713 = vrot.slane %v2545, 4
    %v2714 = vsel %vm2577, %v2713, %v2517
    %v2715 = vrot.slane %v2517, 4
    %v2716 = vsel %vm2577, %v2545, %v2715
    %v2718 = vunpack.c.l.s4 1983009808
    %v2719 = vunpack.c.0.s8 %v2718
    %v2720 = vperm.slane %v2714, %v2719
    %v2722 = vunpack.c.l.s4 1983009808
    %v2723 = vunpack.c.0.s8 %v2722
    %v2724 = vperm.slane %v2716, %v2723
    %v2725 = vrot.slane %v2559, 4
    %v2726 = vsel %vm2577, %v2725, %v2531
    %v2727 = vrot.slane %v2531, 4
    %v2728 = vsel %vm2577, %v2559, %v2727
    %v2730 = vunpack.c.l.s4 1983009808
    %v2731 = vunpack.c.0.s8 %v2730
    %v2732 = vperm.slane %v2726, %v2731
    %v2734 = vunpack.c.l.s4 1983009808
    %v2735 = vunpack.c.0.s8 %v2734
    %v2736 = vperm.slane %v2728, %v2735
    %v2737 = vrot.slane %v2708, 4
    %v2738 = vsel %vm2577, %v2737, %v2696
    %v2739 = vrot.slane %v2696, 4
    %v2740 = vsel %vm2577, %v2708, %v2739
    %v2742 = vunpack.c.l.s4 1934713408
    %v2743 = vunpack.c.0.s8 %v2742
    %v2744 = vperm.slane %v2738, %v2743
    %v2746 = vunpack.c.l.s4 1934713408
    %v2747 = vunpack.c.0.s8 %v2746
    %v2748 = vperm.slane %v2740, %v2747
    %v2749 = vrot.slane %v2712, 4
    %v2750 = vsel %vm2577, %v2749, %v2700
    %v2751 = vrot.slane %v2700, 4
    %v2752 = vsel %vm2577, %v2712, %v2751
    %v2754 = vunpack.c.l.s4 1934713408
    %v2755 = vunpack.c.0.s8 %v2754
    %v2756 = vperm.slane %v2750, %v2755
    %v2758 = vunpack.c.l.s4 1934713408
    %v2759 = vunpack.c.0.s8 %v2758
    %v2760 = vperm.slane %v2752, %v2759
    %v2761 = vrot.slane %v2732, 4
    %v2762 = vsel %vm2577, %v2761, %v2720
    %v2763 = vrot.slane %v2720, 4
    %v2764 = vsel %vm2577, %v2732, %v2763
    %v2766 = vunpack.c.l.s4 1934713408
    %v2767 = vunpack.c.0.s8 %v2766
    %v2768 = vperm.slane %v2762, %v2767
    %v2770 = vunpack.c.l.s4 1934713408
    %v2771 = vunpack.c.0.s8 %v2770
    %v2772 = vperm.slane %v2764, %v2771
    %v2773 = vrot.slane %v2736, 4
    %v2774 = vsel %vm2577, %v2773, %v2724
    %v2775 = vrot.slane %v2724, 4
    %v2776 = vsel %vm2577, %v2736, %v2775
    %v2778 = vunpack.c.l.s4 1934713408
    %v2779 = vunpack.c.0.s8 %v2778
    %v2780 = vperm.slane %v2774, %v2779
    %v2782 = vunpack.c.l.s4 1934713408
    %v2783 = vunpack.c.0.s8 %v2782
    %v2784 = vperm.slane %v2776, %v2783
    %v2785 = vrot.slane %v2768, 4
    %v2786 = vsel %vm2577, %v2785, %v2744
    %v2787 = vrot.slane %v2744, 4
    %v2788 = vsel %vm2577, %v2768, %v2787
    %v2789 = vrot.slane %v2772, 4
    %v2790 = vsel %vm2577, %v2789, %v2748
    %v2791 = vrot.slane %v2748, 4
    %v2792 = vsel %vm2577, %v2772, %v2791
    %v2793 = vrot.slane %v2780, 4
    %v2794 = vsel %vm2577, %v2793, %v2756
    %v2795 = vrot.slane %v2756, 4
    %v2796 = vsel %vm2577, %v2780, %v2795
    %v2797 = vrot.slane %v2784, 4
    %v2798 = vsel %vm2577, %v2797, %v2760
    %v2799 = vrot.slane %v2760, 4
    %v2800 = vsel %vm2577, %v2784, %v2799
    %vm2801 = vcmask 15360
    %v2802 = vsel %vm2801, %v2674, -inf
    %2803 = vmax.xlane.f32.xlu0 %v2802
    %v2804 = vpop.xlane.xlu0 %2803
    %v2805 = vsel %vm2801, %v2676, -inf
    %2806 = vmax.xlane.f32.xlu0 %v2805
    %v2807 = vpop.xlane.xlu0 %2806
    %v2808 = vsel %vm2801, %v2678, -inf
    %2809 = vmax.xlane.f32.xlu0 %v2808
    %v2810 = vpop.xlane.xlu0 %2809
    %v2811 = vsel %vm2801, %v2680, -inf
    %2812 = vmax.xlane.f32.xlu0 %v2811
    %v2813 = vpop.xlane.xlu0 %2812
    %v2814 = vsel %vm2801, %v2682, -inf
    %2815 = vmax.xlane.f32.xlu0 %v2814
    %v2816 = vpop.xlane.xlu0 %2815
    %v2817 = vsel %vm2801, %v2684, -inf
    %2818 = vmax.xlane.f32.xlu0 %v2817
    %v2819 = vpop.xlane.xlu0 %2818
    %v2820 = vsel %vm2801, %v2686, -inf
    %2821 = vmax.xlane.f32.xlu0 %v2820
    %v2822 = vpop.xlane.xlu0 %2821
    %v2823 = vsel %vm2801, %v2688, -inf
    %2824 = vmax.xlane.f32.xlu0 %v2823
    %v2825 = vpop.xlane.xlu0 %2824
    %v2826 = vsel %vm2801, %v2786, -inf
    %2827 = vmax.xlane.f32.xlu0 %v2826
    %v2828 = vpop.xlane.xlu0 %2827
    %v2829 = vsel %vm2801, %v2788, -inf
    %2830 = vmax.xlane.f32.xlu0 %v2829
    %v2831 = vpop.xlane.xlu0 %2830
    %v2832 = vsel %vm2801, %v2790, -inf
    %2833 = vmax.xlane.f32.xlu0 %v2832
    %v2834 = vpop.xlane.xlu0 %2833
    %v2835 = vsel %vm2801, %v2792, -inf
    %2836 = vmax.xlane.f32.xlu0 %v2835
    %v2837 = vpop.xlane.xlu0 %2836
    %v2838 = vsel %vm2801, %v2794, -inf
    %2839 = vmax.xlane.f32.xlu0 %v2838
    %v2840 = vpop.xlane.xlu0 %2839
    %v2841 = vsel %vm2801, %v2796, -inf
    %2842 = vmax.xlane.f32.xlu0 %v2841
    %v2843 = vpop.xlane.xlu0 %2842
    %v2844 = vsel %vm2801, %v2798, -inf
    %2845 = vmax.xlane.f32.xlu0 %v2844
    %v2846 = vpop.xlane.xlu0 %2845
    %v2847 = vsel %vm2801, %v2800, -inf
    %2848 = vmax.xlane.f32.xlu0 %v2847
    %v2849 = vpop.xlane.xlu0 %2848
    %s2850 = sld [smem:[#allocation2]]
    %v2851 = vstv %s2850
    %v2852 = vadd.f32 %v2804, %v2851
    %v2853 = vadd.f32 %v2807, %v2851
    %v2854 = vadd.f32 %v2810, %v2851
    %v2855 = vadd.f32 %v2813, %v2851
    %v2856 = vadd.f32 %v2816, %v2851
    %v2857 = vadd.f32 %v2819, %v2851
    %v2858 = vadd.f32 %v2822, %v2851
    %v2859 = vadd.f32 %v2825, %v2851
    %v2860 = vadd.f32 %v2828, %v2851
    %v2861 = vadd.f32 %v2831, %v2851
    %v2862 = vadd.f32 %v2834, %v2851
    %v2863 = vadd.f32 %v2837, %v2851
    %v2864 = vadd.f32 %v2840, %v2851
    %v2865 = vadd.f32 %v2843, %v2851
    %v2866 = vadd.f32 %v2846, %v2851
    %v2867 = vadd.f32 %v2849, %v2851
    %v2868 = vxor.u32 %v2852, 2147483648
    %v2869 = vxor.u32 %v2853, 2147483648
    %v2870 = vxor.u32 %v2854, 2147483648
    %v2871 = vxor.u32 %v2855, 2147483648
    %v2872 = vxor.u32 %v2856, 2147483648
    %v2873 = vxor.u32 %v2857, 2147483648
    %v2874 = vxor.u32 %v2858, 2147483648
    %v2875 = vxor.u32 %v2859, 2147483648
    %v2876 = vxor.u32 %v2860, 2147483648
    %v2877 = vxor.u32 %v2861, 2147483648
    %v2878 = vxor.u32 %v2862, 2147483648
    %v2879 = vxor.u32 %v2863, 2147483648
    %v2880 = vxor.u32 %v2864, 2147483648
    %v2881 = vxor.u32 %v2865, 2147483648
    %v2882 = vxor.u32 %v2866, 2147483648
    %v2883 = vxor.u32 %v2867, 2147483648
    %v2884 = vmul.f32 %v2868, 1.442695
    %v2885 = vpow.pop %v2884
    %v2886 = vmul.f32 %v2869, 1.442695
    %v2887 = vpow.pop %v2886
    %v2888 = vmul.f32 %v2870, 1.442695
    %v2889 = vpow.pop %v2888
    %v2890 = vmul.f32 %v2871, 1.442695
    %v2891 = vpow.pop %v2890
    %v2892 = vmul.f32 %v2872, 1.442695
    %v2893 = vpow.pop %v2892
    %v2894 = vmul.f32 %v2873, 1.442695
    %v2895 = vpow.pop %v2894
    %v2896 = vmul.f32 %v2874, 1.442695
    %v2897 = vpow.pop %v2896
    %v2898 = vmul.f32 %v2875, 1.442695
    %v2899 = vpow.pop %v2898
    %v2900 = vmul.f32 %v2876, 1.442695
    %v2901 = vpow.pop %v2900
    %v2902 = vmul.f32 %v2877, 1.442695
    %v2903 = vpow.pop %v2902
    %v2904 = vmul.f32 %v2878, 1.442695
    %v2905 = vpow.pop %v2904
    %v2906 = vmul.f32 %v2879, 1.442695
    %v2907 = vpow.pop %v2906
    %v2908 = vmul.f32 %v2880, 1.442695
    %v2909 = vpow.pop %v2908
    %v2910 = vmul.f32 %v2881, 1.442695
    %v2911 = vpow.pop %v2910
    %v2912 = vmul.f32 %v2882, 1.442695
    %v2913 = vpow.pop %v2912
    %v2914 = vmul.f32 %v2883, 1.442695
    %v2915 = vpow.pop %v2914
    %v2916 = vadd.f32 %v2885, 1.0
    %v2917 = vadd.f32 %v2887, 1.0
    %v2918 = vadd.f32 %v2889, 1.0
    %v2919 = vadd.f32 %v2891, 1.0
    %v2920 = vadd.f32 %v2893, 1.0
    %v2921 = vadd.f32 %v2895, 1.0
    %v2922 = vadd.f32 %v2897, 1.0
    %v2923 = vadd.f32 %v2899, 1.0
    %v2924 = vadd.f32 %v2901, 1.0
    %v2925 = vadd.f32 %v2903, 1.0
    %v2926 = vadd.f32 %v2905, 1.0
    %v2927 = vadd.f32 %v2907, 1.0
    %v2928 = vadd.f32 %v2909, 1.0
    %v2929 = vadd.f32 %v2911, 1.0
    %v2930 = vadd.f32 %v2913, 1.0
    %v2931 = vadd.f32 %v2915, 1.0
    %v2932 = vrcp.pop %v2916
    %v2933 = vmul.f32 %v2916, %v2932
    %v2934 = vsub.f32 1.0, %v2933
    %v2935 = vmul.f32 %v2932, %v2934
    %v2936 = vadd.f32 %v2932, %v2935
    %vm2937 = vweird.f32 %v2916
    %vm2938 = vweird.f32 %v2932
    %vm2939 = vmor %vm2937, %vm2938
    %v2940 = vsel %vm2939, %v2932, %v2936
    %v2941 = vand.u32 2147483647, %v2916
    %vm2942 = vcmp.eq.f32.partialorder %v2941, 8.507059e+37
    %v2943 = vand.u32 %v2916, 2147483648
    %v2944 = vor.u32 1.1754944e-38, %v2943
    %v2945 = vsel %vm2942, %v2944, %v2940
    %v2946 = vmul.f32 1.0, %v2945
    %v2947 = vrcp.pop %v2917
    %v2948 = vmul.f32 %v2917, %v2947
    %v2949 = vsub.f32 1.0, %v2948
    %v2950 = vmul.f32 %v2947, %v2949
    %v2951 = vadd.f32 %v2947, %v2950
    %vm2952 = vweird.f32 %v2917
    %vm2953 = vweird.f32 %v2947
    %vm2954 = vmor %vm2952, %vm2953
    %v2955 = vsel %vm2954, %v2947, %v2951
    %v2956 = vand.u32 2147483647, %v2917
    %vm2957 = vcmp.eq.f32.partialorder %v2956, 8.507059e+37
    %v2958 = vand.u32 %v2917, 2147483648
    %v2959 = vor.u32 1.1754944e-38, %v2958
    %v2960 = vsel %vm2957, %v2959, %v2955
    %v2961 = vmul.f32 1.0, %v2960
    %v2962 = vrcp.pop %v2918
    %v2963 = vmul.f32 %v2918, %v2962
    %v2964 = vsub.f32 1.0, %v2963
    %v2965 = vmul.f32 %v2962, %v2964
    %v2966 = vadd.f32 %v2962, %v2965
    %vm2967 = vweird.f32 %v2918
    %vm2968 = vweird.f32 %v2962
    %vm2969 = vmor %vm2967, %vm2968
    %v2970 = vsel %vm2969, %v2962, %v2966
    %v2971 = vand.u32 2147483647, %v2918
    %vm2972 = vcmp.eq.f32.partialorder %v2971, 8.507059e+37
    %v2973 = vand.u32 %v2918, 2147483648
    %v2974 = vor.u32 1.1754944e-38, %v2973
    %v2975 = vsel %vm2972, %v2974, %v2970
    %v2976 = vmul.f32 1.0, %v2975
    %v2977 = vrcp.pop %v2919
    %v2978 = vmul.f32 %v2919, %v2977
    %v2979 = vsub.f32 1.0, %v2978
    %v2980 = vmul.f32 %v2977, %v2979
    %v2981 = vadd.f32 %v2977, %v2980
    %vm2982 = vweird.f32 %v2919
    %vm2983 = vweird.f32 %v2977
    %vm2984 = vmor %vm2982, %vm2983
    %v2985 = vsel %vm2984, %v2977, %v2981
    %v2986 = vand.u32 2147483647, %v2919
    %vm2987 = vcmp.eq.f32.partialorder %v2986, 8.507059e+37
    %v2988 = vand.u32 %v2919, 2147483648
    %v2989 = vor.u32 1.1754944e-38, %v2988
    %v2990 = vsel %vm2987, %v2989, %v2985
    %v2991 = vmul.f32 1.0, %v2990
    %v2992 = vrcp.pop %v2920
    %v2993 = vmul.f32 %v2920, %v2992
    %v2994 = vsub.f32 1.0, %v2993
    %v2995 = vmul.f32 %v2992, %v2994
    %v2996 = vadd.f32 %v2992, %v2995
    %vm2997 = vweird.f32 %v2920
    %vm2998 = vweird.f32 %v2992
    %vm2999 = vmor %vm2997, %vm2998
    %v3000 = vsel %vm2999, %v2992, %v2996
    %v3001 = vand.u32 2147483647, %v2920
    %vm3002 = vcmp.eq.f32.partialorder %v3001, 8.507059e+37
    %v3003 = vand.u32 %v2920, 2147483648
    %v3004 = vor.u32 1.1754944e-38, %v3003
    %v3005 = vsel %vm3002, %v3004, %v3000
    %v3006 = vmul.f32 1.0, %v3005
    %v3007 = vrcp.pop %v2921
    %v3008 = vmul.f32 %v2921, %v3007
    %v3009 = vsub.f32 1.0, %v3008
    %v3010 = vmul.f32 %v3007, %v3009
    %v3011 = vadd.f32 %v3007, %v3010
    %vm3012 = vweird.f32 %v2921
    %vm3013 = vweird.f32 %v3007
    %vm3014 = vmor %vm3012, %vm3013
    %v3015 = vsel %vm3014, %v3007, %v3011
    %v3016 = vand.u32 2147483647, %v2921
    %vm3017 = vcmp.eq.f32.partialorder %v3016, 8.507059e+37
    %v3018 = vand.u32 %v2921, 2147483648
    %v3019 = vor.u32 1.1754944e-38, %v3018
    %v3020 = vsel %vm3017, %v3019, %v3015
    %v3021 = vmul.f32 1.0, %v3020
    %v3022 = vrcp.pop %v2922
    %v3023 = vmul.f32 %v2922, %v3022
    %v3024 = vsub.f32 1.0, %v3023
    %v3025 = vmul.f32 %v3022, %v3024
    %v3026 = vadd.f32 %v3022, %v3025
    %vm3027 = vweird.f32 %v2922
    %vm3028 = vweird.f32 %v3022
    %vm3029 = vmor %vm3027, %vm3028
    %v3030 = vsel %vm3029, %v3022, %v3026
    %v3031 = vand.u32 2147483647, %v2922
    %vm3032 = vcmp.eq.f32.partialorder %v3031, 8.507059e+37
    %v3033 = vand.u32 %v2922, 2147483648
    %v3034 = vor.u32 1.1754944e-38, %v3033
    %v3035 = vsel %vm3032, %v3034, %v3030
    %v3036 = vmul.f32 1.0, %v3035
    %v3037 = vrcp.pop %v2923
    %v3038 = vmul.f32 %v2923, %v3037
    %v3039 = vsub.f32 1.0, %v3038
    %v3040 = vmul.f32 %v3037, %v3039
    %v3041 = vadd.f32 %v3037, %v3040
    %vm3042 = vweird.f32 %v2923
    %vm3043 = vweird.f32 %v3037
    %vm3044 = vmor %vm3042, %vm3043
    %v3045 = vsel %vm3044, %v3037, %v3041
    %v3046 = vand.u32 2147483647, %v2923
    %vm3047 = vcmp.eq.f32.partialorder %v3046, 8.507059e+37
    %v3048 = vand.u32 %v2923, 2147483648
    %v3049 = vor.u32 1.1754944e-38, %v3048
    %v3050 = vsel %vm3047, %v3049, %v3045
    %v3051 = vmul.f32 1.0, %v3050
    %v3052 = vrcp.pop %v2924
    %v3053 = vmul.f32 %v2924, %v3052
    %v3054 = vsub.f32 1.0, %v3053
    %v3055 = vmul.f32 %v3052, %v3054
    %v3056 = vadd.f32 %v3052, %v3055
    %vm3057 = vweird.f32 %v2924
    %vm3058 = vweird.f32 %v3052
    %vm3059 = vmor %vm3057, %vm3058
    %v3060 = vsel %vm3059, %v3052, %v3056
    %v3061 = vand.u32 2147483647, %v2924
    %vm3062 = vcmp.eq.f32.partialorder %v3061, 8.507059e+37
    %v3063 = vand.u32 %v2924, 2147483648
    %v3064 = vor.u32 1.1754944e-38, %v3063
    %v3065 = vsel %vm3062, %v3064, %v3060
    %v3066 = vmul.f32 1.0, %v3065
    %v3067 = vrcp.pop %v2925
    %v3068 = vmul.f32 %v2925, %v3067
    %v3069 = vsub.f32 1.0, %v3068
    %v3070 = vmul.f32 %v3067, %v3069
    %v3071 = vadd.f32 %v3067, %v3070
    %vm3072 = vweird.f32 %v2925
    %vm3073 = vweird.f32 %v3067
    %vm3074 = vmor %vm3072, %vm3073
    %v3075 = vsel %vm3074, %v3067, %v3071
    %v3076 = vand.u32 2147483647, %v2925
    %vm3077 = vcmp.eq.f32.partialorder %v3076, 8.507059e+37
    %v3078 = vand.u32 %v2925, 2147483648
    %v3079 = vor.u32 1.1754944e-38, %v3078
    %v3080 = vsel %vm3077, %v3079, %v3075
    %v3081 = vmul.f32 1.0, %v3080
    %v3082 = vrcp.pop %v2926
    %v3083 = vmul.f32 %v2926, %v3082
    %v3084 = vsub.f32 1.0, %v3083
    %v3085 = vmul.f32 %v3082, %v3084
    %v3086 = vadd.f32 %v3082, %v3085
    %vm3087 = vweird.f32 %v2926
    %vm3088 = vweird.f32 %v3082
    %vm3089 = vmor %vm3087, %vm3088
    %v3090 = vsel %vm3089, %v3082, %v3086
    %v3091 = vand.u32 2147483647, %v2926
    %vm3092 = vcmp.eq.f32.partialorder %v3091, 8.507059e+37
    %v3093 = vand.u32 %v2926, 2147483648
    %v3094 = vor.u32 1.1754944e-38, %v3093
    %v3095 = vsel %vm3092, %v3094, %v3090
    %v3096 = vmul.f32 1.0, %v3095
    %v3097 = vrcp.pop %v2927
    %v3098 = vmul.f32 %v2927, %v3097
    %v3099 = vsub.f32 1.0, %v3098
    %v3100 = vmul.f32 %v3097, %v3099
    %v3101 = vadd.f32 %v3097, %v3100
    %vm3102 = vweird.f32 %v2927
    %vm3103 = vweird.f32 %v3097
    %vm3104 = vmor %vm3102, %vm3103
    %v3105 = vsel %vm3104, %v3097, %v3101
    %v3106 = vand.u32 2147483647, %v2927
    %vm3107 = vcmp.eq.f32.partialorder %v3106, 8.507059e+37
    %v3108 = vand.u32 %v2927, 2147483648
    %v3109 = vor.u32 1.1754944e-38, %v3108
    %v3110 = vsel %vm3107, %v3109, %v3105
    %v3111 = vmul.f32 1.0, %v3110
    %v3112 = vrcp.pop %v2928
    %v3113 = vmul.f32 %v2928, %v3112
    %v3114 = vsub.f32 1.0, %v3113
    %v3115 = vmul.f32 %v3112, %v3114
    %v3116 = vadd.f32 %v3112, %v3115
    %vm3117 = vweird.f32 %v2928
    %vm3118 = vweird.f32 %v3112
    %vm3119 = vmor %vm3117, %vm3118
    %v3120 = vsel %vm3119, %v3112, %v3116
    %v3121 = vand.u32 2147483647, %v2928
    %vm3122 = vcmp.eq.f32.partialorder %v3121, 8.507059e+37
    %v3123 = vand.u32 %v2928, 2147483648
    %v3124 = vor.u32 1.1754944e-38, %v3123
    %v3125 = vsel %vm3122, %v3124, %v3120
    %v3126 = vmul.f32 1.0, %v3125
    %v3127 = vrcp.pop %v2929
    %v3128 = vmul.f32 %v2929, %v3127
    %v3129 = vsub.f32 1.0, %v3128
    %v3130 = vmul.f32 %v3127, %v3129
    %v3131 = vadd.f32 %v3127, %v3130
    %vm3132 = vweird.f32 %v2929
    %vm3133 = vweird.f32 %v3127
    %vm3134 = vmor %vm3132, %vm3133
    %v3135 = vsel %vm3134, %v3127, %v3131
    %v3136 = vand.u32 2147483647, %v2929
    %vm3137 = vcmp.eq.f32.partialorder %v3136, 8.507059e+37
    %v3138 = vand.u32 %v2929, 2147483648
    %v3139 = vor.u32 1.1754944e-38, %v3138
    %v3140 = vsel %vm3137, %v3139, %v3135
    %v3141 = vmul.f32 1.0, %v3140
    %v3142 = vrcp.pop %v2930
    %v3143 = vmul.f32 %v2930, %v3142
    %v3144 = vsub.f32 1.0, %v3143
    %v3145 = vmul.f32 %v3142, %v3144
    %v3146 = vadd.f32 %v3142, %v3145
    %vm3147 = vweird.f32 %v2930
    %vm3148 = vweird.f32 %v3142
    %vm3149 = vmor %vm3147, %vm3148
    %v3150 = vsel %vm3149, %v3142, %v3146
    %v3151 = vand.u32 2147483647, %v2930
    %vm3152 = vcmp.eq.f32.partialorder %v3151, 8.507059e+37
    %v3153 = vand.u32 %v2930, 2147483648
    %v3154 = vor.u32 1.1754944e-38, %v3153
    %v3155 = vsel %vm3152, %v3154, %v3150
    %v3156 = vmul.f32 1.0, %v3155
    %v3157 = vrcp.pop %v2931
    %v3158 = vmul.f32 %v2931, %v3157
    %v3159 = vsub.f32 1.0, %v3158
    %v3160 = vmul.f32 %v3157, %v3159
    %v3161 = vadd.f32 %v3157, %v3160
    %vm3162 = vweird.f32 %v2931
    %vm3163 = vweird.f32 %v3157
    %vm3164 = vmor %vm3162, %vm3163
    %v3165 = vsel %vm3164, %v3157, %v3161
    %v3166 = vand.u32 2147483647, %v2931
    %vm3167 = vcmp.eq.f32.partialorder %v3166, 8.507059e+37
    %v3168 = vand.u32 %v2931, 2147483648
    %v3169 = vor.u32 1.1754944e-38, %v3168
    %v3170 = vsel %vm3167, %v3169, %v3165
    %v3171 = vmul.f32 1.0, %v3170
    %v3188 = vlaneseq
    %v3189 = vand.u32 %v3188, 127
    %v3190 = vperm.slane %v2946, %v3189
    %v3191 = vperm.slane %v2961, %v3189
    %v3192 = vperm.slane %v2976, %v3189
    %v3193 = vperm.slane %v2991, %v3189
    %v3194 = vperm.slane %v3006, %v3189
    %v3195 = vperm.slane %v3021, %v3189
    %v3196 = vperm.slane %v3036, %v3189
    %v3197 = vperm.slane %v3051, %v3189
    %v3198 = vperm.slane %v3066, %v3189
    %v3199 = vperm.slane %v3081, %v3189
    %v3200 = vperm.slane %v3096, %v3189
    %v3201 = vperm.slane %v3111, %v3189
    %v3202 = vperm.slane %v3126, %v3189
    %v3203 = vperm.slane %v3141, %v3189
    %v3204 = vperm.slane %v3156, %v3189
    %v3205 = vperm.slane %v3171, %v3189
    %v3206 = vsel %vm2330, %v3191, %v3190
    %v3207 = vsel %vm2333, %v3192, %v3206
    %v3208 = vsel %vm2336, %v3193, %v3207
    %v3209 = vsel %vm2339, %v3194, %v3208
    %v3210 = vsel %vm2342, %v3195, %v3209
    %v3211 = vsel %vm2345, %v3196, %v3210
    %v3212 = vsel %vm2348, %v3197, %v3211
    %v3213 = vsel %vm2330, %v3199, %v3198
    %v3214 = vsel %vm2333, %v3200, %v3213
    %v3215 = vsel %vm2336, %v3201, %v3214
    %v3216 = vsel %vm2339, %v3202, %v3215
    %v3217 = vsel %vm2342, %v3203, %v3216
    %v3218 = vsel %vm2345, %v3204, %v3217
    %v3219 = vsel %vm2348, %v3205, %v3218
    %vm3222 = vcmask 64512
    %3223 = vst.msk [vmem:[#allocation6] sm:$0xff] %vm3222, %v3212
    %3224 = vst.msk [vmem:[#allocation6 + $0x8] sm:$0xff] %vm3222, %v3219
    // Predicated region
    $region18: #{pixel_attention.1} parent=1 // pred_check
      _
    $region19: #{pixel_attention.1} parent=1 // pred_check_branch
      %3226 = sbr.rel (0) target = $region21
    $region20: #{pixel_attention.1} parent=1 // pred_region
      %3228 = vsyncadd [#allocation4], 0
      %s3229 = sshll.u32 [#allocation6], 4
      %s3230 = int_to_ptr.vmem [resolvable:$true] %s3229
      %s3231 = sshll.u32 %s3, 4
      %s3232 = int_to_ptr.hbm [resolvable:$true] %s3231
      %3237 = dma.vmem_to_hbm [thread:$0]  %s3230, 256, %s3232, [#allocation4], 128, 128, 8
    $region21: #{pixel_attention.1} parent=1 // pred_fallthru
      _
    // Predicated region
    $region22: #{pixel_attention.1} parent=1 // pred_check
      _
    $region23: #{pixel_attention.1} parent=1 // pred_check_branch
      %3239 = sbr.rel (0) target = $region25
    $region24: #{pixel_attention.1} parent=1 // pred_region
      %3241 = dma.done [#allocation4], 256
    $region25: #{pixel_attention.1} parent=1 // pred_fallthru
      _
    %3242 = vsyncpa [#allocation4], 1
    %3243 = vsyncpa [#allocation5], 1

</llo_original>
